<compile_context>
chip_gen: v5e
topology: v5e:2x2
jax: 0.10.0
libtpu: 0.0.40
codegen_flags: <defaults>
</compile_context>

<pallas_src>
import functools
import math

import jax
import jax.numpy as jnp
from jax.experimental import pallas as pl
from jax.experimental.pallas import tpu as pltpu

_KS = (3, 5, 7)          # MultiScaleCNN kernel sizes
_MAXPAD = 3              # max "same" padding (K=7 -> pad 3)
_BN_EPS = 1e-5
_LN_EPS = 1e-5


# ------------------------------ spec helpers -------------------------------

def _rep0(ndim):
    return lambda i: (0,) * ndim


def _full_spec(a):
    # Whole array as one resident block (weights / biases).
    # TODO(synk): for production v7x, mark these pipeline_mode=pl.Buffered(1)
    # (constant index_map => double-buffering them only wastes VMEM).
    return pl.BlockSpec(a.shape, _rep0(a.ndim))


def _pick_bt(B, L):
    """Batch elements per grid step: aim for Bt*L >= 128 (fill the MXU M dim)
    while keeping >= 2 grid steps when possible (v7x: 2 TensorCores)."""
    cap = max(1, 128 // max(L, 1))
    cands = [bt for bt in range(1, B + 1)
             if B % bt == 0 and bt <= cap and (bt == 1 or L % 8 == 0)]
    two_step = [bt for bt in cands if B // bt >= 2]
    pool = two_step if two_step else cands
    return max(pool) if pool else 1


def _ln(z):
    mu = jnp.mean(z, axis=-1, keepdims=True)
    var = jnp.mean(jnp.square(z - mu), axis=-1, keepdims=True)
    return (z - mu) * jax.lax.rsqrt(var + _LN_EPS)


# ------------------------- fully fused forward kernel -----------------------

def _hybrid_kernel(cols_ref, wc_ref, scale_ref, shift_ref, we_ref, be_ref,
                   *rest, n_heads, num_layers, apply_sigmoid):
    layer_refs = rest[:12 * num_layers]
    wfc_ref, bfc_ref, o_ref = rest[12 * num_layers:]

    Bt, L, Dcol = cols_ref.shape

    # ---- MultiScaleCNN: one block-diagonal im2col matmul == conv3/5/7 ----
    col = cols_ref[...].reshape(Bt * L, Dcol)                          # bf16
    y = jnp.dot(col, wc_ref[...], preferred_element_type=jnp.float32)  # (Bt*L, 3*C_out)
    # conv bias + eval-mode BatchNorm folded into scale/shift, then ReLU.
    y = jnp.maximum(y * scale_ref[...] + shift_ref[...], 0.0)
    # Dropout: identity in eval mode.

    # ---- transformer embedding linear ----
    h = jnp.dot(y.astype(jnp.bfloat16), we_ref[...],
                preferred_element_type=jnp.float32) + be_ref[...]      # (Bt*L, E)

    E = h.shape[-1]
    H = n_heads
    Dh = E // H

    for l in range(num_layers):
        (wqkv, bqkv, wo, bo, g1, b1,
         w1, bf1, w2, bf2, g2, b2) = layer_refs[12 * l:12 * (l + 1)]
        x = h                                                          # (Bt*L, E) f32

        # ---- fused QKV projection: single full-E matmul (1/sqrt(Dh) in Q) ----
        qkv = jnp.dot(x.astype(jnp.bfloat16), wqkv[...],
                      preferred_element_type=jnp.float32) + bqkv[...]  # (Bt*L, 3E)
        qkv3 = qkv.reshape(Bt, L, 3 * E).astype(jnp.bfloat16)

        # ---- attention: batch-batched per head (K=Dh contraction is inherent) ----
        # TODO(synk): for production L >~ 512 (esp. v7x 64 MiB VMEM) tile the KV
        # axis with an online-softmax loop instead of materializing (L, L) scores.
        ctx_heads = []
        for hh in range(H):
            qh = qkv3[:, :, hh * Dh:(hh + 1) * Dh]
            kh = qkv3[:, :, E + hh * Dh:E + (hh + 1) * Dh]
            vh = qkv3[:, :, 2 * E + hh * Dh:2 * E + (hh + 1) * Dh]
            s = jnp.einsum('bqd,bkd->bqk', qh, kh,
                           preferred_element_type=jnp.float32)         # (Bt, L, L)
            s = s - jnp.max(s, axis=-1, keepdims=True)
            p = jnp.exp(s)
            p = p * pl.reciprocal(jnp.sum(p, axis=-1, keepdims=True), approx=True)
            ctx_heads.append(
                jnp.einsum('bqk,bkd->bqd', p.astype(jnp.bfloat16), vh,
                           preferred_element_type=jnp.float32))        # (Bt, L, Dh)
        ctx = jnp.concatenate(ctx_heads, axis=-1).reshape(Bt * L, E)

        # ---- output projection: single (Bt*L, E) x (E, E) matmul ----
        sa = jnp.dot(ctx.astype(jnp.bfloat16), wo[...],
                     preferred_element_type=jnp.float32) + bo[...]

        # ---- residual + LayerNorm 1 (post-norm, dropout = identity) ----
        h1 = _ln(x + sa) * g1[...] + b1[...]

        # ---- feed-forward (ReLU) ----
        f = jnp.dot(h1.astype(jnp.bfloat16), w1[...],
                    preferred_element_type=jnp.float32) + bf1[...]
        f = jnp.maximum(f, 0.0)
        f = jnp.dot(f.astype(jnp.bfloat16), w2[...],
                    preferred_element_type=jnp.float32) + bf2[...]

        # ---- residual + LayerNorm 2 ----
        h = _ln(h1 + f) * g2[...] + b2[...]

    # ---- mean-pool (1/L folded into wfc) + fc + sigmoid ----
    pooled = jnp.sum(h.reshape(Bt, L, E), axis=1)                      # (Bt, E)
    logits = jnp.dot(pooled.astype(jnp.bfloat16), wfc_ref[...],
                     preferred_element_type=jnp.float32) + bfc_ref[...]  # (Bt, C)
    if apply_sigmoid:
        z = jnp.exp(-jnp.abs(logits))                    # numerically stable sigmoid
        logits = jnp.where(logits >= 0.0, 1.0 / (1.0 + z), z / (1.0 + z))
    C = bfc_ref.shape[-1]
    # Only HBM store in the whole kernel: tiny (Bt, 1, C) block per step.
    o_ref[...] = logits.reshape(Bt, 1, C)


def hybrid_model_forward(x_ncw, fused, *, n_heads):
    # x_ncw: (B, C_in, L) -- PyTorch NCW layout at the API boundary.
    B, C_in, L = x_ncw.shape
    num_layers = len(fused['layers'])
    C = fused['wfc'].shape[1]

    # Wrapper-side im2col (cheap one-time XLA slices) -> bf16 (B, L, sum(K)*C_in).
    x_nwc = jnp.transpose(x_ncw, (0, 2, 1))
    x_pad = jnp.pad(x_nwc, ((0, 0), (_MAXPAD, _MAXPAD), (0, 0)))
    offs = tuple(_MAXPAD - K // 2 + k for K in _KS for k in range(K))
    cols = jnp.concatenate([x_pad[:, o:o + L, :] for o in offs],
                           axis=-1).astype(jnp.bfloat16)

    bt = _pick_bt(B, L)
    nsteps = B // bt

    ins = [cols, fused['wc'], fused['scale'], fused['shift'],
           fused['we'], fused['be']]
    for lp in fused['layers']:
        ins += [lp['wqkv'], lp['bqkv'], lp['wo'], lp['bo'], lp['g1'], lp['b1'],
                lp['w1'], lp['bf1'], lp['w2'], lp['bf2'], lp['g2'], lp['b2']]
    ins += [fused['wfc'], fused['bfc']]

    in_specs = [pl.BlockSpec((bt, L, cols.shape[-1]), lambda i: (i, 0, 0))]
    in_specs += [_full_spec(a) for a in ins[1:]]

    kernel = functools.partial(_hybrid_kernel, n_heads=n_heads,
                               num_layers=num_layers, apply_sigmoid=(C == 1))

    out = pl.pallas_call(
        kernel,
        out_shape=jax.ShapeDtypeStruct((B, 1, C), jnp.float32),
        grid=(nsteps,),
        in_specs=in_specs,
        out_specs=pl.BlockSpec((bt, 1, C), lambda i: (i, 0, 0)),
        compiler_params=pltpu.CompilerParams(dimension_semantics=("parallel",)),
    )(*ins)
    return out[:, 0, :]                                                # (B, C)


# --------------------------- parameter handling ------------------------------

def init_params(key, in_channels, out_channels, embed_dim, n_heads, num_layers,
                num_classes=1, dim_feedforward=512):
    keys = jax.random.split(key, 64)
    it = iter(keys)

    def nrm(shape, scale=0.05):
        return scale * jax.random.normal(next(it), shape, dtype=jnp.float32)

    params = {}
    for K in _KS:
        params[f'conv{K}'] = {
            'w': nrm((K, in_channels, out_channels)),      # (K, C_in, C_out), tap-major
            'b': nrm((out_channels,)),
            'bn_gamma': jnp.ones((out_channels,), jnp.float32),
            'bn_beta': jnp.zeros((out_channels,), jnp.float32),
            'bn_mean': jnp.zeros((out_channels,), jnp.float32),   # running stats (eval)
            'bn_var': jnp.ones((out_channels,), jnp.float32),
        }
    Din = 3 * out_channels
    params['embed'] = {'w': nrm((Din, embed_dim)),
                       'b': jnp.zeros((embed_dim,), jnp.float32)}
    layers = []
    for _ in range(num_layers):
        layers.append({
            'w_in': nrm((embed_dim, 3 * embed_dim)),
            'b_in': jnp.zeros((3 * embed_dim,), jnp.float32),
            'w_out': nrm((embed_dim, embed_dim)),
            'b_out': jnp.zeros((embed_dim,), jnp.float32),
            'ln1_g': jnp.ones((embed_dim,), jnp.float32),
            'ln1_b': jnp.zeros((embed_dim,), jnp.float32),
            'ff_w1': nrm((embed_dim, dim_feedforward)),
            'ff_b1': jnp.zeros((dim_feedforward,), jnp.float32),
            'ff_w2': nrm((dim_feedforward, embed_dim)),
            'ff_b2': jnp.zeros((embed_dim,), jnp.float32),
            'ln2_g': jnp.ones((embed_dim,), jnp.float32),
            'ln2_b': jnp.zeros((embed_dim,), jnp.float32),
        })
    params['layers'] = layers
    params['fc'] = {'w': nrm((embed_dim, num_classes)),
                    'b': jnp.zeros((num_classes,), jnp.float32)}
    return params


def fuse_params(params, n_heads, seq_len):
    """One-time repacking: block-diagonal im2col conv weight, folded conv-bias+BN,
    fused (E,3E) QKV weight with 1/sqrt(Dh) folded into Q, mean-pool 1/L folded
    into the fc weight, bf16 casts for all MXU matmul operands."""
    bf16 = jnp.bfloat16
    C_in = params['conv3']['w'].shape[1]
    C_out = params['conv3']['w'].shape[2]

    rows = sum(_KS) * C_in
    wc = jnp.zeros((rows, 3 * C_out), jnp.float32)
    scales, shifts = [], []
    r0, c0 = 0, 0
    for K in _KS:
        p = params[f'conv{K}']
        w2d = p['w'].reshape(K * C_in, C_out)
        wc = wc.at[r0:r0 + K * C_in, c0:c0 + C_out].set(w2d)
        s = p['bn_gamma'] * jax.lax.rsqrt(p['bn_var'] + _BN_EPS)
        scales.append(s)
        shifts.append((p['b'] - p['bn_mean']) * s + p['bn_beta'])
        r0 += K * C_in
        c0 += C_out

    fused = {
        'wc': wc.astype(bf16),
        'scale': jnp.concatenate(scales)[None, :],
        'shift': jnp.concatenate(shifts)[None, :],
        'we': params['embed']['w'].astype(bf16),
        'be': params['embed']['b'][None, :],
    }

    E = params['embed']['w'].shape[1]
    assert E % n_heads == 0
    inv = 1.0 / math.sqrt(E // n_heads)

    fls = []
    for lp in params['layers']:
        w_in, b_in = lp['w_in'], lp['b_in']
        wqkv = jnp.concatenate([w_in[:, :E] * inv, w_in[:, E:]], axis=1)
        bqkv = jnp.concatenate([b_in[:E] * inv, b_in[E:]])
        fls.append({
            'wqkv': wqkv.astype(bf16), 'bqkv': bqkv[None, :],
            'wo': lp['w_out'].astype(bf16), 'bo': lp['b_out'][None, :],
            'g1': lp['ln1_g'][None, :], 'b1': lp['ln1_b'][None, :],
            'w1': lp['ff_w1'].astype(bf16), 'bf1': lp['ff_b1'][None, :],
            'w2': lp['ff_w2'].astype(bf16), 'bf2': lp['ff_b2'][None, :],
            'g2': lp['ln2_g'][None, :], 'b2': lp['ln2_b'][None, :],
        })
    fused['layers'] = fls
    fused['wfc'] = (params['fc']['w'] * (1.0 / seq_len)).astype(bf16)
    fused['bfc'] = params['fc']['b'][None, :]
    return fused


# ------------------------- pure-JAX reference (f32) --------------------------

def reference_forward(x_ncw, params, n_heads):
    B, C_in, L = x_ncw.shape
    x = jnp.transpose(x_ncw, (0, 2, 1))
    xp = jnp.pad(x, ((0, 0), (_MAXPAD, _MAXPAD), (0, 0)))
    outs = []
    for K in _KS:
        p = params[f'conv{K}']
        acc = jnp.zeros((B, L, p['w'].shape[2]), jnp.float32)
        for k in range(K):
            o = _MAXPAD - K // 2 + k
            acc = acc + jnp.einsum('blc,co->blo', xp[:, o:o + L, :], p['w'][k])
        acc = acc + p['b']
        s = p['bn_gamma'] * jax.lax.rsqrt(p['bn_var'] + _BN_EPS)
        acc = (acc - p['bn_mean']) * s + p['bn_beta']
        outs.append(jax.nn.relu(acc))
    h = jnp.concatenate(outs, axis=-1) @ params['embed']['w'] + params['embed']['b']
    E = h.shape[-1]
    H = n_heads
    Dh = E // H
    for lp in params['layers']:
        qkv = h @ lp['w_in'] + lp['b_in']
        q, k, v = qkv[..., :E], qkv[..., E:2 * E], qkv[..., 2 * E:]
        qh = q.reshape(B, L, H, Dh).transpose(0, 2, 1, 3)
        kh = k.reshape(B, L, H, Dh).transpose(0, 2, 1, 3)
        vh = v.reshape(B, L, H, Dh).transpose(0, 2, 1, 3)
        s_ = jnp.einsum('bhqd,bhkd->bhqk', qh, kh) / math.sqrt(Dh)
        p_ = jax.nn.softmax(s_, axis=-1)
        ctx = jnp.einsum('bhqk,bhkd->bhqd', p_, vh).transpose(0, 2, 1, 3).reshape(B, L, E)
        sa = ctx @ lp['w_out'] + lp['b_out']
        h1 = _ln(h + sa) * lp['ln1_g'] + lp['ln1_b']
        f = jax.nn.relu(h1 @ lp['ff_w1'] + lp['ff_b1']) @ lp['ff_w2'] + lp['ff_b2']
        h = _ln(h1 + f) * lp['ln2_g'] + lp['ln2_b']
    pooled = jnp.mean(h, axis=1)
    logits = pooled @ params['fc']['w'] + params['fc']['b']
    return jax.nn.sigmoid(logits) if logits.shape[1] == 1 else logits


# ----------------------------------- main ------------------------------------

if __name__ == "__main__":
    B, C_in, L = 2, 4, 16
    out_channels, embed_dim, n_heads, num_layers = 8, 32, 4, 2

    key = jax.random.PRNGKey(0)
    pkey, xkey = jax.random.split(key)
    params = init_params(pkey, C_in, out_channels, embed_dim, n_heads, num_layers)
    fused = fuse_params(params, n_heads, seq_len=L)
    x = jax.random.normal(xkey, (B, C_in, L), dtype=jnp.float32)

    fwd = jax.jit(functools.partial(hybrid_model_forward, n_heads=n_heads))
    out = jax.block_until_ready(fwd(x, fused))

    assert out.shape == (B, 1)
    assert bool(jnp.all(jnp.isfinite(out)))
    assert bool(jnp.all((out >= 0.0) & (out <= 1.0)))

    # Loose parity vs. f32 pure-JAX reference (bf16 MXU + approx reciprocal drift).
    ref = reference_forward(x, params, n_heads)
    assert bool(jnp.max(jnp.abs(out - ref)) < 5e-2)

    print("KERNEL_OK")
</pallas_src>

<mosaic_0001>
module attributes {stable_mosaic.version = 11 : i64} {
  func.func @_hybrid_kernel(%arg0: i32, %arg1: memref<1x16x60xbf16, #tpu.memory_space<vmem>>, %arg2: memref<60x24xbf16, #tpu.memory_space<vmem>>, %arg3: memref<1x24xf32, #tpu.memory_space<vmem>>, %arg4: memref<1x24xf32, #tpu.memory_space<vmem>>, %arg5: memref<24x32xbf16, #tpu.memory_space<vmem>>, %arg6: memref<1x32xf32, #tpu.memory_space<vmem>>, %arg7: memref<32x96xbf16, #tpu.memory_space<vmem>>, %arg8: memref<1x96xf32, #tpu.memory_space<vmem>>, %arg9: memref<32x32xbf16, #tpu.memory_space<vmem>>, %arg10: memref<1x32xf32, #tpu.memory_space<vmem>>, %arg11: memref<1x32xf32, #tpu.memory_space<vmem>>, %arg12: memref<1x32xf32, #tpu.memory_space<vmem>>, %arg13: memref<32x512xbf16, #tpu.memory_space<vmem>>, %arg14: memref<1x512xf32, #tpu.memory_space<vmem>>, %arg15: memref<512x32xbf16, #tpu.memory_space<vmem>>, %arg16: memref<1x32xf32, #tpu.memory_space<vmem>>, %arg17: memref<1x32xf32, #tpu.memory_space<vmem>>, %arg18: memref<1x32xf32, #tpu.memory_space<vmem>>, %arg19: memref<32x96xbf16, #tpu.memory_space<vmem>>, %arg20: memref<1x96xf32, #tpu.memory_space<vmem>>, %arg21: memref<32x32xbf16, #tpu.memory_space<vmem>>, %arg22: memref<1x32xf32, #tpu.memory_space<vmem>>, %arg23: memref<1x32xf32, #tpu.memory_space<vmem>>, %arg24: memref<1x32xf32, #tpu.memory_space<vmem>>, %arg25: memref<32x512xbf16, #tpu.memory_space<vmem>>, %arg26: memref<1x512xf32, #tpu.memory_space<vmem>>, %arg27: memref<512x32xbf16, #tpu.memory_space<vmem>>, %arg28: memref<1x32xf32, #tpu.memory_space<vmem>>, %arg29: memref<1x32xf32, #tpu.memory_space<vmem>>, %arg30: memref<1x32xf32, #tpu.memory_space<vmem>>, %arg31: memref<32x1xbf16, #tpu.memory_space<vmem>>, %arg32: memref<1x1xf32, #tpu.memory_space<vmem>>, %arg33: memref<1x1x1xf32, #tpu.memory_space<vmem>>) attributes {dimension_semantics = [#tpu.dimension_semantics<parallel>], iteration_bounds = array<i64: 2>, scalar_prefetch = 0 : i64, scratch_operands = 0 : i64, tpu.core_type = #tpu.core_type<tc>, window_params = [{transform_indices = @transform_0, window_bounds = array<i64: 1, 16, 60>}, {pipeline_mode = #tpu.pipeline_mode<synchronous>, transform_indices = @transform_1, window_bounds = array<i64: 60, 24>}, {pipeline_mode = #tpu.pipeline_mode<synchronous>, transform_indices = @transform_2, window_bounds = array<i64: 1, 24>}, {pipeline_mode = #tpu.pipeline_mode<synchronous>, transform_indices = @transform_3, window_bounds = array<i64: 1, 24>}, {pipeline_mode = #tpu.pipeline_mode<synchronous>, transform_indices = @transform_4, window_bounds = array<i64: 24, 32>}, {pipeline_mode = #tpu.pipeline_mode<synchronous>, transform_indices = @transform_5, window_bounds = array<i64: 1, 32>}, {pipeline_mode = #tpu.pipeline_mode<synchronous>, transform_indices = @transform_6, window_bounds = array<i64: 32, 96>}, {pipeline_mode = #tpu.pipeline_mode<synchronous>, transform_indices = @transform_7, window_bounds = array<i64: 1, 96>}, {pipeline_mode = #tpu.pipeline_mode<synchronous>, transform_indices = @transform_8, window_bounds = array<i64: 32, 32>}, {pipeline_mode = #tpu.pipeline_mode<synchronous>, transform_indices = @transform_9, window_bounds = array<i64: 1, 32>}, {pipeline_mode = #tpu.pipeline_mode<synchronous>, transform_indices = @transform_10, window_bounds = array<i64: 1, 32>}, {pipeline_mode = #tpu.pipeline_mode<synchronous>, transform_indices = @transform_11, window_bounds = array<i64: 1, 32>}, {pipeline_mode = #tpu.pipeline_mode<synchronous>, transform_indices = @transform_12, window_bounds = array<i64: 32, 512>}, {pipeline_mode = #tpu.pipeline_mode<synchronous>, transform_indices = @transform_13, window_bounds = array<i64: 1, 512>}, {pipeline_mode = #tpu.pipeline_mode<synchronous>, transform_indices = @transform_14, window_bounds = array<i64: 512, 32>}, {pipeline_mode = #tpu.pipeline_mode<synchronous>, transform_indices = @transform_15, window_bounds = array<i64: 1, 32>}, {pipeline_mode = #tpu.pipeline_mode<synchronous>, transform_indices = @transform_16, window_bounds = array<i64: 1, 32>}, {pipeline_mode = #tpu.pipeline_mode<synchronous>, transform_indices = @transform_17, window_bounds = array<i64: 1, 32>}, {pipeline_mode = #tpu.pipeline_mode<synchronous>, transform_indices = @transform_18, window_bounds = array<i64: 32, 96>}, {pipeline_mode = #tpu.pipeline_mode<synchronous>, transform_indices = @transform_19, window_bounds = array<i64: 1, 96>}, {pipeline_mode = #tpu.pipeline_mode<synchronous>, transform_indices = @transform_20, window_bounds = array<i64: 32, 32>}, {pipeline_mode = #tpu.pipeline_mode<synchronous>, transform_indices = @transform_21, window_bounds = array<i64: 1, 32>}, {pipeline_mode = #tpu.pipeline_mode<synchronous>, transform_indices = @transform_22, window_bounds = array<i64: 1, 32>}, {pipeline_mode = #tpu.pipeline_mode<synchronous>, transform_indices = @transform_23, window_bounds = array<i64: 1, 32>}, {pipeline_mode = #tpu.pipeline_mode<synchronous>, transform_indices = @transform_24, window_bounds = array<i64: 32, 512>}, {pipeline_mode = #tpu.pipeline_mode<synchronous>, transform_indices = @transform_25, window_bounds = array<i64: 1, 512>}, {pipeline_mode = #tpu.pipeline_mode<synchronous>, transform_indices = @transform_26, window_bounds = array<i64: 512, 32>}, {pipeline_mode = #tpu.pipeline_mode<synchronous>, transform_indices = @transform_27, window_bounds = array<i64: 1, 32>}, {pipeline_mode = #tpu.pipeline_mode<synchronous>, transform_indices = @transform_28, window_bounds = array<i64: 1, 32>}, {pipeline_mode = #tpu.pipeline_mode<synchronous>, transform_indices = @transform_29, window_bounds = array<i64: 1, 32>}, {pipeline_mode = #tpu.pipeline_mode<synchronous>, transform_indices = @transform_30, window_bounds = array<i64: 32, 1>}, {pipeline_mode = #tpu.pipeline_mode<synchronous>, transform_indices = @transform_31, window_bounds = array<i64: 1, 1>}, {transform_indices = @transform_32, window_bounds = array<i64: 1, 1, 1>}]} {
    %c0 = arith.constant 0 : index
    %c0_0 = arith.constant 0 : index
    %c0_1 = arith.constant 0 : index
    %0 = vector.load %arg1[%c0, %c0_0, %c0_1] : memref<1x16x60xbf16, #tpu.memory_space<vmem>>, vector<1x16x60xbf16>
    %1 = vector.shape_cast %0 : vector<1x16x60xbf16> to vector<16x60xbf16>
    %c0_2 = arith.constant 0 : index
    %c0_3 = arith.constant 0 : index
    %2 = vector.load %arg2[%c0_2, %c0_3] : memref<60x24xbf16, #tpu.memory_space<vmem>>, vector<60x24xbf16>
    %cst = arith.constant dense<0.000000e+00> : vector<16x24xf32>
    %3 = tpu.matmul %1, %2, %cst {dimension_numbers = #tpu.dot_dimension_numbers<[1], [0], [0], [1], [0, 0, 1, 1], [], []>} : vector<16x60xbf16>, vector<60x24xbf16>, vector<16x24xf32> -> vector<16x24xf32>
    %c0_4 = arith.constant 0 : index
    %c0_5 = arith.constant 0 : index
    %4 = vector.load %arg3[%c0_4, %c0_5] : memref<1x24xf32, #tpu.memory_space<vmem>>, vector<1x24xf32>
    %5 = vector.broadcast %4 : vector<1x24xf32> to vector<16x24xf32>
    %6 = arith.mulf %3, %5 : vector<16x24xf32>
    %c0_6 = arith.constant 0 : index
    %c0_7 = arith.constant 0 : index
    %7 = vector.load %arg4[%c0_6, %c0_7] : memref<1x24xf32, #tpu.memory_space<vmem>>, vector<1x24xf32>
    %8 = vector.broadcast %7 : vector<1x24xf32> to vector<16x24xf32>
    %9 = arith.addf %6, %8 : vector<16x24xf32>
    %cst_8 = arith.constant 0.000000e+00 : f32
    %10 = vector.broadcast %cst_8 : f32 to vector<16x24xf32>
    %11 = arith.maximumf %9, %10 : vector<16x24xf32>
    %12 = arith.truncf %11 : vector<16x24xf32> to vector<16x24xbf16>
    %c0_9 = arith.constant 0 : index
    %c0_10 = arith.constant 0 : index
    %13 = vector.load %arg5[%c0_9, %c0_10] : memref<24x32xbf16, #tpu.memory_space<vmem>>, vector<24x32xbf16>
    %cst_11 = arith.constant dense<0.000000e+00> : vector<16x32xf32>
    %14 = tpu.matmul %12, %13, %cst_11 {dimension_numbers = #tpu.dot_dimension_numbers<[1], [0], [0], [1], [0, 0, 1, 1], [], []>} : vector<16x24xbf16>, vector<24x32xbf16>, vector<16x32xf32> -> vector<16x32xf32>
    %c0_12 = arith.constant 0 : index
    %c0_13 = arith.constant 0 : index
    %15 = vector.load %arg6[%c0_12, %c0_13] : memref<1x32xf32, #tpu.memory_space<vmem>>, vector<1x32xf32>
    %16 = vector.broadcast %15 : vector<1x32xf32> to vector<16x32xf32>
    %17 = arith.addf %14, %16 : vector<16x32xf32>
    %18 = arith.truncf %17 : vector<16x32xf32> to vector<16x32xbf16>
    %c0_14 = arith.constant 0 : index
    %c0_15 = arith.constant 0 : index
    %19 = vector.load %arg7[%c0_14, %c0_15] : memref<32x96xbf16, #tpu.memory_space<vmem>>, vector<32x96xbf16>
    %cst_16 = arith.constant dense<0.000000e+00> : vector<16x96xf32>
    %20 = tpu.matmul %18, %19, %cst_16 {dimension_numbers = #tpu.dot_dimension_numbers<[1], [0], [0], [1], [0, 0, 1, 1], [], []>} : vector<16x32xbf16>, vector<32x96xbf16>, vector<16x96xf32> -> vector<16x96xf32>
    %c0_17 = arith.constant 0 : index
    %c0_18 = arith.constant 0 : index
    %21 = vector.load %arg8[%c0_17, %c0_18] : memref<1x96xf32, #tpu.memory_space<vmem>>, vector<1x96xf32>
    %22 = vector.broadcast %21 : vector<1x96xf32> to vector<16x96xf32>
    %23 = arith.addf %20, %22 : vector<16x96xf32>
    %24 = vector.shape_cast %23 : vector<16x96xf32> to vector<1x16x96xf32>
    %25 = arith.truncf %24 : vector<1x16x96xf32> to vector<1x16x96xbf16>
    %26 = vector.extract_strided_slice %25 {offsets = [0, 0, 0], sizes = [1, 16, 8], strides = [1, 1, 1]} : vector<1x16x96xbf16> to vector<1x16x8xbf16>
    %27 = vector.extract_strided_slice %25 {offsets = [0, 0, 32], sizes = [1, 16, 8], strides = [1, 1, 1]} : vector<1x16x96xbf16> to vector<1x16x8xbf16>
    %28 = vector.extract_strided_slice %25 {offsets = [0, 0, 64], sizes = [1, 16, 8], strides = [1, 1, 1]} : vector<1x16x96xbf16> to vector<1x16x8xbf16>
    "tpu.trace_start"() <{level = 10 : i32, message = "bqd,bkd->bqk"}> : () -> ()
    %cst_19 = arith.constant dense<0.000000e+00> : vector<1x16x16xf32>
    %29 = tpu.matmul %26, %27, %cst_19 {dimension_numbers = #tpu.dot_dimension_numbers<[2], [2], [1], [1], [0, 0, 0, 1, 1, 1], [0], [0]>} : vector<1x16x8xbf16>, vector<1x16x8xbf16>, vector<1x16x16xf32> -> vector<1x16x16xf32>
    "tpu.trace_stop"() : () -> ()
    %cst_20 = arith.constant dense<0xFF800000> : vector<1x16xf32>
    %30 = vector.multi_reduction <maximumf>, %29, %cst_20 [2] : vector<1x16x16xf32> to vector<1x16xf32>
    %31 = vector.shape_cast %30 : vector<1x16xf32> to vector<1x16x1xf32>
    %32 = vector.broadcast %31 : vector<1x16x1xf32> to vector<1x16x16xf32>
    %33 = arith.subf %29, %32 : vector<1x16x16xf32>
    %34 = math.exp %33 : vector<1x16x16xf32>
    %cst_21 = arith.constant dense<0.000000e+00> : vector<1x16xf32>
    %35 = vector.multi_reduction <add>, %34, %cst_21 [2] : vector<1x16x16xf32> to vector<1x16xf32>
    %36 = vector.shape_cast %35 : vector<1x16xf32> to vector<1x16x1xf32>
    %37 = tpu.reciprocal %36 {approx = true} : vector<1x16x1xf32> -> vector<1x16x1xf32>
    %38 = vector.broadcast %37 : vector<1x16x1xf32> to vector<1x16x16xf32>
    %39 = arith.mulf %34, %38 : vector<1x16x16xf32>
    %40 = arith.truncf %39 : vector<1x16x16xf32> to vector<1x16x16xbf16>
    "tpu.trace_start"() <{level = 10 : i32, message = "bqk,bkd->bqd"}> : () -> ()
    %cst_22 = arith.constant dense<0.000000e+00> : vector<1x16x8xf32>
    %41 = tpu.matmul %40, %28, %cst_22 {dimension_numbers = #tpu.dot_dimension_numbers<[2], [1], [1], [2], [0, 0, 0, 1, 1, 2], [0], [0]>} : vector<1x16x16xbf16>, vector<1x16x8xbf16>, vector<1x16x8xf32> -> vector<1x16x8xf32>
    "tpu.trace_stop"() : () -> ()
    %42 = vector.extract_strided_slice %25 {offsets = [0, 0, 8], sizes = [1, 16, 8], strides = [1, 1, 1]} : vector<1x16x96xbf16> to vector<1x16x8xbf16>
    %43 = vector.extract_strided_slice %25 {offsets = [0, 0, 40], sizes = [1, 16, 8], strides = [1, 1, 1]} : vector<1x16x96xbf16> to vector<1x16x8xbf16>
    %44 = vector.extract_strided_slice %25 {offsets = [0, 0, 72], sizes = [1, 16, 8], strides = [1, 1, 1]} : vector<1x16x96xbf16> to vector<1x16x8xbf16>
    "tpu.trace_start"() <{level = 10 : i32, message = "bqd,bkd->bqk"}> : () -> ()
    %cst_23 = arith.constant dense<0.000000e+00> : vector<1x16x16xf32>
    %45 = tpu.matmul %42, %43, %cst_23 {dimension_numbers = #tpu.dot_dimension_numbers<[2], [2], [1], [1], [0, 0, 0, 1, 1, 1], [0], [0]>} : vector<1x16x8xbf16>, vector<1x16x8xbf16>, vector<1x16x16xf32> -> vector<1x16x16xf32>
    "tpu.trace_stop"() : () -> ()
    %cst_24 = arith.constant dense<0xFF800000> : vector<1x16xf32>
    %46 = vector.multi_reduction <maximumf>, %45, %cst_24 [2] : vector<1x16x16xf32> to vector<1x16xf32>
    %47 = vector.shape_cast %46 : vector<1x16xf32> to vector<1x16x1xf32>
    %48 = vector.broadcast %47 : vector<1x16x1xf32> to vector<1x16x16xf32>
    %49 = arith.subf %45, %48 : vector<1x16x16xf32>
    %50 = math.exp %49 : vector<1x16x16xf32>
    %cst_25 = arith.constant dense<0.000000e+00> : vector<1x16xf32>
    %51 = vector.multi_reduction <add>, %50, %cst_25 [2] : vector<1x16x16xf32> to vector<1x16xf32>
    %52 = vector.shape_cast %51 : vector<1x16xf32> to vector<1x16x1xf32>
    %53 = tpu.reciprocal %52 {approx = true} : vector<1x16x1xf32> -> vector<1x16x1xf32>
    %54 = vector.broadcast %53 : vector<1x16x1xf32> to vector<1x16x16xf32>
    %55 = arith.mulf %50, %54 : vector<1x16x16xf32>
    %56 = arith.truncf %55 : vector<1x16x16xf32> to vector<1x16x16xbf16>
    "tpu.trace_start"() <{level = 10 : i32, message = "bqk,bkd->bqd"}> : () -> ()
    %cst_26 = arith.constant dense<0.000000e+00> : vector<1x16x8xf32>
    %57 = tpu.matmul %56, %44, %cst_26 {dimension_numbers = #tpu.dot_dimension_numbers<[2], [1], [1], [2], [0, 0, 0, 1, 1, 2], [0], [0]>} : vector<1x16x16xbf16>, vector<1x16x8xbf16>, vector<1x16x8xf32> -> vector<1x16x8xf32>
    "tpu.trace_stop"() : () -> ()
    %58 = vector.extract_strided_slice %25 {offsets = [0, 0, 16], sizes = [1, 16, 8], strides = [1, 1, 1]} : vector<1x16x96xbf16> to vector<1x16x8xbf16>
    %59 = vector.extract_strided_slice %25 {offsets = [0, 0, 48], sizes = [1, 16, 8], strides = [1, 1, 1]} : vector<1x16x96xbf16> to vector<1x16x8xbf16>
    %60 = vector.extract_strided_slice %25 {offsets = [0, 0, 80], sizes = [1, 16, 8], strides = [1, 1, 1]} : vector<1x16x96xbf16> to vector<1x16x8xbf16>
    "tpu.trace_start"() <{level = 10 : i32, message = "bqd,bkd->bqk"}> : () -> ()
    %cst_27 = arith.constant dense<0.000000e+00> : vector<1x16x16xf32>
    %61 = tpu.matmul %58, %59, %cst_27 {dimension_numbers = #tpu.dot_dimension_numbers<[2], [2], [1], [1], [0, 0, 0, 1, 1, 1], [0], [0]>} : vector<1x16x8xbf16>, vector<1x16x8xbf16>, vector<1x16x16xf32> -> vector<1x16x16xf32>
    "tpu.trace_stop"() : () -> ()
    %cst_28 = arith.constant dense<0xFF800000> : vector<1x16xf32>
    %62 = vector.multi_reduction <maximumf>, %61, %cst_28 [2] : vector<1x16x16xf32> to vector<1x16xf32>
    %63 = vector.shape_cast %62 : vector<1x16xf32> to vector<1x16x1xf32>
    %64 = vector.broadcast %63 : vector<1x16x1xf32> to vector<1x16x16xf32>
    %65 = arith.subf %61, %64 : vector<1x16x16xf32>
    %66 = math.exp %65 : vector<1x16x16xf32>
    %cst_29 = arith.constant dense<0.000000e+00> : vector<1x16xf32>
    %67 = vector.multi_reduction <add>, %66, %cst_29 [2] : vector<1x16x16xf32> to vector<1x16xf32>
    %68 = vector.shape_cast %67 : vector<1x16xf32> to vector<1x16x1xf32>
    %69 = tpu.reciprocal %68 {approx = true} : vector<1x16x1xf32> -> vector<1x16x1xf32>
    %70 = vector.broadcast %69 : vector<1x16x1xf32> to vector<1x16x16xf32>
    %71 = arith.mulf %66, %70 : vector<1x16x16xf32>
    %72 = arith.truncf %71 : vector<1x16x16xf32> to vector<1x16x16xbf16>
    "tpu.trace_start"() <{level = 10 : i32, message = "bqk,bkd->bqd"}> : () -> ()
    %cst_30 = arith.constant dense<0.000000e+00> : vector<1x16x8xf32>
    %73 = tpu.matmul %72, %60, %cst_30 {dimension_numbers = #tpu.dot_dimension_numbers<[2], [1], [1], [2], [0, 0, 0, 1, 1, 2], [0], [0]>} : vector<1x16x16xbf16>, vector<1x16x8xbf16>, vector<1x16x8xf32> -> vector<1x16x8xf32>
    "tpu.trace_stop"() : () -> ()
    %74 = vector.extract_strided_slice %25 {offsets = [0, 0, 24], sizes = [1, 16, 8], strides = [1, 1, 1]} : vector<1x16x96xbf16> to vector<1x16x8xbf16>
    %75 = vector.extract_strided_slice %25 {offsets = [0, 0, 56], sizes = [1, 16, 8], strides = [1, 1, 1]} : vector<1x16x96xbf16> to vector<1x16x8xbf16>
    %76 = vector.extract_strided_slice %25 {offsets = [0, 0, 88], sizes = [1, 16, 8], strides = [1, 1, 1]} : vector<1x16x96xbf16> to vector<1x16x8xbf16>
    "tpu.trace_start"() <{level = 10 : i32, message = "bqd,bkd->bqk"}> : () -> ()
    %cst_31 = arith.constant dense<0.000000e+00> : vector<1x16x16xf32>
    %77 = tpu.matmul %74, %75, %cst_31 {dimension_numbers = #tpu.dot_dimension_numbers<[2], [2], [1], [1], [0, 0, 0, 1, 1, 1], [0], [0]>} : vector<1x16x8xbf16>, vector<1x16x8xbf16>, vector<1x16x16xf32> -> vector<1x16x16xf32>
    "tpu.trace_stop"() : () -> ()
    %cst_32 = arith.constant dense<0xFF800000> : vector<1x16xf32>
    %78 = vector.multi_reduction <maximumf>, %77, %cst_32 [2] : vector<1x16x16xf32> to vector<1x16xf32>
    %79 = vector.shape_cast %78 : vector<1x16xf32> to vector<1x16x1xf32>
    %80 = vector.broadcast %79 : vector<1x16x1xf32> to vector<1x16x16xf32>
    %81 = arith.subf %77, %80 : vector<1x16x16xf32>
    %82 = math.exp %81 : vector<1x16x16xf32>
    %cst_33 = arith.constant dense<0.000000e+00> : vector<1x16xf32>
    %83 = vector.multi_reduction <add>, %82, %cst_33 [2] : vector<1x16x16xf32> to vector<1x16xf32>
    %84 = vector.shape_cast %83 : vector<1x16xf32> to vector<1x16x1xf32>
    %85 = tpu.reciprocal %84 {approx = true} : vector<1x16x1xf32> -> vector<1x16x1xf32>
    %86 = vector.broadcast %85 : vector<1x16x1xf32> to vector<1x16x16xf32>
    %87 = arith.mulf %82, %86 : vector<1x16x16xf32>
    %88 = arith.truncf %87 : vector<1x16x16xf32> to vector<1x16x16xbf16>
    "tpu.trace_start"() <{level = 10 : i32, message = "bqk,bkd->bqd"}> : () -> ()
    %cst_34 = arith.constant dense<0.000000e+00> : vector<1x16x8xf32>
    %89 = tpu.matmul %88, %76, %cst_34 {dimension_numbers = #tpu.dot_dimension_numbers<[2], [1], [1], [2], [0, 0, 0, 1, 1, 2], [0], [0]>} : vector<1x16x16xbf16>, vector<1x16x8xbf16>, vector<1x16x8xf32> -> vector<1x16x8xf32>
    "tpu.trace_stop"() : () -> ()
    %90 = tpu.concatenate %41, %57, %73, %89 in 2 : vector<1x16x8xf32>, vector<1x16x8xf32>, vector<1x16x8xf32>, vector<1x16x8xf32> -> vector<1x16x32xf32>
    %91 = vector.shape_cast %90 : vector<1x16x32xf32> to vector<16x32xf32>
    %92 = arith.truncf %91 : vector<16x32xf32> to vector<16x32xbf16>
    %c0_35 = arith.constant 0 : index
    %c0_36 = arith.constant 0 : index
    %93 = vector.load %arg9[%c0_35, %c0_36] : memref<32x32xbf16, #tpu.memory_space<vmem>>, vector<32x32xbf16>
    %cst_37 = arith.constant dense<0.000000e+00> : vector<16x32xf32>
    %94 = tpu.matmul %92, %93, %cst_37 {dimension_numbers = #tpu.dot_dimension_numbers<[1], [0], [0], [1], [0, 0, 1, 1], [], []>} : vector<16x32xbf16>, vector<32x32xbf16>, vector<16x32xf32> -> vector<16x32xf32>
    %c0_38 = arith.constant 0 : index
    %c0_39 = arith.constant 0 : index
    %95 = vector.load %arg10[%c0_38, %c0_39] : memref<1x32xf32, #tpu.memory_space<vmem>>, vector<1x32xf32>
    %96 = vector.broadcast %95 : vector<1x32xf32> to vector<16x32xf32>
    %97 = arith.addf %94, %96 : vector<16x32xf32>
    %98 = arith.addf %17, %97 : vector<16x32xf32>
    %cst_40 = arith.constant dense<0.000000e+00> : vector<16xf32>
    %99 = vector.multi_reduction <add>, %98, %cst_40 [1] : vector<16x32xf32> to vector<16xf32>
    %100 = vector.shape_cast %99 : vector<16xf32> to vector<16x1xf32>
    %cst_41 = arith.constant 3.200000e+01 : f32
    %101 = vector.broadcast %cst_41 : f32 to vector<16x1xf32>
    %102 = arith.divf %100, %101 : vector<16x1xf32>
    %103 = vector.broadcast %102 : vector<16x1xf32> to vector<16x32xf32>
    %104 = arith.subf %98, %103 : vector<16x32xf32>
    %105 = arith.mulf %104, %104 : vector<16x32xf32>
    %cst_42 = arith.constant dense<0.000000e+00> : vector<16xf32>
    %106 = vector.multi_reduction <add>, %105, %cst_42 [1] : vector<16x32xf32> to vector<16xf32>
    %107 = vector.shape_cast %106 : vector<16xf32> to vector<16x1xf32>
    %cst_43 = arith.constant 3.200000e+01 : f32
    %108 = vector.broadcast %cst_43 : f32 to vector<16x1xf32>
    %109 = arith.divf %107, %108 : vector<16x1xf32>
    %110 = vector.broadcast %102 : vector<16x1xf32> to vector<16x32xf32>
    %111 = arith.subf %98, %110 : vector<16x32xf32>
    %cst_44 = arith.constant 9.99999974E-6 : f32
    %112 = vector.broadcast %cst_44 : f32 to vector<16x1xf32>
    %113 = arith.addf %109, %112 : vector<16x1xf32>
    %114 = math.rsqrt %113 : vector<16x1xf32>
    %115 = vector.broadcast %114 : vector<16x1xf32> to vector<16x32xf32>
    %116 = arith.mulf %111, %115 : vector<16x32xf32>
    %c0_45 = arith.constant 0 : index
    %c0_46 = arith.constant 0 : index
    %117 = vector.load %arg11[%c0_45, %c0_46] : memref<1x32xf32, #tpu.memory_space<vmem>>, vector<1x32xf32>
    %118 = vector.broadcast %117 : vector<1x32xf32> to vector<16x32xf32>
    %119 = arith.mulf %116, %118 : vector<16x32xf32>
    %c0_47 = arith.constant 0 : index
    %c0_48 = arith.constant 0 : index
    %120 = vector.load %arg12[%c0_47, %c0_48] : memref<1x32xf32, #tpu.memory_space<vmem>>, vector<1x32xf32>
    %121 = vector.broadcast %120 : vector<1x32xf32> to vector<16x32xf32>
    %122 = arith.addf %119, %121 : vector<16x32xf32>
    %123 = arith.truncf %122 : vector<16x32xf32> to vector<16x32xbf16>
    %c0_49 = arith.constant 0 : index
    %c0_50 = arith.constant 0 : index
    %124 = vector.load %arg13[%c0_49, %c0_50] : memref<32x512xbf16, #tpu.memory_space<vmem>>, vector<32x512xbf16>
    %cst_51 = arith.constant dense<0.000000e+00> : vector<16x512xf32>
    %125 = tpu.matmul %123, %124, %cst_51 {dimension_numbers = #tpu.dot_dimension_numbers<[1], [0], [0], [1], [0, 0, 1, 1], [], []>} : vector<16x32xbf16>, vector<32x512xbf16>, vector<16x512xf32> -> vector<16x512xf32>
    %c0_52 = arith.constant 0 : index
    %c0_53 = arith.constant 0 : index
    %126 = vector.load %arg14[%c0_52, %c0_53] : memref<1x512xf32, #tpu.memory_space<vmem>>, vector<1x512xf32>
    %127 = vector.broadcast %126 : vector<1x512xf32> to vector<16x512xf32>
    %128 = arith.addf %125, %127 : vector<16x512xf32>
    %cst_54 = arith.constant 0.000000e+00 : f32
    %129 = vector.broadcast %cst_54 : f32 to vector<16x512xf32>
    %130 = arith.maximumf %128, %129 : vector<16x512xf32>
    %131 = arith.truncf %130 : vector<16x512xf32> to vector<16x512xbf16>
    %c0_55 = arith.constant 0 : index
    %c0_56 = arith.constant 0 : index
    %132 = vector.load %arg15[%c0_55, %c0_56] : memref<512x32xbf16, #tpu.memory_space<vmem>>, vector<512x32xbf16>
    %cst_57 = arith.constant dense<0.000000e+00> : vector<16x32xf32>
    %133 = tpu.matmul %131, %132, %cst_57 {dimension_numbers = #tpu.dot_dimension_numbers<[1], [0], [0], [1], [0, 0, 1, 1], [], []>} : vector<16x512xbf16>, vector<512x32xbf16>, vector<16x32xf32> -> vector<16x32xf32>
    %c0_58 = arith.constant 0 : index
    %c0_59 = arith.constant 0 : index
    %134 = vector.load %arg16[%c0_58, %c0_59] : memref<1x32xf32, #tpu.memory_space<vmem>>, vector<1x32xf32>
    %135 = vector.broadcast %134 : vector<1x32xf32> to vector<16x32xf32>
    %136 = arith.addf %133, %135 : vector<16x32xf32>
    %137 = arith.addf %122, %136 : vector<16x32xf32>
    %cst_60 = arith.constant dense<0.000000e+00> : vector<16xf32>
    %138 = vector.multi_reduction <add>, %137, %cst_60 [1] : vector<16x32xf32> to vector<16xf32>
    %139 = vector.shape_cast %138 : vector<16xf32> to vector<16x1xf32>
    %cst_61 = arith.constant 3.200000e+01 : f32
    %140 = vector.broadcast %cst_61 : f32 to vector<16x1xf32>
    %141 = arith.divf %139, %140 : vector<16x1xf32>
    %142 = vector.broadcast %141 : vector<16x1xf32> to vector<16x32xf32>
    %143 = arith.subf %137, %142 : vector<16x32xf32>
    %144 = arith.mulf %143, %143 : vector<16x32xf32>
    %cst_62 = arith.constant dense<0.000000e+00> : vector<16xf32>
    %145 = vector.multi_reduction <add>, %144, %cst_62 [1] : vector<16x32xf32> to vector<16xf32>
    %146 = vector.shape_cast %145 : vector<16xf32> to vector<16x1xf32>
    %cst_63 = arith.constant 3.200000e+01 : f32
    %147 = vector.broadcast %cst_63 : f32 to vector<16x1xf32>
    %148 = arith.divf %146, %147 : vector<16x1xf32>
    %149 = vector.broadcast %141 : vector<16x1xf32> to vector<16x32xf32>
    %150 = arith.subf %137, %149 : vector<16x32xf32>
    %cst_64 = arith.constant 9.99999974E-6 : f32
    %151 = vector.broadcast %cst_64 : f32 to vector<16x1xf32>
    %152 = arith.addf %148, %151 : vector<16x1xf32>
    %153 = math.rsqrt %152 : vector<16x1xf32>
    %154 = vector.broadcast %153 : vector<16x1xf32> to vector<16x32xf32>
    %155 = arith.mulf %150, %154 : vector<16x32xf32>
    %c0_65 = arith.constant 0 : index
    %c0_66 = arith.constant 0 : index
    %156 = vector.load %arg17[%c0_65, %c0_66] : memref<1x32xf32, #tpu.memory_space<vmem>>, vector<1x32xf32>
    %157 = vector.broadcast %156 : vector<1x32xf32> to vector<16x32xf32>
    %158 = arith.mulf %155, %157 : vector<16x32xf32>
    %c0_67 = arith.constant 0 : index
    %c0_68 = arith.constant 0 : index
    %159 = vector.load %arg18[%c0_67, %c0_68] : memref<1x32xf32, #tpu.memory_space<vmem>>, vector<1x32xf32>
    %160 = vector.broadcast %159 : vector<1x32xf32> to vector<16x32xf32>
    %161 = arith.addf %158, %160 : vector<16x32xf32>
    %162 = arith.truncf %161 : vector<16x32xf32> to vector<16x32xbf16>
    %c0_69 = arith.constant 0 : index
    %c0_70 = arith.constant 0 : index
    %163 = vector.load %arg19[%c0_69, %c0_70] : memref<32x96xbf16, #tpu.memory_space<vmem>>, vector<32x96xbf16>
    %cst_71 = arith.constant dense<0.000000e+00> : vector<16x96xf32>
    %164 = tpu.matmul %162, %163, %cst_71 {dimension_numbers = #tpu.dot_dimension_numbers<[1], [0], [0], [1], [0, 0, 1, 1], [], []>} : vector<16x32xbf16>, vector<32x96xbf16>, vector<16x96xf32> -> vector<16x96xf32>
    %c0_72 = arith.constant 0 : index
    %c0_73 = arith.constant 0 : index
    %165 = vector.load %arg20[%c0_72, %c0_73] : memref<1x96xf32, #tpu.memory_space<vmem>>, vector<1x96xf32>
    %166 = vector.broadcast %165 : vector<1x96xf32> to vector<16x96xf32>
    %167 = arith.addf %164, %166 : vector<16x96xf32>
    %168 = vector.shape_cast %167 : vector<16x96xf32> to vector<1x16x96xf32>
    %169 = arith.truncf %168 : vector<1x16x96xf32> to vector<1x16x96xbf16>
    %170 = vector.extract_strided_slice %169 {offsets = [0, 0, 0], sizes = [1, 16, 8], strides = [1, 1, 1]} : vector<1x16x96xbf16> to vector<1x16x8xbf16>
    %171 = vector.extract_strided_slice %169 {offsets = [0, 0, 32], sizes = [1, 16, 8], strides = [1, 1, 1]} : vector<1x16x96xbf16> to vector<1x16x8xbf16>
    %172 = vector.extract_strided_slice %169 {offsets = [0, 0, 64], sizes = [1, 16, 8], strides = [1, 1, 1]} : vector<1x16x96xbf16> to vector<1x16x8xbf16>
    "tpu.trace_start"() <{level = 10 : i32, message = "bqd,bkd->bqk"}> : () -> ()
    %cst_74 = arith.constant dense<0.000000e+00> : vector<1x16x16xf32>
    %173 = tpu.matmul %170, %171, %cst_74 {dimension_numbers = #tpu.dot_dimension_numbers<[2], [2], [1], [1], [0, 0, 0, 1, 1, 1], [0], [0]>} : vector<1x16x8xbf16>, vector<1x16x8xbf16>, vector<1x16x16xf32> -> vector<1x16x16xf32>
    "tpu.trace_stop"() : () -> ()
    %cst_75 = arith.constant dense<0xFF800000> : vector<1x16xf32>
    %174 = vector.multi_reduction <maximumf>, %173, %cst_75 [2] : vector<1x16x16xf32> to vector<1x16xf32>
    %175 = vector.shape_cast %174 : vector<1x16xf32> to vector<1x16x1xf32>
    %176 = vector.broadcast %175 : vector<1x16x1xf32> to vector<1x16x16xf32>
    %177 = arith.subf %173, %176 : vector<1x16x16xf32>
    %178 = math.exp %177 : vector<1x16x16xf32>
    %cst_76 = arith.constant dense<0.000000e+00> : vector<1x16xf32>
    %179 = vector.multi_reduction <add>, %178, %cst_76 [2] : vector<1x16x16xf32> to vector<1x16xf32>
    %180 = vector.shape_cast %179 : vector<1x16xf32> to vector<1x16x1xf32>
    %181 = tpu.reciprocal %180 {approx = true} : vector<1x16x1xf32> -> vector<1x16x1xf32>
    %182 = vector.broadcast %181 : vector<1x16x1xf32> to vector<1x16x16xf32>
    %183 = arith.mulf %178, %182 : vector<1x16x16xf32>
    %184 = arith.truncf %183 : vector<1x16x16xf32> to vector<1x16x16xbf16>
    "tpu.trace_start"() <{level = 10 : i32, message = "bqk,bkd->bqd"}> : () -> ()
    %cst_77 = arith.constant dense<0.000000e+00> : vector<1x16x8xf32>
    %185 = tpu.matmul %184, %172, %cst_77 {dimension_numbers = #tpu.dot_dimension_numbers<[2], [1], [1], [2], [0, 0, 0, 1, 1, 2], [0], [0]>} : vector<1x16x16xbf16>, vector<1x16x8xbf16>, vector<1x16x8xf32> -> vector<1x16x8xf32>
    "tpu.trace_stop"() : () -> ()
    %186 = vector.extract_strided_slice %169 {offsets = [0, 0, 8], sizes = [1, 16, 8], strides = [1, 1, 1]} : vector<1x16x96xbf16> to vector<1x16x8xbf16>
    %187 = vector.extract_strided_slice %169 {offsets = [0, 0, 40], sizes = [1, 16, 8], strides = [1, 1, 1]} : vector<1x16x96xbf16> to vector<1x16x8xbf16>
    %188 = vector.extract_strided_slice %169 {offsets = [0, 0, 72], sizes = [1, 16, 8], strides = [1, 1, 1]} : vector<1x16x96xbf16> to vector<1x16x8xbf16>
    "tpu.trace_start"() <{level = 10 : i32, message = "bqd,bkd->bqk"}> : () -> ()
    %cst_78 = arith.constant dense<0.000000e+00> : vector<1x16x16xf32>
    %189 = tpu.matmul %186, %187, %cst_78 {dimension_numbers = #tpu.dot_dimension_numbers<[2], [2], [1], [1], [0, 0, 0, 1, 1, 1], [0], [0]>} : vector<1x16x8xbf16>, vector<1x16x8xbf16>, vector<1x16x16xf32> -> vector<1x16x16xf32>
    "tpu.trace_stop"() : () -> ()
    %cst_79 = arith.constant dense<0xFF800000> : vector<1x16xf32>
    %190 = vector.multi_reduction <maximumf>, %189, %cst_79 [2] : vector<1x16x16xf32> to vector<1x16xf32>
    %191 = vector.shape_cast %190 : vector<1x16xf32> to vector<1x16x1xf32>
    %192 = vector.broadcast %191 : vector<1x16x1xf32> to vector<1x16x16xf32>
    %193 = arith.subf %189, %192 : vector<1x16x16xf32>
    %194 = math.exp %193 : vector<1x16x16xf32>
    %cst_80 = arith.constant dense<0.000000e+00> : vector<1x16xf32>
    %195 = vector.multi_reduction <add>, %194, %cst_80 [2] : vector<1x16x16xf32> to vector<1x16xf32>
    %196 = vector.shape_cast %195 : vector<1x16xf32> to vector<1x16x1xf32>
    %197 = tpu.reciprocal %196 {approx = true} : vector<1x16x1xf32> -> vector<1x16x1xf32>
    %198 = vector.broadcast %197 : vector<1x16x1xf32> to vector<1x16x16xf32>
    %199 = arith.mulf %194, %198 : vector<1x16x16xf32>
    %200 = arith.truncf %199 : vector<1x16x16xf32> to vector<1x16x16xbf16>
    "tpu.trace_start"() <{level = 10 : i32, message = "bqk,bkd->bqd"}> : () -> ()
    %cst_81 = arith.constant dense<0.000000e+00> : vector<1x16x8xf32>
    %201 = tpu.matmul %200, %188, %cst_81 {dimension_numbers = #tpu.dot_dimension_numbers<[2], [1], [1], [2], [0, 0, 0, 1, 1, 2], [0], [0]>} : vector<1x16x16xbf16>, vector<1x16x8xbf16>, vector<1x16x8xf32> -> vector<1x16x8xf32>
    "tpu.trace_stop"() : () -> ()
    %202 = vector.extract_strided_slice %169 {offsets = [0, 0, 16], sizes = [1, 16, 8], strides = [1, 1, 1]} : vector<1x16x96xbf16> to vector<1x16x8xbf16>
    %203 = vector.extract_strided_slice %169 {offsets = [0, 0, 48], sizes = [1, 16, 8], strides = [1, 1, 1]} : vector<1x16x96xbf16> to vector<1x16x8xbf16>
    %204 = vector.extract_strided_slice %169 {offsets = [0, 0, 80], sizes = [1, 16, 8], strides = [1, 1, 1]} : vector<1x16x96xbf16> to vector<1x16x8xbf16>
    "tpu.trace_start"() <{level = 10 : i32, message = "bqd,bkd->bqk"}> : () -> ()
    %cst_82 = arith.constant dense<0.000000e+00> : vector<1x16x16xf32>
    %205 = tpu.matmul %202, %203, %cst_82 {dimension_numbers = #tpu.dot_dimension_numbers<[2], [2], [1], [1], [0, 0, 0, 1, 1, 1], [0], [0]>} : vector<1x16x8xbf16>, vector<1x16x8xbf16>, vector<1x16x16xf32> -> vector<1x16x16xf32>
    "tpu.trace_stop"() : () -> ()
    %cst_83 = arith.constant dense<0xFF800000> : vector<1x16xf32>
    %206 = vector.multi_reduction <maximumf>, %205, %cst_83 [2] : vector<1x16x16xf32> to vector<1x16xf32>
    %207 = vector.shape_cast %206 : vector<1x16xf32> to vector<1x16x1xf32>
    %208 = vector.broadcast %207 : vector<1x16x1xf32> to vector<1x16x16xf32>
    %209 = arith.subf %205, %208 : vector<1x16x16xf32>
    %210 = math.exp %209 : vector<1x16x16xf32>
    %cst_84 = arith.constant dense<0.000000e+00> : vector<1x16xf32>
    %211 = vector.multi_reduction <add>, %210, %cst_84 [2] : vector<1x16x16xf32> to vector<1x16xf32>
    %212 = vector.shape_cast %211 : vector<1x16xf32> to vector<1x16x1xf32>
    %213 = tpu.reciprocal %212 {approx = true} : vector<1x16x1xf32> -> vector<1x16x1xf32>
    %214 = vector.broadcast %213 : vector<1x16x1xf32> to vector<1x16x16xf32>
    %215 = arith.mulf %210, %214 : vector<1x16x16xf32>
    %216 = arith.truncf %215 : vector<1x16x16xf32> to vector<1x16x16xbf16>
    "tpu.trace_start"() <{level = 10 : i32, message = "bqk,bkd->bqd"}> : () -> ()
    %cst_85 = arith.constant dense<0.000000e+00> : vector<1x16x8xf32>
    %217 = tpu.matmul %216, %204, %cst_85 {dimension_numbers = #tpu.dot_dimension_numbers<[2], [1], [1], [2], [0, 0, 0, 1, 1, 2], [0], [0]>} : vector<1x16x16xbf16>, vector<1x16x8xbf16>, vector<1x16x8xf32> -> vector<1x16x8xf32>
    "tpu.trace_stop"() : () -> ()
    %218 = vector.extract_strided_slice %169 {offsets = [0, 0, 24], sizes = [1, 16, 8], strides = [1, 1, 1]} : vector<1x16x96xbf16> to vector<1x16x8xbf16>
    %219 = vector.extract_strided_slice %169 {offsets = [0, 0, 56], sizes = [1, 16, 8], strides = [1, 1, 1]} : vector<1x16x96xbf16> to vector<1x16x8xbf16>
    %220 = vector.extract_strided_slice %169 {offsets = [0, 0, 88], sizes = [1, 16, 8], strides = [1, 1, 1]} : vector<1x16x96xbf16> to vector<1x16x8xbf16>
    "tpu.trace_start"() <{level = 10 : i32, message = "bqd,bkd->bqk"}> : () -> ()
    %cst_86 = arith.constant dense<0.000000e+00> : vector<1x16x16xf32>
    %221 = tpu.matmul %218, %219, %cst_86 {dimension_numbers = #tpu.dot_dimension_numbers<[2], [2], [1], [1], [0, 0, 0, 1, 1, 1], [0], [0]>} : vector<1x16x8xbf16>, vector<1x16x8xbf16>, vector<1x16x16xf32> -> vector<1x16x16xf32>
    "tpu.trace_stop"() : () -> ()
    %cst_87 = arith.constant dense<0xFF800000> : vector<1x16xf32>
    %222 = vector.multi_reduction <maximumf>, %221, %cst_87 [2] : vector<1x16x16xf32> to vector<1x16xf32>
    %223 = vector.shape_cast %222 : vector<1x16xf32> to vector<1x16x1xf32>
    %224 = vector.broadcast %223 : vector<1x16x1xf32> to vector<1x16x16xf32>
    %225 = arith.subf %221, %224 : vector<1x16x16xf32>
    %226 = math.exp %225 : vector<1x16x16xf32>
    %cst_88 = arith.constant dense<0.000000e+00> : vector<1x16xf32>
    %227 = vector.multi_reduction <add>, %226, %cst_88 [2] : vector<1x16x16xf32> to vector<1x16xf32>
    %228 = vector.shape_cast %227 : vector<1x16xf32> to vector<1x16x1xf32>
    %229 = tpu.reciprocal %228 {approx = true} : vector<1x16x1xf32> -> vector<1x16x1xf32>
    %230 = vector.broadcast %229 : vector<1x16x1xf32> to vector<1x16x16xf32>
    %231 = arith.mulf %226, %230 : vector<1x16x16xf32>
    %232 = arith.truncf %231 : vector<1x16x16xf32> to vector<1x16x16xbf16>
    "tpu.trace_start"() <{level = 10 : i32, message = "bqk,bkd->bqd"}> : () -> ()
    %cst_89 = arith.constant dense<0.000000e+00> : vector<1x16x8xf32>
    %233 = tpu.matmul %232, %220, %cst_89 {dimension_numbers = #tpu.dot_dimension_numbers<[2], [1], [1], [2], [0, 0, 0, 1, 1, 2], [0], [0]>} : vector<1x16x16xbf16>, vector<1x16x8xbf16>, vector<1x16x8xf32> -> vector<1x16x8xf32>
    "tpu.trace_stop"() : () -> ()
    %234 = tpu.concatenate %185, %201, %217, %233 in 2 : vector<1x16x8xf32>, vector<1x16x8xf32>, vector<1x16x8xf32>, vector<1x16x8xf32> -> vector<1x16x32xf32>
    %235 = vector.shape_cast %234 : vector<1x16x32xf32> to vector<16x32xf32>
    %236 = arith.truncf %235 : vector<16x32xf32> to vector<16x32xbf16>
    %c0_90 = arith.constant 0 : index
    %c0_91 = arith.constant 0 : index
    %237 = vector.load %arg21[%c0_90, %c0_91] : memref<32x32xbf16, #tpu.memory_space<vmem>>, vector<32x32xbf16>
    %cst_92 = arith.constant dense<0.000000e+00> : vector<16x32xf32>
    %238 = tpu.matmul %236, %237, %cst_92 {dimension_numbers = #tpu.dot_dimension_numbers<[1], [0], [0], [1], [0, 0, 1, 1], [], []>} : vector<16x32xbf16>, vector<32x32xbf16>, vector<16x32xf32> -> vector<16x32xf32>
    %c0_93 = arith.constant 0 : index
    %c0_94 = arith.constant 0 : index
    %239 = vector.load %arg22[%c0_93, %c0_94] : memref<1x32xf32, #tpu.memory_space<vmem>>, vector<1x32xf32>
    %240 = vector.broadcast %239 : vector<1x32xf32> to vector<16x32xf32>
    %241 = arith.addf %238, %240 : vector<16x32xf32>
    %242 = arith.addf %161, %241 : vector<16x32xf32>
    %cst_95 = arith.constant dense<0.000000e+00> : vector<16xf32>
    %243 = vector.multi_reduction <add>, %242, %cst_95 [1] : vector<16x32xf32> to vector<16xf32>
    %244 = vector.shape_cast %243 : vector<16xf32> to vector<16x1xf32>
    %cst_96 = arith.constant 3.200000e+01 : f32
    %245 = vector.broadcast %cst_96 : f32 to vector<16x1xf32>
    %246 = arith.divf %244, %245 : vector<16x1xf32>
    %247 = vector.broadcast %246 : vector<16x1xf32> to vector<16x32xf32>
    %248 = arith.subf %242, %247 : vector<16x32xf32>
    %249 = arith.mulf %248, %248 : vector<16x32xf32>
    %cst_97 = arith.constant dense<0.000000e+00> : vector<16xf32>
    %250 = vector.multi_reduction <add>, %249, %cst_97 [1] : vector<16x32xf32> to vector<16xf32>
    %251 = vector.shape_cast %250 : vector<16xf32> to vector<16x1xf32>
    %cst_98 = arith.constant 3.200000e+01 : f32
    %252 = vector.broadcast %cst_98 : f32 to vector<16x1xf32>
    %253 = arith.divf %251, %252 : vector<16x1xf32>
    %254 = vector.broadcast %246 : vector<16x1xf32> to vector<16x32xf32>
    %255 = arith.subf %242, %254 : vector<16x32xf32>
    %cst_99 = arith.constant 9.99999974E-6 : f32
    %256 = vector.broadcast %cst_99 : f32 to vector<16x1xf32>
    %257 = arith.addf %253, %256 : vector<16x1xf32>
    %258 = math.rsqrt %257 : vector<16x1xf32>
    %259 = vector.broadcast %258 : vector<16x1xf32> to vector<16x32xf32>
    %260 = arith.mulf %255, %259 : vector<16x32xf32>
    %c0_100 = arith.constant 0 : index
    %c0_101 = arith.constant 0 : index
    %261 = vector.load %arg23[%c0_100, %c0_101] : memref<1x32xf32, #tpu.memory_space<vmem>>, vector<1x32xf32>
    %262 = vector.broadcast %261 : vector<1x32xf32> to vector<16x32xf32>
    %263 = arith.mulf %260, %262 : vector<16x32xf32>
    %c0_102 = arith.constant 0 : index
    %c0_103 = arith.constant 0 : index
    %264 = vector.load %arg24[%c0_102, %c0_103] : memref<1x32xf32, #tpu.memory_space<vmem>>, vector<1x32xf32>
    %265 = vector.broadcast %264 : vector<1x32xf32> to vector<16x32xf32>
    %266 = arith.addf %263, %265 : vector<16x32xf32>
    %267 = arith.truncf %266 : vector<16x32xf32> to vector<16x32xbf16>
    %c0_104 = arith.constant 0 : index
    %c0_105 = arith.constant 0 : index
    %268 = vector.load %arg25[%c0_104, %c0_105] : memref<32x512xbf16, #tpu.memory_space<vmem>>, vector<32x512xbf16>
    %cst_106 = arith.constant dense<0.000000e+00> : vector<16x512xf32>
    %269 = tpu.matmul %267, %268, %cst_106 {dimension_numbers = #tpu.dot_dimension_numbers<[1], [0], [0], [1], [0, 0, 1, 1], [], []>} : vector<16x32xbf16>, vector<32x512xbf16>, vector<16x512xf32> -> vector<16x512xf32>
    %c0_107 = arith.constant 0 : index
    %c0_108 = arith.constant 0 : index
    %270 = vector.load %arg26[%c0_107, %c0_108] : memref<1x512xf32, #tpu.memory_space<vmem>>, vector<1x512xf32>
    %271 = vector.broadcast %270 : vector<1x512xf32> to vector<16x512xf32>
    %272 = arith.addf %269, %271 : vector<16x512xf32>
    %cst_109 = arith.constant 0.000000e+00 : f32
    %273 = vector.broadcast %cst_109 : f32 to vector<16x512xf32>
    %274 = arith.maximumf %272, %273 : vector<16x512xf32>
    %275 = arith.truncf %274 : vector<16x512xf32> to vector<16x512xbf16>
    %c0_110 = arith.constant 0 : index
    %c0_111 = arith.constant 0 : index
    %276 = vector.load %arg27[%c0_110, %c0_111] : memref<512x32xbf16, #tpu.memory_space<vmem>>, vector<512x32xbf16>
    %cst_112 = arith.constant dense<0.000000e+00> : vector<16x32xf32>
    %277 = tpu.matmul %275, %276, %cst_112 {dimension_numbers = #tpu.dot_dimension_numbers<[1], [0], [0], [1], [0, 0, 1, 1], [], []>} : vector<16x512xbf16>, vector<512x32xbf16>, vector<16x32xf32> -> vector<16x32xf32>
    %c0_113 = arith.constant 0 : index
    %c0_114 = arith.constant 0 : index
    %278 = vector.load %arg28[%c0_113, %c0_114] : memref<1x32xf32, #tpu.memory_space<vmem>>, vector<1x32xf32>
    %279 = vector.broadcast %278 : vector<1x32xf32> to vector<16x32xf32>
    %280 = arith.addf %277, %279 : vector<16x32xf32>
    %281 = arith.addf %266, %280 : vector<16x32xf32>
    %cst_115 = arith.constant dense<0.000000e+00> : vector<16xf32>
    %282 = vector.multi_reduction <add>, %281, %cst_115 [1] : vector<16x32xf32> to vector<16xf32>
    %283 = vector.shape_cast %282 : vector<16xf32> to vector<16x1xf32>
    %cst_116 = arith.constant 3.200000e+01 : f32
    %284 = vector.broadcast %cst_116 : f32 to vector<16x1xf32>
    %285 = arith.divf %283, %284 : vector<16x1xf32>
    %286 = vector.broadcast %285 : vector<16x1xf32> to vector<16x32xf32>
    %287 = arith.subf %281, %286 : vector<16x32xf32>
    %288 = arith.mulf %287, %287 : vector<16x32xf32>
    %cst_117 = arith.constant dense<0.000000e+00> : vector<16xf32>
    %289 = vector.multi_reduction <add>, %288, %cst_117 [1] : vector<16x32xf32> to vector<16xf32>
    %290 = vector.shape_cast %289 : vector<16xf32> to vector<16x1xf32>
    %cst_118 = arith.constant 3.200000e+01 : f32
    %291 = vector.broadcast %cst_118 : f32 to vector<16x1xf32>
    %292 = arith.divf %290, %291 : vector<16x1xf32>
    %293 = vector.broadcast %285 : vector<16x1xf32> to vector<16x32xf32>
    %294 = arith.subf %281, %293 : vector<16x32xf32>
    %cst_119 = arith.constant 9.99999974E-6 : f32
    %295 = vector.broadcast %cst_119 : f32 to vector<16x1xf32>
    %296 = arith.addf %292, %295 : vector<16x1xf32>
    %297 = math.rsqrt %296 : vector<16x1xf32>
    %298 = vector.broadcast %297 : vector<16x1xf32> to vector<16x32xf32>
    %299 = arith.mulf %294, %298 : vector<16x32xf32>
    %c0_120 = arith.constant 0 : index
    %c0_121 = arith.constant 0 : index
    %300 = vector.load %arg29[%c0_120, %c0_121] : memref<1x32xf32, #tpu.memory_space<vmem>>, vector<1x32xf32>
    %301 = vector.broadcast %300 : vector<1x32xf32> to vector<16x32xf32>
    %302 = arith.mulf %299, %301 : vector<16x32xf32>
    %c0_122 = arith.constant 0 : index
    %c0_123 = arith.constant 0 : index
    %303 = vector.load %arg30[%c0_122, %c0_123] : memref<1x32xf32, #tpu.memory_space<vmem>>, vector<1x32xf32>
    %304 = vector.broadcast %303 : vector<1x32xf32> to vector<16x32xf32>
    %305 = arith.addf %302, %304 : vector<16x32xf32>
    %306 = vector.shape_cast %305 : vector<16x32xf32> to vector<1x16x32xf32>
    %cst_124 = arith.constant dense<0.000000e+00> : vector<1x32xf32>
    %307 = vector.multi_reduction <add>, %306, %cst_124 [1] : vector<1x16x32xf32> to vector<1x32xf32>
    %308 = arith.truncf %307 : vector<1x32xf32> to vector<1x32xbf16>
    %c0_125 = arith.constant 0 : index
    %c0_126 = arith.constant 0 : index
    %309 = vector.load %arg31[%c0_125, %c0_126] : memref<32x1xbf16, #tpu.memory_space<vmem>>, vector<32x1xbf16>
    %cst_127 = arith.constant dense<0.000000e+00> : vector<1x1xf32>
    %310 = tpu.matmul %308, %309, %cst_127 {dimension_numbers = #tpu.dot_dimension_numbers<[1], [0], [0], [1], [0, 0, 1, 1], [], []>} : vector<1x32xbf16>, vector<32x1xbf16>, vector<1x1xf32> -> vector<1x1xf32>
    %c0_128 = arith.constant 0 : index
    %c0_129 = arith.constant 0 : index
    %311 = vector.load %arg32[%c0_128, %c0_129] : memref<1x1xf32, #tpu.memory_space<vmem>>, vector<1x1xf32>
    %312 = arith.addf %310, %311 : vector<1x1xf32>
    %313 = math.absf %312 : vector<1x1xf32>
    %cst_130 = arith.constant 0.000000e+00 : f32
    %314 = vector.broadcast %cst_130 : f32 to vector<1x1xf32>
    %315 = arith.subf %314, %313 : vector<1x1xf32>
    %316 = math.exp %315 : vector<1x1xf32>
    %cst_131 = arith.constant 0.000000e+00 : f32
    %317 = vector.broadcast %cst_131 : f32 to vector<1x1xf32>
    %318 = arith.cmpf oge, %312, %317 : vector<1x1xf32>
    %cst_132 = arith.constant 1.000000e+00 : f32
    %319 = vector.broadcast %cst_132 : f32 to vector<1x1xf32>
    %320 = arith.addf %319, %316 : vector<1x1xf32>
    %cst_133 = arith.constant 1.000000e+00 : f32
    %321 = vector.broadcast %cst_133 : f32 to vector<1x1xf32>
    %322 = arith.divf %321, %320 : vector<1x1xf32>
    %cst_134 = arith.constant 1.000000e+00 : f32
    %323 = vector.broadcast %cst_134 : f32 to vector<1x1xf32>
    %324 = arith.addf %323, %316 : vector<1x1xf32>
    %325 = arith.divf %316, %324 : vector<1x1xf32>
    %326 = arith.select %318, %322, %325 : vector<1x1xi1>, vector<1x1xf32>
    %327 = vector.shape_cast %326 : vector<1x1xf32> to vector<1x1x1xf32>
    %c0_135 = arith.constant 0 : index
    %c0_136 = arith.constant 0 : index
    %c0_137 = arith.constant 0 : index
    %328 = vector.load %arg33[%c0_135, %c0_136, %c0_137] : memref<1x1x1xf32, #tpu.memory_space<vmem>>, vector<1x1x1xf32>
    tpu.vector_store %arg33[%c0_135, %c0_136, %c0_137], %327 {strides = array<i32>} : memref<1x1x1xf32, #tpu.memory_space<vmem>>, vector<1x1x1xf32>,
    return
  }
  func.func @transform_0(%arg0: i32) -> (i32, i32, i32) {
    %c0_i32 = arith.constant 0 : i32
    %c0_i32_0 = arith.constant 0 : i32
    %c0_i32_1 = arith.constant 0 : i32
    return %arg0, %c0_i32, %c0_i32_0 : i32, i32, i32
  }
  func.func @transform_1(%arg0: i32) -> (i32, i32) {
    %c0_i32 = arith.constant 0 : i32
    %c0_i32_0 = arith.constant 0 : i32
    %c0_i32_1 = arith.constant 0 : i32
    return %c0_i32, %c0_i32_0 : i32, i32
  }
  func.func @transform_2(%arg0: i32) -> (i32, i32) {
    %c0_i32 = arith.constant 0 : i32
    %c0_i32_0 = arith.constant 0 : i32
    %c0_i32_1 = arith.constant 0 : i32
    return %c0_i32, %c0_i32_0 : i32, i32
  }
  func.func @transform_3(%arg0: i32) -> (i32, i32) {
    %c0_i32 = arith.constant 0 : i32
    %c0_i32_0 = arith.constant 0 : i32
    %c0_i32_1 = arith.constant 0 : i32
    return %c0_i32, %c0_i32_0 : i32, i32
  }
  func.func @transform_4(%arg0: i32) -> (i32, i32) {
    %c0_i32 = arith.constant 0 : i32
    %c0_i32_0 = arith.constant 0 : i32
    %c0_i32_1 = arith.constant 0 : i32
    return %c0_i32, %c0_i32_0 : i32, i32
  }
  func.func @transform_5(%arg0: i32) -> (i32, i32) {
    %c0_i32 = arith.constant 0 : i32
    %c0_i32_0 = arith.constant 0 : i32
    %c0_i32_1 = arith.constant 0 : i32
    return %c0_i32, %c0_i32_0 : i32, i32
  }
  func.func @transform_6(%arg0: i32) -> (i32, i32) {
    %c0_i32 = arith.constant 0 : i32
    %c0_i32_0 = arith.constant 0 : i32
    %c0_i32_1 = arith.constant 0 : i32
    return %c0_i32, %c0_i32_0 : i32, i32
  }
  func.func @transform_7(%arg0: i32) -> (i32, i32) {
    %c0_i32 = arith.constant 0 : i32
    %c0_i32_0 = arith.constant 0 : i32
    %c0_i32_1 = arith.constant 0 : i32
    return %c0_i32, %c0_i32_0 : i32, i32
  }
  func.func @transform_8(%arg0: i32) -> (i32, i32) {
    %c0_i32 = arith.constant 0 : i32
    %c0_i32_0 = arith.constant 0 : i32
    %c0_i32_1 = arith.constant 0 : i32
    return %c0_i32, %c0_i32_0 : i32, i32
  }
  func.func @transform_9(%arg0: i32) -> (i32, i32) {
    %c0_i32 = arith.constant 0 : i32
    %c0_i32_0 = arith.constant 0 : i32
    %c0_i32_1 = arith.constant 0 : i32
    return %c0_i32, %c0_i32_0 : i32, i32
  }
  func.func @transform_10(%arg0: i32) -> (i32, i32) {
    %c0_i32 = arith.constant 0 : i32
    %c0_i32_0 = arith.constant 0 : i32
    %c0_i32_1 = arith.constant 0 : i32
    return %c0_i32, %c0_i32_0 : i32, i32
  }
  func.func @transform_11(%arg0: i32) -> (i32, i32) {
    %c0_i32 = arith.constant 0 : i32
    %c0_i32_0 = arith.constant 0 : i32
    %c0_i32_1 = arith.constant 0 : i32
    return %c0_i32, %c0_i32_0 : i32, i32
  }
  func.func @transform_12(%arg0: i32) -> (i32, i32) {
    %c0_i32 = arith.constant 0 : i32
    %c0_i32_0 = arith.constant 0 : i32
    %c0_i32_1 = arith.constant 0 : i32
    return %c0_i32, %c0_i32_0 : i32, i32
  }
  func.func @transform_13(%arg0: i32) -> (i32, i32) {
    %c0_i32 = arith.constant 0 : i32
    %c0_i32_0 = arith.constant 0 : i32
    %c0_i32_1 = arith.constant 0 : i32
    return %c0_i32, %c0_i32_0 : i32, i32
  }
  func.func @transform_14(%arg0: i32) -> (i32, i32) {
    %c0_i32 = arith.constant 0 : i32
    %c0_i32_0 = arith.constant 0 : i32
    %c0_i32_1 = arith.constant 0 : i32
    return %c0_i32, %c0_i32_0 : i32, i32
  }
  func.func @transform_15(%arg0: i32) -> (i32, i32) {
    %c0_i32 = arith.constant 0 : i32
    %c0_i32_0 = arith.constant 0 : i32
    %c0_i32_1 = arith.constant 0 : i32
    return %c0_i32, %c0_i32_0 : i32, i32
  }
  func.func @transform_16(%arg0: i32) -> (i32, i32) {
    %c0_i32 = arith.constant 0 : i32
    %c0_i32_0 = arith.constant 0 : i32
    %c0_i32_1 = arith.constant 0 : i32
    return %c0_i32, %c0_i32_0 : i32, i32
  }
  func.func @transform_17(%arg0: i32) -> (i32, i32) {
    %c0_i32 = arith.constant 0 : i32
    %c0_i32_0 = arith.constant 0 : i32
    %c0_i32_1 = arith.constant 0 : i32
    return %c0_i32, %c0_i32_0 : i32, i32
  }
  func.func @transform_18(%arg0: i32) -> (i32, i32) {
    %c0_i32 = arith.constant 0 : i32
    %c0_i32_0 = arith.constant 0 : i32
    %c0_i32_1 = arith.constant 0 : i32
    return %c0_i32, %c0_i32_0 : i32, i32
  }
  func.func @transform_19(%arg0: i32) -> (i32, i32) {
    %c0_i32 = arith.constant 0 : i32
    %c0_i32_0 = arith.constant 0 : i32
    %c0_i32_1 = arith.constant 0 : i32
    return %c0_i32, %c0_i32_0 : i32, i32
  }
  func.func @transform_20(%arg0: i32) -> (i32, i32) {
    %c0_i32 = arith.constant 0 : i32
    %c0_i32_0 = arith.constant 0 : i32
    %c0_i32_1 = arith.constant 0 : i32
    return %c0_i32, %c0_i32_0 : i32, i32
  }
  func.func @transform_21(%arg0: i32) -> (i32, i32) {
    %c0_i32 = arith.constant 0 : i32
    %c0_i32_0 = arith.constant 0 : i32
    %c0_i32_1 = arith.constant 0 : i32
    return %c0_i32, %c0_i32_0 : i32, i32
  }
  func.func @transform_22(%arg0: i32) -> (i32, i32) {
    %c0_i32 = arith.constant 0 : i32
    %c0_i32_0 = arith.constant 0 : i32
    %c0_i32_1 = arith.constant 0 : i32
    return %c0_i32, %c0_i32_0 : i32, i32
  }
  func.func @transform_23(%arg0: i32) -> (i32, i32) {
    %c0_i32 = arith.constant 0 : i32
    %c0_i32_0 = arith.constant 0 : i32
    %c0_i32_1 = arith.constant 0 : i32
    return %c0_i32, %c0_i32_0 : i32, i32
  }
  func.func @transform_24(%arg0: i32) -> (i32, i32) {
    %c0_i32 = arith.constant 0 : i32
    %c0_i32_0 = arith.constant 0 : i32
    %c0_i32_1 = arith.constant 0 : i32
    return %c0_i32, %c0_i32_0 : i32, i32
  }
  func.func @transform_25(%arg0: i32) -> (i32, i32) {
    %c0_i32 = arith.constant 0 : i32
    %c0_i32_0 = arith.constant 0 : i32
    %c0_i32_1 = arith.constant 0 : i32
    return %c0_i32, %c0_i32_0 : i32, i32
  }
  func.func @transform_26(%arg0: i32) -> (i32, i32) {
    %c0_i32 = arith.constant 0 : i32
    %c0_i32_0 = arith.constant 0 : i32
    %c0_i32_1 = arith.constant 0 : i32
    return %c0_i32, %c0_i32_0 : i32, i32
  }
  func.func @transform_27(%arg0: i32) -> (i32, i32) {
    %c0_i32 = arith.constant 0 : i32
    %c0_i32_0 = arith.constant 0 : i32
    %c0_i32_1 = arith.constant 0 : i32
    return %c0_i32, %c0_i32_0 : i32, i32
  }
  func.func @transform_28(%arg0: i32) -> (i32, i32) {
    %c0_i32 = arith.constant 0 : i32
    %c0_i32_0 = arith.constant 0 : i32
    %c0_i32_1 = arith.constant 0 : i32
    return %c0_i32, %c0_i32_0 : i32, i32
  }
  func.func @transform_29(%arg0: i32) -> (i32, i32) {
    %c0_i32 = arith.constant 0 : i32
    %c0_i32_0 = arith.constant 0 : i32
    %c0_i32_1 = arith.constant 0 : i32
    return %c0_i32, %c0_i32_0 : i32, i32
  }
  func.func @transform_30(%arg0: i32) -> (i32, i32) {
    %c0_i32 = arith.constant 0 : i32
    %c0_i32_0 = arith.constant 0 : i32
    %c0_i32_1 = arith.constant 0 : i32
    return %c0_i32, %c0_i32_0 : i32, i32
  }
  func.func @transform_31(%arg0: i32) -> (i32, i32) {
    %c0_i32 = arith.constant 0 : i32
    %c0_i32_0 = arith.constant 0 : i32
    %c0_i32_1 = arith.constant 0 : i32
    return %c0_i32, %c0_i32_0 : i32, i32
  }
  func.func @transform_32(%arg0: i32) -> (i32, i32, i32) {
    %c0_i32 = arith.constant 0 : i32
    %c0_i32_0 = arith.constant 0 : i32
    %c0_i32_1 = arith.constant 0 : i32
    return %arg0, %c0_i32, %c0_i32_0 : i32, i32, i32
  }
}

</mosaic_0001>

<llo_original>
// kernel: hybrid_model_forward.1
$region0: #{hybrid_model_forward.1}
  #allocation0 [shape = 'u32[]', space=smem, size = 0x4, offset = 0x4, fixed_abs, tag = 'smem constant byte address 0x4 - core index']
  #allocation1 [shape = 'u32[72,128]{1,0:T(1,128)}', space=vmem, size = 0x9000, scoped, tag = 'internal scratch']
  #allocation2 [shape = 'f32[1,1]{1,0:T(1,128)S(1)}', space=vmem, size = 0x200, scoped, tag = 'scoped memory for hybrid_model_forward.1']
  %s0 = inlined_call_operand.smem [shape: u32[33], index: -1, kind: input, shape index: {}]
  %s1 = sld [smem:[%s0]]
  %s2 = scalar_lea.smem %s0, 1
  %s3 = sld [smem:[%s2]]
  %s4 = scalar_lea.smem %s0, 2
  %s5 = sld [smem:[%s4]]
  %s6 = scalar_lea.smem %s0, 3
  %s7 = sld [smem:[%s6]]
  %s8 = scalar_lea.smem %s0, 4
  %s9 = sld [smem:[%s8]]
  %s10 = scalar_lea.smem %s0, 5
  %s11 = sld [smem:[%s10]]
  %s12 = scalar_lea.smem %s0, 6
  %s13 = sld [smem:[%s12]]
  %s14 = scalar_lea.smem %s0, 7
  %s15 = sld [smem:[%s14]]
  %s16 = scalar_lea.smem %s0, 8
  %s17 = sld [smem:[%s16]]
  %s18 = scalar_lea.smem %s0, 9
  %s19 = sld [smem:[%s18]]
  %s20 = scalar_lea.smem %s0, 10
  %s21 = sld [smem:[%s20]]
  %s22 = scalar_lea.smem %s0, 11
  %s23 = sld [smem:[%s22]]
  %s24 = scalar_lea.smem %s0, 12
  %s25 = sld [smem:[%s24]]
  %s26 = scalar_lea.smem %s0, 13
  %s27 = sld [smem:[%s26]]
  %s28 = scalar_lea.smem %s0, 14
  %s29 = sld [smem:[%s28]]
  %s30 = scalar_lea.smem %s0, 15
  %s31 = sld [smem:[%s30]]
  %s32 = scalar_lea.smem %s0, 16
  %s33 = sld [smem:[%s32]]
  %s34 = scalar_lea.smem %s0, 17
  %s35 = sld [smem:[%s34]]
  %s36 = scalar_lea.smem %s0, 18
  %s37 = sld [smem:[%s36]]
  %s38 = scalar_lea.smem %s0, 19
  %s39 = sld [smem:[%s38]]
  %s40 = scalar_lea.smem %s0, 20
  %s41 = sld [smem:[%s40]]
  %s42 = scalar_lea.smem %s0, 21
  %s43 = sld [smem:[%s42]]
  %s44 = scalar_lea.smem %s0, 22
  %s45 = sld [smem:[%s44]]
  %s46 = scalar_lea.smem %s0, 23
  %s47 = sld [smem:[%s46]]
  %s48 = scalar_lea.smem %s0, 24
  %s49 = sld [smem:[%s48]]
  %s50 = scalar_lea.smem %s0, 25
  %s51 = sld [smem:[%s50]]
  %s52 = scalar_lea.smem %s0, 26
  %s53 = sld [smem:[%s52]]
  %s54 = scalar_lea.smem %s0, 27
  %s55 = sld [smem:[%s54]]
  %s56 = scalar_lea.smem %s0, 28
  %s57 = sld [smem:[%s56]]
  %s58 = scalar_lea.smem %s0, 29
  %s59 = sld [smem:[%s58]]
  %s60 = scalar_lea.smem %s0, 30
  %s61 = sld [smem:[%s60]]
  %s62 = scalar_lea.smem %s0, 31
  %s63 = sld [smem:[%s62]]
  %s64 = scalar_lea.smem %s0, 32
  %s65 = sld [smem:[%s64]]
  %s66 = sld [smem:[#allocation0]]
  $region161: #{hybrid_model_forward.1} parent=0
    _
  %s68 = ssub.s32 1, %s66
  %s69 = scalar_select 0, %s68, %s66
  %v70 = vstv %s63
  %71 = vst [vmem:[#allocation2] sm:$0x1] %v70
  loop: start=0, step=1, limit=4
  $region2: #{hybrid_model_forward.1} parent=0 // loop_pre_header
    _
  $region3: #{hybrid_model_forward.1} parent=0 // loop_header
    %s73 = sphi 0, %s77
    %p74 = scmp.ge.s32.totalorder %s73, 4
    %s83 = sphi 0, %s85
    %s86 = sphi 0, %s83
    %s87 = sphi 0, %s86
    %s103 = sphi 0, %s87
    %s107 = sphi 0, %s107
    %s109 = sphi 0, %s107
    %s110 = sphi 0, %s109
    %s124 = sphi 0, %s110
    %s128 = sphi 0, %s128
    %s130 = sphi 0, %s128
    %s131 = sphi 0, %s130
    %s145 = sphi 0, %s131
    %s149 = sphi 0, %s149
    %s151 = sphi 0, %s149
    %s152 = sphi 0, %s151
    %s166 = sphi 0, %s152
    %s170 = sphi 0, %s170
    %s172 = sphi 0, %s170
    %s173 = sphi 0, %s172
    %s187 = sphi 0, %s173
    %s191 = sphi 0, %s191
    %s193 = sphi 0, %s191
    %s194 = sphi 0, %s193
    %s208 = sphi 0, %s194
    %s212 = sphi 0, %s212
    %s214 = sphi 0, %s212
    %s215 = sphi 0, %s214
    %s229 = sphi 0, %s215
    %s233 = sphi 0, %s233
    %s235 = sphi 0, %s233
    %s236 = sphi 0, %s235
    %s250 = sphi 0, %s236
    %s254 = sphi 0, %s254
    %s256 = sphi 0, %s254
    %s257 = sphi 0, %s256
    %s271 = sphi 0, %s257
    %s275 = sphi 0, %s275
    %s277 = sphi 0, %s275
    %s278 = sphi 0, %s277
    %s292 = sphi 0, %s278
    %s296 = sphi 0, %s296
    %s298 = sphi 0, %s296
    %s299 = sphi 0, %s298
    %s313 = sphi 0, %s299
    %s317 = sphi 0, %s317
    %s319 = sphi 0, %s317
    %s320 = sphi 0, %s319
    %s334 = sphi 0, %s320
    %s338 = sphi 0, %s338
    %s340 = sphi 0, %s338
    %s341 = sphi 0, %s340
    %s355 = sphi 0, %s341
    %s359 = sphi 0, %s359
    %s361 = sphi 0, %s359
    %s362 = sphi 0, %s361
    %s376 = sphi 0, %s362
    %s380 = sphi 0, %s380
    %s382 = sphi 0, %s380
    %s383 = sphi 0, %s382
    %s397 = sphi 0, %s383
    %s401 = sphi 0, %s401
    %s403 = sphi 0, %s401
    %s404 = sphi 0, %s403
    %s418 = sphi 0, %s404
    %s422 = sphi 0, %s422
    %s424 = sphi 0, %s422
    %s425 = sphi 0, %s424
    %s439 = sphi 0, %s425
    %s443 = sphi 0, %s443
    %s445 = sphi 0, %s443
    %s446 = sphi 0, %s445
    %s460 = sphi 0, %s446
    %s464 = sphi 0, %s464
    %s466 = sphi 0, %s464
    %s467 = sphi 0, %s466
    %s481 = sphi 0, %s467
    %s485 = sphi 0, %s485
    %s487 = sphi 0, %s485
    %s488 = sphi 0, %s487
    %s502 = sphi 0, %s488
    %s506 = sphi 0, %s506
    %s508 = sphi 0, %s506
    %s509 = sphi 0, %s508
    %s523 = sphi 0, %s509
    %s527 = sphi 0, %s527
    %s529 = sphi 0, %s527
    %s530 = sphi 0, %s529
    %s544 = sphi 0, %s530
    %s548 = sphi 0, %s548
    %s550 = sphi 0, %s548
    %s551 = sphi 0, %s550
    %s565 = sphi 0, %s551
    %s569 = sphi 0, %s569
    %s571 = sphi 0, %s569
    %s572 = sphi 0, %s571
    %s586 = sphi 0, %s572
    %s590 = sphi 0, %s590
    %s592 = sphi 0, %s590
    %s593 = sphi 0, %s592
    %s607 = sphi 0, %s593
    %s611 = sphi 0, %s611
    %s613 = sphi 0, %s611
    %s614 = sphi 0, %s613
    %s628 = sphi 0, %s614
    %s632 = sphi 0, %s632
    %s634 = sphi 0, %s632
    %s635 = sphi 0, %s634
    %s649 = sphi 0, %s635
    %s653 = sphi 0, %s653
    %s655 = sphi 0, %s653
    %s656 = sphi 0, %s655
    %s670 = sphi 0, %s656
    %s674 = sphi 0, %s674
    %s676 = sphi 0, %s674
    %s677 = sphi 0, %s676
    %s691 = sphi 0, %s677
    %s695 = sphi 0, %s695
    %s697 = sphi 0, %s695
    %s698 = sphi 0, %s697
    %s712 = sphi 0, %s698
    %s716 = sphi 0, %s716
    %s718 = sphi 0, %s716
    %s719 = sphi 0, %s718
    %s733 = sphi 0, %s719
    %s737 = sphi 0, %s737
    %s739 = sphi 0, %s737
    %s740 = sphi 0, %s739
    %s754 = sphi 0, %s740
    %s760 = sphi 0, %s762
    %s763 = sphi 0, %s760
    %s764 = sphi 0, %s763
    %s780 = sphi 0, %s764
  $region4: #{hybrid_model_forward.1} parent=0 // loop_header_branch
    %76 = sbr.rel (%p74) target = $region8
  $region5: #{hybrid_model_forward.1} parent=0 // loop_body
    %s78 = ssub.s32 %s73, 1
    %s79 = ssub.s32 %s73, 2
    %s80 = sadd.s32 %s73, 1
    %s81 = ssub.s32 %s73, %s80
    %p82 = scmp.eq.s32.totalorder %s81, 0
    %s84 = sadd.s32 %s83, 1
    %s85 = scalar_select %p82, %s83, %s84
    %p88 = pneg %p82
    %p89 = scmp.eq.s32.totalorder %s73, 1
    %p90 = por %p88, %p89
    %p91 = scmp.ne.s32.totalorder %s83, %s86
    %p92 = scmp.eq.s32.totalorder %s73, 0
    %p93 = por %p91, %p92
    %p94 = scmp.ne.s32.totalorder %s83, %s86
    %p95 = scmp.eq.s32.totalorder %s78, 1
    %p96 = por %p94, %p95
    %p97 = scmp.ne.s32.totalorder %s86, %s87
    %p98 = scmp.eq.s32.totalorder %s78, 0
    %p99 = por %p97, %p98
    %p100 = scmp.ne.s32.totalorder %s86, %s87
    %p101 = scmp.eq.s32.totalorder %s79, 1
    %p102 = por %p100, %p101
    %p104 = scmp.ne.s32.totalorder %s87, %s103
    %p105 = scmp.eq.s32.totalorder %s79, 0
    %p106 = por %p104, %p105
    %s108 = sadd.s32 %s107, 1
    %p111 = scmp.eq.s32.totalorder %s73, 1
    %p112 = scmp.ne.s32.totalorder %s107, %s109
    %p113 = scmp.eq.s32.totalorder %s73, 0
    %p114 = por %p112, %p113
    %p115 = scmp.ne.s32.totalorder %s107, %s109
    %p116 = scmp.eq.s32.totalorder %s78, 1
    %p117 = por %p115, %p116
    %p118 = scmp.ne.s32.totalorder %s109, %s110
    %p119 = scmp.eq.s32.totalorder %s78, 0
    %p120 = por %p118, %p119
    %p121 = scmp.ne.s32.totalorder %s109, %s110
    %p122 = scmp.eq.s32.totalorder %s79, 1
    %p123 = por %p121, %p122
    %p125 = scmp.ne.s32.totalorder %s110, %s124
    %p126 = scmp.eq.s32.totalorder %s79, 0
    %p127 = por %p125, %p126
    %s129 = sadd.s32 %s128, 1
    %p132 = scmp.eq.s32.totalorder %s73, 1
    %p133 = scmp.ne.s32.totalorder %s128, %s130
    %p134 = scmp.eq.s32.totalorder %s73, 0
    %p135 = por %p133, %p134
    %p136 = scmp.ne.s32.totalorder %s128, %s130
    %p137 = scmp.eq.s32.totalorder %s78, 1
    %p138 = por %p136, %p137
    %p139 = scmp.ne.s32.totalorder %s130, %s131
    %p140 = scmp.eq.s32.totalorder %s78, 0
    %p141 = por %p139, %p140
    %p142 = scmp.ne.s32.totalorder %s130, %s131
    %p143 = scmp.eq.s32.totalorder %s79, 1
    %p144 = por %p142, %p143
    %p146 = scmp.ne.s32.totalorder %s131, %s145
    %p147 = scmp.eq.s32.totalorder %s79, 0
    %p148 = por %p146, %p147
    %s150 = sadd.s32 %s149, 1
    %p153 = scmp.eq.s32.totalorder %s73, 1
    %p154 = scmp.ne.s32.totalorder %s149, %s151
    %p155 = scmp.eq.s32.totalorder %s73, 0
    %p156 = por %p154, %p155
    %p157 = scmp.ne.s32.totalorder %s149, %s151
    %p158 = scmp.eq.s32.totalorder %s78, 1
    %p159 = por %p157, %p158
    %p160 = scmp.ne.s32.totalorder %s151, %s152
    %p161 = scmp.eq.s32.totalorder %s78, 0
    %p162 = por %p160, %p161
    %p163 = scmp.ne.s32.totalorder %s151, %s152
    %p164 = scmp.eq.s32.totalorder %s79, 1
    %p165 = por %p163, %p164
    %p167 = scmp.ne.s32.totalorder %s152, %s166
    %p168 = scmp.eq.s32.totalorder %s79, 0
    %p169 = por %p167, %p168
    %s171 = sadd.s32 %s170, 1
    %p174 = scmp.eq.s32.totalorder %s73, 1
    %p175 = scmp.ne.s32.totalorder %s170, %s172
    %p176 = scmp.eq.s32.totalorder %s73, 0
    %p177 = por %p175, %p176
    %p178 = scmp.ne.s32.totalorder %s170, %s172
    %p179 = scmp.eq.s32.totalorder %s78, 1
    %p180 = por %p178, %p179
    %p181 = scmp.ne.s32.totalorder %s172, %s173
    %p182 = scmp.eq.s32.totalorder %s78, 0
    %p183 = por %p181, %p182
    %p184 = scmp.ne.s32.totalorder %s172, %s173
    %p185 = scmp.eq.s32.totalorder %s79, 1
    %p186 = por %p184, %p185
    %p188 = scmp.ne.s32.totalorder %s173, %s187
    %p189 = scmp.eq.s32.totalorder %s79, 0
    %p190 = por %p188, %p189
    %s192 = sadd.s32 %s191, 1
    %p195 = scmp.eq.s32.totalorder %s73, 1
    %p196 = scmp.ne.s32.totalorder %s191, %s193
    %p197 = scmp.eq.s32.totalorder %s73, 0
    %p198 = por %p196, %p197
    %p199 = scmp.ne.s32.totalorder %s191, %s193
    %p200 = scmp.eq.s32.totalorder %s78, 1
    %p201 = por %p199, %p200
    %p202 = scmp.ne.s32.totalorder %s193, %s194
    %p203 = scmp.eq.s32.totalorder %s78, 0
    %p204 = por %p202, %p203
    %p205 = scmp.ne.s32.totalorder %s193, %s194
    %p206 = scmp.eq.s32.totalorder %s79, 1
    %p207 = por %p205, %p206
    %p209 = scmp.ne.s32.totalorder %s194, %s208
    %p210 = scmp.eq.s32.totalorder %s79, 0
    %p211 = por %p209, %p210
    %s213 = sadd.s32 %s212, 1
    %p216 = scmp.eq.s32.totalorder %s73, 1
    %p217 = scmp.ne.s32.totalorder %s212, %s214
    %p218 = scmp.eq.s32.totalorder %s73, 0
    %p219 = por %p217, %p218
    %p220 = scmp.ne.s32.totalorder %s212, %s214
    %p221 = scmp.eq.s32.totalorder %s78, 1
    %p222 = por %p220, %p221
    %p223 = scmp.ne.s32.totalorder %s214, %s215
    %p224 = scmp.eq.s32.totalorder %s78, 0
    %p225 = por %p223, %p224
    %p226 = scmp.ne.s32.totalorder %s214, %s215
    %p227 = scmp.eq.s32.totalorder %s79, 1
    %p228 = por %p226, %p227
    %p230 = scmp.ne.s32.totalorder %s215, %s229
    %p231 = scmp.eq.s32.totalorder %s79, 0
    %p232 = por %p230, %p231
    %s234 = sadd.s32 %s233, 1
    %p237 = scmp.eq.s32.totalorder %s73, 1
    %p238 = scmp.ne.s32.totalorder %s233, %s235
    %p239 = scmp.eq.s32.totalorder %s73, 0
    %p240 = por %p238, %p239
    %p241 = scmp.ne.s32.totalorder %s233, %s235
    %p242 = scmp.eq.s32.totalorder %s78, 1
    %p243 = por %p241, %p242
    %p244 = scmp.ne.s32.totalorder %s235, %s236
    %p245 = scmp.eq.s32.totalorder %s78, 0
    %p246 = por %p244, %p245
    %p247 = scmp.ne.s32.totalorder %s235, %s236
    %p248 = scmp.eq.s32.totalorder %s79, 1
    %p249 = por %p247, %p248
    %p251 = scmp.ne.s32.totalorder %s236, %s250
    %p252 = scmp.eq.s32.totalorder %s79, 0
    %p253 = por %p251, %p252
    %s255 = sadd.s32 %s254, 1
    %p258 = scmp.eq.s32.totalorder %s73, 1
    %p259 = scmp.ne.s32.totalorder %s254, %s256
    %p260 = scmp.eq.s32.totalorder %s73, 0
    %p261 = por %p259, %p260
    %p262 = scmp.ne.s32.totalorder %s254, %s256
    %p263 = scmp.eq.s32.totalorder %s78, 1
    %p264 = por %p262, %p263
    %p265 = scmp.ne.s32.totalorder %s256, %s257
    %p266 = scmp.eq.s32.totalorder %s78, 0
    %p267 = por %p265, %p266
    %p268 = scmp.ne.s32.totalorder %s256, %s257
    %p269 = scmp.eq.s32.totalorder %s79, 1
    %p270 = por %p268, %p269
    %p272 = scmp.ne.s32.totalorder %s257, %s271
    %p273 = scmp.eq.s32.totalorder %s79, 0
    %p274 = por %p272, %p273
    %s276 = sadd.s32 %s275, 1
    %p279 = scmp.eq.s32.totalorder %s73, 1
    %p280 = scmp.ne.s32.totalorder %s275, %s277
    %p281 = scmp.eq.s32.totalorder %s73, 0
    %p282 = por %p280, %p281
    %p283 = scmp.ne.s32.totalorder %s275, %s277
    %p284 = scmp.eq.s32.totalorder %s78, 1
    %p285 = por %p283, %p284
    %p286 = scmp.ne.s32.totalorder %s277, %s278
    %p287 = scmp.eq.s32.totalorder %s78, 0
    %p288 = por %p286, %p287
    %p289 = scmp.ne.s32.totalorder %s277, %s278
    %p290 = scmp.eq.s32.totalorder %s79, 1
    %p291 = por %p289, %p290
    %p293 = scmp.ne.s32.totalorder %s278, %s292
    %p294 = scmp.eq.s32.totalorder %s79, 0
    %p295 = por %p293, %p294
    %s297 = sadd.s32 %s296, 1
    %p300 = scmp.eq.s32.totalorder %s73, 1
    %p301 = scmp.ne.s32.totalorder %s296, %s298
    %p302 = scmp.eq.s32.totalorder %s73, 0
    %p303 = por %p301, %p302
    %p304 = scmp.ne.s32.totalorder %s296, %s298
    %p305 = scmp.eq.s32.totalorder %s78, 1
    %p306 = por %p304, %p305
    %p307 = scmp.ne.s32.totalorder %s298, %s299
    %p308 = scmp.eq.s32.totalorder %s78, 0
    %p309 = por %p307, %p308
    %p310 = scmp.ne.s32.totalorder %s298, %s299
    %p311 = scmp.eq.s32.totalorder %s79, 1
    %p312 = por %p310, %p311
    %p314 = scmp.ne.s32.totalorder %s299, %s313
    %p315 = scmp.eq.s32.totalorder %s79, 0
    %p316 = por %p314, %p315
    %s318 = sadd.s32 %s317, 1
    %p321 = scmp.eq.s32.totalorder %s73, 1
    %p322 = scmp.ne.s32.totalorder %s317, %s319
    %p323 = scmp.eq.s32.totalorder %s73, 0
    %p324 = por %p322, %p323
    %p325 = scmp.ne.s32.totalorder %s317, %s319
    %p326 = scmp.eq.s32.totalorder %s78, 1
    %p327 = por %p325, %p326
    %p328 = scmp.ne.s32.totalorder %s319, %s320
    %p329 = scmp.eq.s32.totalorder %s78, 0
    %p330 = por %p328, %p329
    %p331 = scmp.ne.s32.totalorder %s319, %s320
    %p332 = scmp.eq.s32.totalorder %s79, 1
    %p333 = por %p331, %p332
    %p335 = scmp.ne.s32.totalorder %s320, %s334
    %p336 = scmp.eq.s32.totalorder %s79, 0
    %p337 = por %p335, %p336
    %s339 = sadd.s32 %s338, 1
    %p342 = scmp.eq.s32.totalorder %s73, 1
    %p343 = scmp.ne.s32.totalorder %s338, %s340
    %p344 = scmp.eq.s32.totalorder %s73, 0
    %p345 = por %p343, %p344
    %p346 = scmp.ne.s32.totalorder %s338, %s340
    %p347 = scmp.eq.s32.totalorder %s78, 1
    %p348 = por %p346, %p347
    %p349 = scmp.ne.s32.totalorder %s340, %s341
    %p350 = scmp.eq.s32.totalorder %s78, 0
    %p351 = por %p349, %p350
    %p352 = scmp.ne.s32.totalorder %s340, %s341
    %p353 = scmp.eq.s32.totalorder %s79, 1
    %p354 = por %p352, %p353
    %p356 = scmp.ne.s32.totalorder %s341, %s355
    %p357 = scmp.eq.s32.totalorder %s79, 0
    %p358 = por %p356, %p357
    %s360 = sadd.s32 %s359, 1
    %p363 = scmp.eq.s32.totalorder %s73, 1
    %p364 = scmp.ne.s32.totalorder %s359, %s361
    %p365 = scmp.eq.s32.totalorder %s73, 0
    %p366 = por %p364, %p365
    %p367 = scmp.ne.s32.totalorder %s359, %s361
    %p368 = scmp.eq.s32.totalorder %s78, 1
    %p369 = por %p367, %p368
    %p370 = scmp.ne.s32.totalorder %s361, %s362
    %p371 = scmp.eq.s32.totalorder %s78, 0
    %p372 = por %p370, %p371
    %p373 = scmp.ne.s32.totalorder %s361, %s362
    %p374 = scmp.eq.s32.totalorder %s79, 1
    %p375 = por %p373, %p374
    %p377 = scmp.ne.s32.totalorder %s362, %s376
    %p378 = scmp.eq.s32.totalorder %s79, 0
    %p379 = por %p377, %p378
    %s381 = sadd.s32 %s380, 1
    %p384 = scmp.eq.s32.totalorder %s73, 1
    %p385 = scmp.ne.s32.totalorder %s380, %s382
    %p386 = scmp.eq.s32.totalorder %s73, 0
    %p387 = por %p385, %p386
    %p388 = scmp.ne.s32.totalorder %s380, %s382
    %p389 = scmp.eq.s32.totalorder %s78, 1
    %p390 = por %p388, %p389
    %p391 = scmp.ne.s32.totalorder %s382, %s383
    %p392 = scmp.eq.s32.totalorder %s78, 0
    %p393 = por %p391, %p392
    %p394 = scmp.ne.s32.totalorder %s382, %s383
    %p395 = scmp.eq.s32.totalorder %s79, 1
    %p396 = por %p394, %p395
    %p398 = scmp.ne.s32.totalorder %s383, %s397
    %p399 = scmp.eq.s32.totalorder %s79, 0
    %p400 = por %p398, %p399
    %s402 = sadd.s32 %s401, 1
    %p405 = scmp.eq.s32.totalorder %s73, 1
    %p406 = scmp.ne.s32.totalorder %s401, %s403
    %p407 = scmp.eq.s32.totalorder %s73, 0
    %p408 = por %p406, %p407
    %p409 = scmp.ne.s32.totalorder %s401, %s403
    %p410 = scmp.eq.s32.totalorder %s78, 1
    %p411 = por %p409, %p410
    %p412 = scmp.ne.s32.totalorder %s403, %s404
    %p413 = scmp.eq.s32.totalorder %s78, 0
    %p414 = por %p412, %p413
    %p415 = scmp.ne.s32.totalorder %s403, %s404
    %p416 = scmp.eq.s32.totalorder %s79, 1
    %p417 = por %p415, %p416
    %p419 = scmp.ne.s32.totalorder %s404, %s418
    %p420 = scmp.eq.s32.totalorder %s79, 0
    %p421 = por %p419, %p420
    %s423 = sadd.s32 %s422, 1
    %p426 = scmp.eq.s32.totalorder %s73, 1
    %p427 = scmp.ne.s32.totalorder %s422, %s424
    %p428 = scmp.eq.s32.totalorder %s73, 0
    %p429 = por %p427, %p428
    %p430 = scmp.ne.s32.totalorder %s422, %s424
    %p431 = scmp.eq.s32.totalorder %s78, 1
    %p432 = por %p430, %p431
    %p433 = scmp.ne.s32.totalorder %s424, %s425
    %p434 = scmp.eq.s32.totalorder %s78, 0
    %p435 = por %p433, %p434
    %p436 = scmp.ne.s32.totalorder %s424, %s425
    %p437 = scmp.eq.s32.totalorder %s79, 1
    %p438 = por %p436, %p437
    %p440 = scmp.ne.s32.totalorder %s425, %s439
    %p441 = scmp.eq.s32.totalorder %s79, 0
    %p442 = por %p440, %p441
    %s444 = sadd.s32 %s443, 1
    %p447 = scmp.eq.s32.totalorder %s73, 1
    %p448 = scmp.ne.s32.totalorder %s443, %s445
    %p449 = scmp.eq.s32.totalorder %s73, 0
    %p450 = por %p448, %p449
    %p451 = scmp.ne.s32.totalorder %s443, %s445
    %p452 = scmp.eq.s32.totalorder %s78, 1
    %p453 = por %p451, %p452
    %p454 = scmp.ne.s32.totalorder %s445, %s446
    %p455 = scmp.eq.s32.totalorder %s78, 0
    %p456 = por %p454, %p455
    %p457 = scmp.ne.s32.totalorder %s445, %s446
    %p458 = scmp.eq.s32.totalorder %s79, 1
    %p459 = por %p457, %p458
    %p461 = scmp.ne.s32.totalorder %s446, %s460
    %p462 = scmp.eq.s32.totalorder %s79, 0
    %p463 = por %p461, %p462
    %s465 = sadd.s32 %s464, 1
    %p468 = scmp.eq.s32.totalorder %s73, 1
    %p469 = scmp.ne.s32.totalorder %s464, %s466
    %p470 = scmp.eq.s32.totalorder %s73, 0
    %p471 = por %p469, %p470
    %p472 = scmp.ne.s32.totalorder %s464, %s466
    %p473 = scmp.eq.s32.totalorder %s78, 1
    %p474 = por %p472, %p473
    %p475 = scmp.ne.s32.totalorder %s466, %s467
    %p476 = scmp.eq.s32.totalorder %s78, 0
    %p477 = por %p475, %p476
    %p478 = scmp.ne.s32.totalorder %s466, %s467
    %p479 = scmp.eq.s32.totalorder %s79, 1
    %p480 = por %p478, %p479
    %p482 = scmp.ne.s32.totalorder %s467, %s481
    %p483 = scmp.eq.s32.totalorder %s79, 0
    %p484 = por %p482, %p483
    %s486 = sadd.s32 %s485, 1
    %p489 = scmp.eq.s32.totalorder %s73, 1
    %p490 = scmp.ne.s32.totalorder %s485, %s487
    %p491 = scmp.eq.s32.totalorder %s73, 0
    %p492 = por %p490, %p491
    %p493 = scmp.ne.s32.totalorder %s485, %s487
    %p494 = scmp.eq.s32.totalorder %s78, 1
    %p495 = por %p493, %p494
    %p496 = scmp.ne.s32.totalorder %s487, %s488
    %p497 = scmp.eq.s32.totalorder %s78, 0
    %p498 = por %p496, %p497
    %p499 = scmp.ne.s32.totalorder %s487, %s488
    %p500 = scmp.eq.s32.totalorder %s79, 1
    %p501 = por %p499, %p500
    %p503 = scmp.ne.s32.totalorder %s488, %s502
    %p504 = scmp.eq.s32.totalorder %s79, 0
    %p505 = por %p503, %p504
    %s507 = sadd.s32 %s506, 1
    %p510 = scmp.eq.s32.totalorder %s73, 1
    %p511 = scmp.ne.s32.totalorder %s506, %s508
    %p512 = scmp.eq.s32.totalorder %s73, 0
    %p513 = por %p511, %p512
    %p514 = scmp.ne.s32.totalorder %s506, %s508
    %p515 = scmp.eq.s32.totalorder %s78, 1
    %p516 = por %p514, %p515
    %p517 = scmp.ne.s32.totalorder %s508, %s509
    %p518 = scmp.eq.s32.totalorder %s78, 0
    %p519 = por %p517, %p518
    %p520 = scmp.ne.s32.totalorder %s508, %s509
    %p521 = scmp.eq.s32.totalorder %s79, 1
    %p522 = por %p520, %p521
    %p524 = scmp.ne.s32.totalorder %s509, %s523
    %p525 = scmp.eq.s32.totalorder %s79, 0
    %p526 = por %p524, %p525
    %s528 = sadd.s32 %s527, 1
    %p531 = scmp.eq.s32.totalorder %s73, 1
    %p532 = scmp.ne.s32.totalorder %s527, %s529
    %p533 = scmp.eq.s32.totalorder %s73, 0
    %p534 = por %p532, %p533
    %p535 = scmp.ne.s32.totalorder %s527, %s529
    %p536 = scmp.eq.s32.totalorder %s78, 1
    %p537 = por %p535, %p536
    %p538 = scmp.ne.s32.totalorder %s529, %s530
    %p539 = scmp.eq.s32.totalorder %s78, 0
    %p540 = por %p538, %p539
    %p541 = scmp.ne.s32.totalorder %s529, %s530
    %p542 = scmp.eq.s32.totalorder %s79, 1
    %p543 = por %p541, %p542
    %p545 = scmp.ne.s32.totalorder %s530, %s544
    %p546 = scmp.eq.s32.totalorder %s79, 0
    %p547 = por %p545, %p546
    %s549 = sadd.s32 %s548, 1
    %p552 = scmp.eq.s32.totalorder %s73, 1
    %p553 = scmp.ne.s32.totalorder %s548, %s550
    %p554 = scmp.eq.s32.totalorder %s73, 0
    %p555 = por %p553, %p554
    %p556 = scmp.ne.s32.totalorder %s548, %s550
    %p557 = scmp.eq.s32.totalorder %s78, 1
    %p558 = por %p556, %p557
    %p559 = scmp.ne.s32.totalorder %s550, %s551
    %p560 = scmp.eq.s32.totalorder %s78, 0
    %p561 = por %p559, %p560
    %p562 = scmp.ne.s32.totalorder %s550, %s551
    %p563 = scmp.eq.s32.totalorder %s79, 1
    %p564 = por %p562, %p563
    %p566 = scmp.ne.s32.totalorder %s551, %s565
    %p567 = scmp.eq.s32.totalorder %s79, 0
    %p568 = por %p566, %p567
    %s570 = sadd.s32 %s569, 1
    %p573 = scmp.eq.s32.totalorder %s73, 1
    %p574 = scmp.ne.s32.totalorder %s569, %s571
    %p575 = scmp.eq.s32.totalorder %s73, 0
    %p576 = por %p574, %p575
    %p577 = scmp.ne.s32.totalorder %s569, %s571
    %p578 = scmp.eq.s32.totalorder %s78, 1
    %p579 = por %p577, %p578
    %p580 = scmp.ne.s32.totalorder %s571, %s572
    %p581 = scmp.eq.s32.totalorder %s78, 0
    %p582 = por %p580, %p581
    %p583 = scmp.ne.s32.totalorder %s571, %s572
    %p584 = scmp.eq.s32.totalorder %s79, 1
    %p585 = por %p583, %p584
    %p587 = scmp.ne.s32.totalorder %s572, %s586
    %p588 = scmp.eq.s32.totalorder %s79, 0
    %p589 = por %p587, %p588
    %s591 = sadd.s32 %s590, 1
    %p594 = scmp.eq.s32.totalorder %s73, 1
    %p595 = scmp.ne.s32.totalorder %s590, %s592
    %p596 = scmp.eq.s32.totalorder %s73, 0
    %p597 = por %p595, %p596
    %p598 = scmp.ne.s32.totalorder %s590, %s592
    %p599 = scmp.eq.s32.totalorder %s78, 1
    %p600 = por %p598, %p599
    %p601 = scmp.ne.s32.totalorder %s592, %s593
    %p602 = scmp.eq.s32.totalorder %s78, 0
    %p603 = por %p601, %p602
    %p604 = scmp.ne.s32.totalorder %s592, %s593
    %p605 = scmp.eq.s32.totalorder %s79, 1
    %p606 = por %p604, %p605
    %p608 = scmp.ne.s32.totalorder %s593, %s607
    %p609 = scmp.eq.s32.totalorder %s79, 0
    %p610 = por %p608, %p609
    %s612 = sadd.s32 %s611, 1
    %p615 = scmp.eq.s32.totalorder %s73, 1
    %p616 = scmp.ne.s32.totalorder %s611, %s613
    %p617 = scmp.eq.s32.totalorder %s73, 0
    %p618 = por %p616, %p617
    %p619 = scmp.ne.s32.totalorder %s611, %s613
    %p620 = scmp.eq.s32.totalorder %s78, 1
    %p621 = por %p619, %p620
    %p622 = scmp.ne.s32.totalorder %s613, %s614
    %p623 = scmp.eq.s32.totalorder %s78, 0
    %p624 = por %p622, %p623
    %p625 = scmp.ne.s32.totalorder %s613, %s614
    %p626 = scmp.eq.s32.totalorder %s79, 1
    %p627 = por %p625, %p626
    %p629 = scmp.ne.s32.totalorder %s614, %s628
    %p630 = scmp.eq.s32.totalorder %s79, 0
    %p631 = por %p629, %p630
    %s633 = sadd.s32 %s632, 1
    %p636 = scmp.eq.s32.totalorder %s73, 1
    %p637 = scmp.ne.s32.totalorder %s632, %s634
    %p638 = scmp.eq.s32.totalorder %s73, 0
    %p639 = por %p637, %p638
    %p640 = scmp.ne.s32.totalorder %s632, %s634
    %p641 = scmp.eq.s32.totalorder %s78, 1
    %p642 = por %p640, %p641
    %p643 = scmp.ne.s32.totalorder %s634, %s635
    %p644 = scmp.eq.s32.totalorder %s78, 0
    %p645 = por %p643, %p644
    %p646 = scmp.ne.s32.totalorder %s634, %s635
    %p647 = scmp.eq.s32.totalorder %s79, 1
    %p648 = por %p646, %p647
    %p650 = scmp.ne.s32.totalorder %s635, %s649
    %p651 = scmp.eq.s32.totalorder %s79, 0
    %p652 = por %p650, %p651
    %s654 = sadd.s32 %s653, 1
    %p657 = scmp.eq.s32.totalorder %s73, 1
    %p658 = scmp.ne.s32.totalorder %s653, %s655
    %p659 = scmp.eq.s32.totalorder %s73, 0
    %p660 = por %p658, %p659
    %p661 = scmp.ne.s32.totalorder %s653, %s655
    %p662 = scmp.eq.s32.totalorder %s78, 1
    %p663 = por %p661, %p662
    %p664 = scmp.ne.s32.totalorder %s655, %s656
    %p665 = scmp.eq.s32.totalorder %s78, 0
    %p666 = por %p664, %p665
    %p667 = scmp.ne.s32.totalorder %s655, %s656
    %p668 = scmp.eq.s32.totalorder %s79, 1
    %p669 = por %p667, %p668
    %p671 = scmp.ne.s32.totalorder %s656, %s670
    %p672 = scmp.eq.s32.totalorder %s79, 0
    %p673 = por %p671, %p672
    %s675 = sadd.s32 %s674, 1
    %p678 = scmp.eq.s32.totalorder %s73, 1
    %p679 = scmp.ne.s32.totalorder %s674, %s676
    %p680 = scmp.eq.s32.totalorder %s73, 0
    %p681 = por %p679, %p680
    %p682 = scmp.ne.s32.totalorder %s674, %s676
    %p683 = scmp.eq.s32.totalorder %s78, 1
    %p684 = por %p682, %p683
    %p685 = scmp.ne.s32.totalorder %s676, %s677
    %p686 = scmp.eq.s32.totalorder %s78, 0
    %p687 = por %p685, %p686
    %p688 = scmp.ne.s32.totalorder %s676, %s677
    %p689 = scmp.eq.s32.totalorder %s79, 1
    %p690 = por %p688, %p689
    %p692 = scmp.ne.s32.totalorder %s677, %s691
    %p693 = scmp.eq.s32.totalorder %s79, 0
    %p694 = por %p692, %p693
    %s696 = sadd.s32 %s695, 1
    %p699 = scmp.eq.s32.totalorder %s73, 1
    %p700 = scmp.ne.s32.totalorder %s695, %s697
    %p701 = scmp.eq.s32.totalorder %s73, 0
    %p702 = por %p700, %p701
    %p703 = scmp.ne.s32.totalorder %s695, %s697
    %p704 = scmp.eq.s32.totalorder %s78, 1
    %p705 = por %p703, %p704
    %p706 = scmp.ne.s32.totalorder %s697, %s698
    %p707 = scmp.eq.s32.totalorder %s78, 0
    %p708 = por %p706, %p707
    %p709 = scmp.ne.s32.totalorder %s697, %s698
    %p710 = scmp.eq.s32.totalorder %s79, 1
    %p711 = por %p709, %p710
    %p713 = scmp.ne.s32.totalorder %s698, %s712
    %p714 = scmp.eq.s32.totalorder %s79, 0
    %p715 = por %p713, %p714
    %s717 = sadd.s32 %s716, 1
    %p720 = scmp.eq.s32.totalorder %s73, 1
    %p721 = scmp.ne.s32.totalorder %s716, %s718
    %p722 = scmp.eq.s32.totalorder %s73, 0
    %p723 = por %p721, %p722
    %p724 = scmp.ne.s32.totalorder %s716, %s718
    %p725 = scmp.eq.s32.totalorder %s78, 1
    %p726 = por %p724, %p725
    %p727 = scmp.ne.s32.totalorder %s718, %s719
    %p728 = scmp.eq.s32.totalorder %s78, 0
    %p729 = por %p727, %p728
    %p730 = scmp.ne.s32.totalorder %s718, %s719
    %p731 = scmp.eq.s32.totalorder %s79, 1
    %p732 = por %p730, %p731
    %p734 = scmp.ne.s32.totalorder %s719, %s733
    %p735 = scmp.eq.s32.totalorder %s79, 0
    %p736 = por %p734, %p735
    %s738 = sadd.s32 %s737, 1
    %p741 = scmp.eq.s32.totalorder %s73, 1
    %p742 = scmp.ne.s32.totalorder %s737, %s739
    %p743 = scmp.eq.s32.totalorder %s73, 0
    %p744 = por %p742, %p743
    %p745 = scmp.ne.s32.totalorder %s737, %s739
    %p746 = scmp.eq.s32.totalorder %s78, 1
    %p747 = por %p745, %p746
    %p748 = scmp.ne.s32.totalorder %s739, %s740
    %p749 = scmp.eq.s32.totalorder %s78, 0
    %p750 = por %p748, %p749
    %p751 = scmp.ne.s32.totalorder %s739, %s740
    %p752 = scmp.eq.s32.totalorder %s79, 1
    %p753 = por %p751, %p752
    %p755 = scmp.ne.s32.totalorder %s740, %s754
    %p756 = scmp.eq.s32.totalorder %s79, 0
    %p757 = por %p755, %p756
    %s758 = ssub.s32 %s73, %s80
    %p759 = scmp.eq.s32.totalorder %s758, 0
    %s761 = sadd.s32 %s760, 1
    %s762 = scalar_select %p759, %s760, %s761
    %p765 = pneg %p759
    %p766 = scmp.eq.s32.totalorder %s73, 1
    %p767 = por %p765, %p766
    %p768 = scmp.ne.s32.totalorder %s760, %s763
    %p769 = scmp.eq.s32.totalorder %s73, 0
    %p770 = por %p768, %p769
    %p771 = scmp.ne.s32.totalorder %s760, %s763
    %p772 = scmp.eq.s32.totalorder %s78, 1
    %p773 = por %p771, %p772
    %p774 = scmp.ne.s32.totalorder %s763, %s764
    %p775 = scmp.eq.s32.totalorder %s78, 0
    %p776 = por %p774, %p775
    %p777 = scmp.ne.s32.totalorder %s763, %s764
    %p778 = scmp.eq.s32.totalorder %s79, 1
    %p779 = por %p777, %p778
    %p781 = scmp.ne.s32.totalorder %s764, %s780
    %p782 = scmp.eq.s32.totalorder %s79, 0
    %p783 = por %p781, %p782
    %p784 = scmp.le.s32.totalorder 1, %s73
    %p785 = scmp.lt.s32.totalorder %s73, 3
    %p786 = pnand %p784, %p785
    %p787 = pneg %p786
    // Predicated region
    $region9: #{hybrid_model_forward.1} parent=5 // pred_check
      _
    $region10: #{hybrid_model_forward.1} parent=5 // pred_check_branch
      %789 = sbr.rel (%p786) target = $region12
    $region11: #{hybrid_model_forward.1} parent=5 // pred_region
      %s790 = ssub.s32 %s73, 1
      // Predicated region
      $region13: #{hybrid_model_forward.1} parent=11 // pred_check
        %p791 = pneg %p120
      $region14: #{hybrid_model_forward.1} parent=11 // pred_check_branch
        %793 = sbr.rel (%p791) target = $region16
      $region15: #{hybrid_model_forward.1} parent=11 // pred_region
        _
      $region16: #{hybrid_model_forward.1} parent=11 // pred_fallthru
        _
      // Predicated region
      $region17: #{hybrid_model_forward.1} parent=11 // pred_check
        %p794 = pneg %p141
      $region18: #{hybrid_model_forward.1} parent=11 // pred_check_branch
        %796 = sbr.rel (%p794) target = $region20
      $region19: #{hybrid_model_forward.1} parent=11 // pred_region
        _
      $region20: #{hybrid_model_forward.1} parent=11 // pred_fallthru
        _
      // Predicated region
      $region21: #{hybrid_model_forward.1} parent=11 // pred_check
        %p797 = pneg %p162
      $region22: #{hybrid_model_forward.1} parent=11 // pred_check_branch
        %799 = sbr.rel (%p797) target = $region24
      $region23: #{hybrid_model_forward.1} parent=11 // pred_region
        _
      $region24: #{hybrid_model_forward.1} parent=11 // pred_fallthru
        _
      // Predicated region
      $region25: #{hybrid_model_forward.1} parent=11 // pred_check
        %p800 = pneg %p183
      $region26: #{hybrid_model_forward.1} parent=11 // pred_check_branch
        %802 = sbr.rel (%p800) target = $region28
      $region27: #{hybrid_model_forward.1} parent=11 // pred_region
        _
      $region28: #{hybrid_model_forward.1} parent=11 // pred_fallthru
        _
      // Predicated region
      $region29: #{hybrid_model_forward.1} parent=11 // pred_check
        %p803 = pneg %p204
      $region30: #{hybrid_model_forward.1} parent=11 // pred_check_branch
        %805 = sbr.rel (%p803) target = $region32
      $region31: #{hybrid_model_forward.1} parent=11 // pred_region
        _
      $region32: #{hybrid_model_forward.1} parent=11 // pred_fallthru
        _
      // Predicated region
      $region33: #{hybrid_model_forward.1} parent=11 // pred_check
        %p806 = pneg %p225
      $region34: #{hybrid_model_forward.1} parent=11 // pred_check_branch
        %808 = sbr.rel (%p806) target = $region36
      $region35: #{hybrid_model_forward.1} parent=11 // pred_region
        _
      $region36: #{hybrid_model_forward.1} parent=11 // pred_fallthru
        _
      // Predicated region
      $region37: #{hybrid_model_forward.1} parent=11 // pred_check
        %p809 = pneg %p246
      $region38: #{hybrid_model_forward.1} parent=11 // pred_check_branch
        %811 = sbr.rel (%p809) target = $region40
      $region39: #{hybrid_model_forward.1} parent=11 // pred_region
        _
      $region40: #{hybrid_model_forward.1} parent=11 // pred_fallthru
        _
      // Predicated region
      $region41: #{hybrid_model_forward.1} parent=11 // pred_check
        %p812 = pneg %p267
      $region42: #{hybrid_model_forward.1} parent=11 // pred_check_branch
        %814 = sbr.rel (%p812) target = $region44
      $region43: #{hybrid_model_forward.1} parent=11 // pred_region
        _
      $region44: #{hybrid_model_forward.1} parent=11 // pred_fallthru
        _
      // Predicated region
      $region45: #{hybrid_model_forward.1} parent=11 // pred_check
        %p815 = pneg %p288
      $region46: #{hybrid_model_forward.1} parent=11 // pred_check_branch
        %817 = sbr.rel (%p815) target = $region48
      $region47: #{hybrid_model_forward.1} parent=11 // pred_region
        _
      $region48: #{hybrid_model_forward.1} parent=11 // pred_fallthru
        _
      // Predicated region
      $region49: #{hybrid_model_forward.1} parent=11 // pred_check
        %p818 = pneg %p309
      $region50: #{hybrid_model_forward.1} parent=11 // pred_check_branch
        %820 = sbr.rel (%p818) target = $region52
      $region51: #{hybrid_model_forward.1} parent=11 // pred_region
        _
      $region52: #{hybrid_model_forward.1} parent=11 // pred_fallthru
        _
      // Predicated region
      $region53: #{hybrid_model_forward.1} parent=11 // pred_check
        %p821 = pneg %p330
      $region54: #{hybrid_model_forward.1} parent=11 // pred_check_branch
        %823 = sbr.rel (%p821) target = $region56
      $region55: #{hybrid_model_forward.1} parent=11 // pred_region
        _
      $region56: #{hybrid_model_forward.1} parent=11 // pred_fallthru
        _
      // Predicated region
      $region57: #{hybrid_model_forward.1} parent=11 // pred_check
        %p824 = pneg %p351
      $region58: #{hybrid_model_forward.1} parent=11 // pred_check_branch
        %826 = sbr.rel (%p824) target = $region60
      $region59: #{hybrid_model_forward.1} parent=11 // pred_region
        _
      $region60: #{hybrid_model_forward.1} parent=11 // pred_fallthru
        _
      // Predicated region
      $region61: #{hybrid_model_forward.1} parent=11 // pred_check
        %p827 = pneg %p372
      $region62: #{hybrid_model_forward.1} parent=11 // pred_check_branch
        %829 = sbr.rel (%p827) target = $region64
      $region63: #{hybrid_model_forward.1} parent=11 // pred_region
        _
      $region64: #{hybrid_model_forward.1} parent=11 // pred_fallthru
        _
      // Predicated region
      $region65: #{hybrid_model_forward.1} parent=11 // pred_check
        %p830 = pneg %p393
      $region66: #{hybrid_model_forward.1} parent=11 // pred_check_branch
        %832 = sbr.rel (%p830) target = $region68
      $region67: #{hybrid_model_forward.1} parent=11 // pred_region
        _
      $region68: #{hybrid_model_forward.1} parent=11 // pred_fallthru
        _
      // Predicated region
      $region69: #{hybrid_model_forward.1} parent=11 // pred_check
        %p833 = pneg %p414
      $region70: #{hybrid_model_forward.1} parent=11 // pred_check_branch
        %835 = sbr.rel (%p833) target = $region72
      $region71: #{hybrid_model_forward.1} parent=11 // pred_region
        _
      $region72: #{hybrid_model_forward.1} parent=11 // pred_fallthru
        _
      // Predicated region
      $region73: #{hybrid_model_forward.1} parent=11 // pred_check
        %p836 = pneg %p435
      $region74: #{hybrid_model_forward.1} parent=11 // pred_check_branch
        %838 = sbr.rel (%p836) target = $region76
      $region75: #{hybrid_model_forward.1} parent=11 // pred_region
        _
      $region76: #{hybrid_model_forward.1} parent=11 // pred_fallthru
        _
      // Predicated region
      $region77: #{hybrid_model_forward.1} parent=11 // pred_check
        %p839 = pneg %p456
      $region78: #{hybrid_model_forward.1} parent=11 // pred_check_branch
        %841 = sbr.rel (%p839) target = $region80
      $region79: #{hybrid_model_forward.1} parent=11 // pred_region
        _
      $region80: #{hybrid_model_forward.1} parent=11 // pred_fallthru
        _
      // Predicated region
      $region81: #{hybrid_model_forward.1} parent=11 // pred_check
        %p842 = pneg %p477
      $region82: #{hybrid_model_forward.1} parent=11 // pred_check_branch
        %844 = sbr.rel (%p842) target = $region84
      $region83: #{hybrid_model_forward.1} parent=11 // pred_region
        _
      $region84: #{hybrid_model_forward.1} parent=11 // pred_fallthru
        _
      // Predicated region
      $region85: #{hybrid_model_forward.1} parent=11 // pred_check
        %p845 = pneg %p498
      $region86: #{hybrid_model_forward.1} parent=11 // pred_check_branch
        %847 = sbr.rel (%p845) target = $region88
      $region87: #{hybrid_model_forward.1} parent=11 // pred_region
        _
      $region88: #{hybrid_model_forward.1} parent=11 // pred_fallthru
        _
      // Predicated region
      $region89: #{hybrid_model_forward.1} parent=11 // pred_check
        %p848 = pneg %p519
      $region90: #{hybrid_model_forward.1} parent=11 // pred_check_branch
        %850 = sbr.rel (%p848) target = $region92
      $region91: #{hybrid_model_forward.1} parent=11 // pred_region
        _
      $region92: #{hybrid_model_forward.1} parent=11 // pred_fallthru
        _
      // Predicated region
      $region93: #{hybrid_model_forward.1} parent=11 // pred_check
        %p851 = pneg %p540
      $region94: #{hybrid_model_forward.1} parent=11 // pred_check_branch
        %853 = sbr.rel (%p851) target = $region96
      $region95: #{hybrid_model_forward.1} parent=11 // pred_region
        _
      $region96: #{hybrid_model_forward.1} parent=11 // pred_fallthru
        _
      // Predicated region
      $region97: #{hybrid_model_forward.1} parent=11 // pred_check
        %p854 = pneg %p561
      $region98: #{hybrid_model_forward.1} parent=11 // pred_check_branch
        %856 = sbr.rel (%p854) target = $region100
      $region99: #{hybrid_model_forward.1} parent=11 // pred_region
        _
      $region100: #{hybrid_model_forward.1} parent=11 // pred_fallthru
        _
      // Predicated region
      $region101: #{hybrid_model_forward.1} parent=11 // pred_check
        %p857 = pneg %p582
      $region102: #{hybrid_model_forward.1} parent=11 // pred_check_branch
        %859 = sbr.rel (%p857) target = $region104
      $region103: #{hybrid_model_forward.1} parent=11 // pred_region
        _
      $region104: #{hybrid_model_forward.1} parent=11 // pred_fallthru
        _
      // Predicated region
      $region105: #{hybrid_model_forward.1} parent=11 // pred_check
        %p860 = pneg %p603
      $region106: #{hybrid_model_forward.1} parent=11 // pred_check_branch
        %862 = sbr.rel (%p860) target = $region108
      $region107: #{hybrid_model_forward.1} parent=11 // pred_region
        _
      $region108: #{hybrid_model_forward.1} parent=11 // pred_fallthru
        _
      // Predicated region
      $region109: #{hybrid_model_forward.1} parent=11 // pred_check
        %p863 = pneg %p624
      $region110: #{hybrid_model_forward.1} parent=11 // pred_check_branch
        %865 = sbr.rel (%p863) target = $region112
      $region111: #{hybrid_model_forward.1} parent=11 // pred_region
        _
      $region112: #{hybrid_model_forward.1} parent=11 // pred_fallthru
        _
      // Predicated region
      $region113: #{hybrid_model_forward.1} parent=11 // pred_check
        %p866 = pneg %p645
      $region114: #{hybrid_model_forward.1} parent=11 // pred_check_branch
        %868 = sbr.rel (%p866) target = $region116
      $region115: #{hybrid_model_forward.1} parent=11 // pred_region
        _
      $region116: #{hybrid_model_forward.1} parent=11 // pred_fallthru
        _
      // Predicated region
      $region117: #{hybrid_model_forward.1} parent=11 // pred_check
        %p869 = pneg %p666
      $region118: #{hybrid_model_forward.1} parent=11 // pred_check_branch
        %871 = sbr.rel (%p869) target = $region120
      $region119: #{hybrid_model_forward.1} parent=11 // pred_region
        _
      $region120: #{hybrid_model_forward.1} parent=11 // pred_fallthru
        _
      // Predicated region
      $region121: #{hybrid_model_forward.1} parent=11 // pred_check
        %p872 = pneg %p687
      $region122: #{hybrid_model_forward.1} parent=11 // pred_check_branch
        %874 = sbr.rel (%p872) target = $region124
      $region123: #{hybrid_model_forward.1} parent=11 // pred_region
        _
      $region124: #{hybrid_model_forward.1} parent=11 // pred_fallthru
        _
      // Predicated region
      $region125: #{hybrid_model_forward.1} parent=11 // pred_check
        %p875 = pneg %p708
      $region126: #{hybrid_model_forward.1} parent=11 // pred_check_branch
        %877 = sbr.rel (%p875) target = $region128
      $region127: #{hybrid_model_forward.1} parent=11 // pred_region
        _
      $region128: #{hybrid_model_forward.1} parent=11 // pred_fallthru
        _
      // Predicated region
      $region129: #{hybrid_model_forward.1} parent=11 // pred_check
        %p878 = pneg %p729
      $region130: #{hybrid_model_forward.1} parent=11 // pred_check_branch
        %880 = sbr.rel (%p878) target = $region132
      $region131: #{hybrid_model_forward.1} parent=11 // pred_region
        _
      $region132: #{hybrid_model_forward.1} parent=11 // pred_fallthru
        _
      // Predicated region
      $region133: #{hybrid_model_forward.1} parent=11 // pred_check
        %p881 = pneg %p750
      $region134: #{hybrid_model_forward.1} parent=11 // pred_check_branch
        %883 = sbr.rel (%p881) target = $region136
      $region135: #{hybrid_model_forward.1} parent=11 // pred_region
        _
      $region136: #{hybrid_model_forward.1} parent=11 // pred_fallthru
        _
    $region12: #{hybrid_model_forward.1} parent=5 // pred_fallthru
      _
    %p884 = scmp.lt.s32.totalorder %s73, 2
    // Predicated region
    $region137: #{hybrid_model_forward.1} parent=5 // pred_check
      %p885 = pneg %p884
    $region138: #{hybrid_model_forward.1} parent=5 // pred_check_branch
      %887 = sbr.rel (%p885) target = $region140
    $region139: #{hybrid_model_forward.1} parent=5 // pred_region
      // Predicated region
      $region141: #{hybrid_model_forward.1} parent=139 // pred_check
        %p888 = pneg %p93
      $region142: #{hybrid_model_forward.1} parent=139 // pred_check_branch
        %890 = sbr.rel (%p888) target = $region144
      $region143: #{hybrid_model_forward.1} parent=139 // pred_region
        %p891 = scmp.lt.s32.totalorder %s73, 1
        %s892 = scalar_select %p891, %s73, 1
        %s893 = smul.addr %s892, 2
        %s894 = smul.addr %s893, 4
        %s895 = scalar_lea.vmem %s1, %s894
      $region144: #{hybrid_model_forward.1} parent=139 // pred_fallthru
        _
    $region140: #{hybrid_model_forward.1} parent=5 // pred_fallthru
      _
    %p896 = scmp.le.s32.totalorder 1, %s73
    %p897 = scmp.lt.s32.totalorder %s73, 3
    %p898 = pnand %p896, %p897
    %p899 = pneg %p898
    // Predicated region
    $region145: #{hybrid_model_forward.1} parent=5 // pred_check
      _
    $region146: #{hybrid_model_forward.1} parent=5 // pred_check_branch
      %901 = sbr.rel (%p898) target = $region148
    $region147: #{hybrid_model_forward.1} parent=5 // pred_region
      %s902 = ssub.s32 %s73, 1
      %p903 = scmp.lt.s32.totalorder %s78, 1
      %s904 = scalar_select %p903, %s78, 1
      %s905 = smul.addr %s904, 2
      %s906 = smul.addr %s905, 4
      %s907 = scalar_lea.vmem %s1, %s906
      %p908 = pneg %p99
      %p909 = pneg %p96
      %p910 = pneg %p120
      %p911 = pneg %p117
      %p912 = pneg %p141
      %p913 = pneg %p138
      %p914 = pneg %p162
      %p915 = pneg %p159
      %p916 = pneg %p183
      %p917 = pneg %p180
      %p918 = pneg %p204
      %p919 = pneg %p201
      %p920 = pneg %p225
      %p921 = pneg %p222
      %p922 = pneg %p246
      %p923 = pneg %p243
      %p924 = pneg %p267
      %p925 = pneg %p264
      %p926 = pneg %p288
      %p927 = pneg %p285
      %p928 = pneg %p309
      %p929 = pneg %p306
      %p930 = pneg %p330
      %p931 = pneg %p327
      %p932 = pneg %p351
      %p933 = pneg %p348
      %p934 = pneg %p372
      %p935 = pneg %p369
      %p936 = pneg %p393
      %p937 = pneg %p390
      %p938 = pneg %p414
      %p939 = pneg %p411
      %p940 = pneg %p435
      %p941 = pneg %p432
      %p942 = pneg %p456
      %p943 = pneg %p453
      %p944 = pneg %p477
      %p945 = pneg %p474
      %p946 = pneg %p498
      %p947 = pneg %p495
      %p948 = pneg %p519
      %p949 = pneg %p516
      %p950 = pneg %p540
      %p951 = pneg %p537
      %p952 = pneg %p561
      %p953 = pneg %p558
      %p954 = pneg %p582
      %p955 = pneg %p579
      %p956 = pneg %p603
      %p957 = pneg %p600
      %p958 = pneg %p624
      %p959 = pneg %p621
      %p960 = pneg %p645
      %p961 = pneg %p642
      %p962 = pneg %p666
      %p963 = pneg %p663
      %p964 = pneg %p687
      %p965 = pneg %p684
      %p966 = pneg %p708
      %p967 = pneg %p705
      %p968 = pneg %p729
      %p969 = pneg %p726
      %p970 = pneg %p750
      %p971 = pneg %p747
      %p972 = pneg %p776
      %p973 = pneg %p773
      %p974 = scmp.lt.s32.totalorder %s78, 1
      %s975 = scalar_select %p974, %s78, 1
      %s976 = scalar_lea.vmem %s65, %s975
      %p977 = scmp.lt.s32.totalorder %s78, 1
      %s978 = scalar_select %p977, %s78, 1
      %s979 = smul.addr %s978, 2
      %s980 = smul.addr %s979, 4
      %s981 = scalar_lea.vmem %s1, %s980
      %p982 = scmp.lt.s32.totalorder %s78, 1
      %s983 = scalar_select %p982, %s78, 1
      %s984 = scalar_lea.vmem %s65, %s983
      %v986 = vld [vmem:[%s981] sm:$0xf]
      %v987 = vld [vmem:[%s981 + $0x4] sm:$0xf]
      %v988 = vld [vmem:[%s3] sm:$0xf]
      %v989 = vld [vmem:[%s3 + $0x4] sm:$0xf]
      %v990 = vld [vmem:[%s3 + $0x8] sm:$0xf]
      %v991 = vld [vmem:[%s3 + $0xc] sm:$0xf]
      %v992 = vld [vmem:[%s3 + $0x10] sm:$0xf]
      %v993 = vld [vmem:[%s3 + $0x14] sm:$0xf]
      %v994 = vld [vmem:[%s3 + $0x18] sm:$0xf]
      %v995 = vld [vmem:[%s3 + $0x1c] sm:$0x3]
      %v998 = vunpack.c.l.b16 %v986
      %v999 = vunpack.c.l.b16 %v987
      %v1000 = vpack.c.b16 %v999, %v998
      %v1009 = vunpack.c.l.b16 %v988
      %v1010 = vunpack.c.l.b16 %v989
      %v1011 = vunpack.c.l.b16 %v990
      %v1012 = vunpack.c.l.b16 %v991
      %v1013 = vunpack.c.l.b16 %v992
      %v1014 = vunpack.c.l.b16 %v993
      %v1015 = vunpack.c.l.b16 %v994
      %v1016 = vunpack.c.l.b16 %v995
      %v1017 = vpack.c.b16 %v1010, %v1009
      %v1018 = vpack.c.b16 %v1012, %v1011
      %v1019 = vpack.c.b16 %v1014, %v1013
      %v1020 = vpack.c.b16 %v1016, %v1015
      %vm1024 = vcmask 490496
      %v1026 = vsel %vm1024, %v1000, 0
      %vm1028 = vcmask 1045504
      %v1030 = vsel %vm1028, %v1020, 0
      %1032 = vmatpush.bf16.msra.mxu0 0
      %1033 = vmatpush.bf16.msra.mxu0 0
      %1034 = vmatpush.bf16.msra.mxu0 0
      %1035 = vmatpush.bf16.msra.mxu0 0
      %1036 = vmatpush.bf16.msra.mxu0 %v1030
      %1037 = vmatpush.bf16.msra.mxu0 %v1019
      %1038 = vmatpush.bf16.msra.mxu0 %v1018
      %1039 = vmatpush.bf16.msra.mxu0 %v1017
      %1040 = vmatmul.bf16.gmra.mxu0 %v1026
      %v1041 = vpop.f32.mrf.mxu0
      %v1042 = vadd.f32 0.0, %v1041
      %v1043 = vpop.f32.mrf.mxu0
      %v1044 = vadd.f32 0.0, %v1043
      %1045 = vdwg.mxu0
      %v1046 = vld [vmem:[%s5] sm:$0x1]
      %v1048 = vperm.slane %v1046, 0
      %v1050 = vmul.f32 %v1042, %v1048
      %v1051 = vmul.f32 %v1044, %v1048
      %v1052 = vld [vmem:[%s7] sm:$0x1]
      %v1054 = vperm.slane %v1052, 0
      %v1056 = vadd.f32 %v1050, %v1054
      %v1057 = vadd.f32 %v1051, %v1054
      %v1058 = vmax.f32 %v1056, 0.0
      %v1059 = vmax.f32 %v1057, 0.0
      %v1060 = vpack.c.bf16 %v1059, %v1058
      %v1061 = vld [vmem:[%s9] sm:$0xf]
      %v1062 = vld [vmem:[%s9 + $0x4] sm:$0xf]
      %v1063 = vld [vmem:[%s9 + $0x8] sm:$0xf]
      %v1064 = vld [vmem:[%s11] sm:$0x1]
      %v1066 = vperm.slane %v1064, 0
      %v1071 = vunpack.c.l.b16 %v1061
      %v1072 = vunpack.c.l.b16 %v1062
      %v1073 = vunpack.c.l.b16 %v1063
      %v1074 = vpack.c.b16 %v1072, %v1071
      %v1075 = vpack.c.b16 %v1073, %v1073
      %vm1077 = vcmask 195584
      %v1079 = vsel %vm1077, %v1060, 0
      %vm1081 = vcmask 1043456
      %v1083 = vsel %vm1081, %v1075, 0
      %1085 = vmatpush.bf16.msra.mxu0 0
      %1086 = vmatpush.bf16.msra.mxu0 0
      %1087 = vmatpush.bf16.msra.mxu0 0
      %1088 = vmatpush.bf16.msra.mxu0 0
      %1089 = vmatpush.bf16.msra.mxu0 0
      %1090 = vmatpush.bf16.msra.mxu0 0
      %1091 = vmatpush.bf16.msra.mxu0 %v1083
      %1092 = vmatpush.bf16.msra.mxu0 %v1074
      %1093 = vmatmul.bf16.gmra.mxu0 %v1079
      %v1094 = vpop.f32.mrf.mxu0
      %v1095 = vadd.f32 %v1066, %v1094
      %v1096 = vpop.f32.mrf.mxu0
      %v1097 = vadd.f32 %v1066, %v1096
      %1098 = vdwg.mxu0
      %v1099 = vpack.c.bf16 %v1097, %v1095
      %v1100 = vld [vmem:[%s13] sm:$0xf]
      %v1101 = vld [vmem:[%s13 + $0x4] sm:$0xf]
      %v1102 = vld [vmem:[%s13 + $0x8] sm:$0xf]
      %v1103 = vld [vmem:[%s13 + $0xc] sm:$0xf]
      %v1104 = vld [vmem:[%s15] sm:$0x1]
      %v1106 = vperm.slane %v1104, 0
      %v1112 = vunpack.c.l.b16 %v1100
      %v1113 = vunpack.c.l.b16 %v1101
      %v1114 = vunpack.c.l.b16 %v1102
      %v1115 = vunpack.c.l.b16 %v1103
      %v1116 = vpack.c.b16 %v1113, %v1112
      %v1117 = vpack.c.b16 %v1115, %v1114
      %vm1120 = vcmask 261120
      %v1122 = vsel %vm1120, %v1099, 0
      %1124 = vmatpush.bf16.msra.mxu0 0
      %1125 = vmatpush.bf16.msra.mxu0 0
      %1126 = vmatpush.bf16.msra.mxu0 0
      %1127 = vmatpush.bf16.msra.mxu0 0
      %1128 = vmatpush.bf16.msra.mxu0 0
      %1129 = vmatpush.bf16.msra.mxu0 0
      %1130 = vmatpush.bf16.msra.mxu0 %v1117
      %1131 = vmatpush.bf16.msra.mxu0 %v1116
      %1132 = vmatmul.bf16.gmra.mxu0 %v1122
      %v1133 = vpop.f32.mrf.mxu0
      %v1134 = vadd.f32 %v1106, %v1133
      %v1135 = vpop.f32.mrf.mxu0
      %v1136 = vadd.f32 %v1106, %v1135
      %1137 = vdwg.mxu0
      %v1138 = vpack.c.bf16 %v1134, %v1134
      %v1139 = vpack.c.bf16 %v1136, %v1136
      %v1142 = vunpack.c.l.b16 %v1138
      %v1143 = vunpack.c.l.b16 %v1139
      %v1144 = vpack.c.b16 %v1143, %v1142
      %1145 = vrot.lane.b32.xlu0 %v1144, 96
      %v1146 = vpop.permute.xlu0 %1145
      %vm1147 = vcmask 64512
      %v1149 = vsel %vm1147, %v1144, 0
      %v1152 = vsel %vm1147, %v1146, 0
      %1154 = vmatpush.bf16.xpose.msra.mxu0 0
      %1155 = vmatpush.bf16.xpose.msra.mxu0 0
      %1156 = vmatpush.bf16.xpose.msra.mxu0 0
      %1157 = vmatpush.bf16.xpose.msra.mxu0 0
      %1158 = vmatpush.bf16.xpose.msra.mxu0 0
      %1159 = vmatpush.bf16.xpose.msra.mxu0 0
      %1160 = vmatpush.bf16.xpose.msra.mxu0 0
      %1161 = vmatpush.bf16.xpose.msra.mxu0 %v1152
      %1162 = vmatmul.bf16.gmra.mxu0 %v1149
      %v1163 = vpop.f32.mrf.mxu0
      %v1164 = vadd.f32 0.0, %v1163
      %v1165 = vpop.f32.mrf.mxu0
      %v1166 = vadd.f32 0.0, %v1165
      %1167 = vdwg.mxu0
      %vm1168 = vcmask 130048
      %v1169 = vsel %vm1168, %v1164, -inf
      %1170 = vmax.xlane.f32.xlu0 %v1169
      %v1171 = vpop.xlane.xlu0 %1170
      %v1172 = vsel %vm1168, %v1166, -inf
      %1173 = vmax.xlane.f32.xlu0 %v1172
      %v1174 = vpop.xlane.xlu0 %1173
      %v1175 = vsub.f32 %v1164, %v1171
      %v1176 = vsub.f32 %v1166, %v1174
      %v1177 = vmul.f32 %v1175, 1.442695
      %v1178 = vpow.pop %v1177
      %v1179 = vmul.f32 %v1176, 1.442695
      %v1180 = vpow.pop %v1179
      %v1181 = vsel %vm1168, %v1178, 0.0
      %1182 = vadd.xlane.f32.xlu0 %v1181
      %v1183 = vpop.xlane.xlu0 %1182
      %v1184 = vsel %vm1168, %v1180, 0.0
      %1185 = vadd.xlane.f32.xlu0 %v1184
      %v1186 = vpop.xlane.xlu0 %1185
      %v1187 = vrcp.pop %v1183
      %v1188 = vrcp.pop %v1186
      %v1189 = vmul.f32 %v1178, %v1187
      %v1190 = vmul.f32 %v1180, %v1188
      %v1191 = vpack.c.bf16 %v1189, %v1189
      %v1192 = vpack.c.bf16 %v1190, %v1190
      %v1195 = vunpack.c.l.b16 %v1191
      %v1196 = vunpack.c.l.b16 %v1192
      %v1197 = vpack.c.b16 %v1196, %v1195
      %1198 = vrot.lane.b32.xlu0 %v1144, 64
      %v1199 = vpop.permute.xlu0 %1198
      %v1202 = vsel %vm1168, %v1197, 0
      %1204 = vmatpush.bf16.msra.mxu0 0
      %1205 = vmatpush.bf16.msra.mxu0 0
      %1206 = vmatpush.bf16.msra.mxu0 0
      %1207 = vmatpush.bf16.msra.mxu0 0
      %1208 = vmatpush.bf16.msra.mxu0 0
      %1209 = vmatpush.bf16.msra.mxu0 0
      %1210 = vmatpush.bf16.msra.mxu0 0
      %1211 = vmatpush.bf16.msra.mxu0 %v1199
      %1212 = vmatmul.bf16.gmra.mxu0 %v1202
      %v1213 = vpop.f32.mrf.mxu0
      %v1214 = vadd.f32 0.0, %v1213
      %v1215 = vpop.f32.mrf.mxu0
      %v1216 = vadd.f32 0.0, %v1215
      %1217 = vdwg.mxu0
      %1218 = vrot.lane.b32.xlu0 %v1144, 120
      %v1219 = vpop.permute.xlu0 %1218
      %1220 = vrot.lane.b32.xlu0 %v1144, 88
      %v1221 = vpop.permute.xlu0 %1220
      %v1223 = vsel %vm1147, %v1219, 0
      %v1226 = vsel %vm1147, %v1221, 0
      %1228 = vmatpush.bf16.xpose.msra.mxu0 0
      %1229 = vmatpush.bf16.xpose.msra.mxu0 0
      %1230 = vmatpush.bf16.xpose.msra.mxu0 0
      %1231 = vmatpush.bf16.xpose.msra.mxu0 0
      %1232 = vmatpush.bf16.xpose.msra.mxu0 0
      %1233 = vmatpush.bf16.xpose.msra.mxu0 0
      %1234 = vmatpush.bf16.xpose.msra.mxu0 0
      %1235 = vmatpush.bf16.xpose.msra.mxu0 %v1226
      %1236 = vmatmul.bf16.gmra.mxu0 %v1223
      %v1237 = vpop.f32.mrf.mxu0
      %v1238 = vadd.f32 0.0, %v1237
      %v1239 = vpop.f32.mrf.mxu0
      %v1240 = vadd.f32 0.0, %v1239
      %1241 = vdwg.mxu0
      %v1242 = vsel %vm1168, %v1238, -inf
      %1243 = vmax.xlane.f32.xlu0 %v1242
      %v1244 = vpop.xlane.xlu0 %1243
      %v1245 = vsel %vm1168, %v1240, -inf
      %1246 = vmax.xlane.f32.xlu0 %v1245
      %v1247 = vpop.xlane.xlu0 %1246
      %v1248 = vsub.f32 %v1238, %v1244
      %v1249 = vsub.f32 %v1240, %v1247
      %v1250 = vmul.f32 %v1248, 1.442695
      %v1251 = vpow.pop %v1250
      %v1252 = vmul.f32 %v1249, 1.442695
      %v1253 = vpow.pop %v1252
      %v1254 = vsel %vm1168, %v1251, 0.0
      %1255 = vadd.xlane.f32.xlu0 %v1254
      %v1256 = vpop.xlane.xlu0 %1255
      %v1257 = vsel %vm1168, %v1253, 0.0
      %1258 = vadd.xlane.f32.xlu0 %v1257
      %v1259 = vpop.xlane.xlu0 %1258
      %v1260 = vrcp.pop %v1256
      %v1261 = vrcp.pop %v1259
      %v1262 = vmul.f32 %v1251, %v1260
      %v1263 = vmul.f32 %v1253, %v1261
      %v1264 = vpack.c.bf16 %v1262, %v1262
      %v1265 = vpack.c.bf16 %v1263, %v1263
      %v1268 = vunpack.c.l.b16 %v1264
      %v1269 = vunpack.c.l.b16 %v1265
      %v1270 = vpack.c.b16 %v1269, %v1268
      %1271 = vrot.lane.b32.xlu0 %v1144, 56
      %v1272 = vpop.permute.xlu0 %1271
      %v1275 = vsel %vm1168, %v1270, 0
      %1277 = vmatpush.bf16.msra.mxu0 0
      %1278 = vmatpush.bf16.msra.mxu0 0
      %1279 = vmatpush.bf16.msra.mxu0 0
      %1280 = vmatpush.bf16.msra.mxu0 0
      %1281 = vmatpush.bf16.msra.mxu0 0
      %1282 = vmatpush.bf16.msra.mxu0 0
      %1283 = vmatpush.bf16.msra.mxu0 0
      %1284 = vmatpush.bf16.msra.mxu0 %v1272
      %1285 = vmatmul.bf16.gmra.mxu0 %v1275
      %v1286 = vpop.f32.mrf.mxu0
      %v1287 = vadd.f32 0.0, %v1286
      %v1288 = vpop.f32.mrf.mxu0
      %v1289 = vadd.f32 0.0, %v1288
      %1290 = vdwg.mxu0
      %1291 = vrot.lane.b32.xlu0 %v1144, 112
      %v1292 = vpop.permute.xlu0 %1291
      %1293 = vrot.lane.b32.xlu0 %v1144, 80
      %v1294 = vpop.permute.xlu0 %1293
      %v1296 = vsel %vm1147, %v1292, 0
      %v1299 = vsel %vm1147, %v1294, 0
      %1301 = vmatpush.bf16.xpose.msra.mxu0 0
      %1302 = vmatpush.bf16.xpose.msra.mxu0 0
      %1303 = vmatpush.bf16.xpose.msra.mxu0 0
      %1304 = vmatpush.bf16.xpose.msra.mxu0 0
      %1305 = vmatpush.bf16.xpose.msra.mxu0 0
      %1306 = vmatpush.bf16.xpose.msra.mxu0 0
      %1307 = vmatpush.bf16.xpose.msra.mxu0 0
      %1308 = vmatpush.bf16.xpose.msra.mxu0 %v1299
      %1309 = vmatmul.bf16.gmra.mxu0 %v1296
      %v1310 = vpop.f32.mrf.mxu0
      %v1311 = vadd.f32 0.0, %v1310
      %v1312 = vpop.f32.mrf.mxu0
      %v1313 = vadd.f32 0.0, %v1312
      %1314 = vdwg.mxu0
      %v1315 = vsel %vm1168, %v1311, -inf
      %1316 = vmax.xlane.f32.xlu0 %v1315
      %v1317 = vpop.xlane.xlu0 %1316
      %v1318 = vsel %vm1168, %v1313, -inf
      %1319 = vmax.xlane.f32.xlu0 %v1318
      %v1320 = vpop.xlane.xlu0 %1319
      %v1321 = vsub.f32 %v1311, %v1317
      %v1322 = vsub.f32 %v1313, %v1320
      %v1323 = vmul.f32 %v1321, 1.442695
      %v1324 = vpow.pop %v1323
      %v1325 = vmul.f32 %v1322, 1.442695
      %v1326 = vpow.pop %v1325
      %v1327 = vsel %vm1168, %v1324, 0.0
      %1328 = vadd.xlane.f32.xlu0 %v1327
      %v1329 = vpop.xlane.xlu0 %1328
      %v1330 = vsel %vm1168, %v1326, 0.0
      %1331 = vadd.xlane.f32.xlu0 %v1330
      %v1332 = vpop.xlane.xlu0 %1331
      %v1333 = vrcp.pop %v1329
      %v1334 = vrcp.pop %v1332
      %v1335 = vmul.f32 %v1324, %v1333
      %v1336 = vmul.f32 %v1326, %v1334
      %v1337 = vpack.c.bf16 %v1335, %v1335
      %v1338 = vpack.c.bf16 %v1336, %v1336
      %v1341 = vunpack.c.l.b16 %v1337
      %v1342 = vunpack.c.l.b16 %v1338
      %v1343 = vpack.c.b16 %v1342, %v1341
      %1344 = vrot.lane.b32.xlu0 %v1144, 48
      %v1345 = vpop.permute.xlu0 %1344
      %v1348 = vsel %vm1168, %v1343, 0
      %1350 = vmatpush.bf16.msra.mxu0 0
      %1351 = vmatpush.bf16.msra.mxu0 0
      %1352 = vmatpush.bf16.msra.mxu0 0
      %1353 = vmatpush.bf16.msra.mxu0 0
      %1354 = vmatpush.bf16.msra.mxu0 0
      %1355 = vmatpush.bf16.msra.mxu0 0
      %1356 = vmatpush.bf16.msra.mxu0 0
      %1357 = vmatpush.bf16.msra.mxu0 %v1345
      %1358 = vmatmul.bf16.gmra.mxu0 %v1348
      %v1359 = vpop.f32.mrf.mxu0
      %v1360 = vadd.f32 0.0, %v1359
      %v1361 = vpop.f32.mrf.mxu0
      %v1362 = vadd.f32 0.0, %v1361
      %1363 = vdwg.mxu0
      %1364 = vrot.lane.b32.xlu0 %v1144, 104
      %v1365 = vpop.permute.xlu0 %1364
      %1366 = vrot.lane.b32.xlu0 %v1144, 72
      %v1367 = vpop.permute.xlu0 %1366
      %v1369 = vsel %vm1147, %v1365, 0
      %v1372 = vsel %vm1147, %v1367, 0
      %1374 = vmatpush.bf16.xpose.msra.mxu0 0
      %1375 = vmatpush.bf16.xpose.msra.mxu0 0
      %1376 = vmatpush.bf16.xpose.msra.mxu0 0
      %1377 = vmatpush.bf16.xpose.msra.mxu0 0
      %1378 = vmatpush.bf16.xpose.msra.mxu0 0
      %1379 = vmatpush.bf16.xpose.msra.mxu0 0
      %1380 = vmatpush.bf16.xpose.msra.mxu0 0
      %1381 = vmatpush.bf16.xpose.msra.mxu0 %v1372
      %1382 = vmatmul.bf16.gmra.mxu0 %v1369
      %v1383 = vpop.f32.mrf.mxu0
      %v1384 = vadd.f32 0.0, %v1383
      %v1385 = vpop.f32.mrf.mxu0
      %v1386 = vadd.f32 0.0, %v1385
      %1387 = vdwg.mxu0
      %v1388 = vsel %vm1168, %v1384, -inf
      %1389 = vmax.xlane.f32.xlu0 %v1388
      %v1390 = vpop.xlane.xlu0 %1389
      %v1391 = vsel %vm1168, %v1386, -inf
      %1392 = vmax.xlane.f32.xlu0 %v1391
      %v1393 = vpop.xlane.xlu0 %1392
      %v1394 = vsub.f32 %v1384, %v1390
      %v1395 = vsub.f32 %v1386, %v1393
      %v1396 = vmul.f32 %v1394, 1.442695
      %v1397 = vpow.pop %v1396
      %v1398 = vmul.f32 %v1395, 1.442695
      %v1399 = vpow.pop %v1398
      %v1400 = vsel %vm1168, %v1397, 0.0
      %1401 = vadd.xlane.f32.xlu0 %v1400
      %v1402 = vpop.xlane.xlu0 %1401
      %v1403 = vsel %vm1168, %v1399, 0.0
      %1404 = vadd.xlane.f32.xlu0 %v1403
      %v1405 = vpop.xlane.xlu0 %1404
      %v1406 = vrcp.pop %v1402
      %v1407 = vrcp.pop %v1405
      %v1408 = vmul.f32 %v1397, %v1406
      %v1409 = vmul.f32 %v1399, %v1407
      %v1410 = vpack.c.bf16 %v1408, %v1408
      %v1411 = vpack.c.bf16 %v1409, %v1409
      %v1414 = vunpack.c.l.b16 %v1410
      %v1415 = vunpack.c.l.b16 %v1411
      %v1416 = vpack.c.b16 %v1415, %v1414
      %1417 = vrot.lane.b32.xlu0 %v1144, 40
      %v1418 = vpop.permute.xlu0 %1417
      %v1421 = vsel %vm1168, %v1416, 0
      %1423 = vmatpush.bf16.msra.mxu0 0
      %1424 = vmatpush.bf16.msra.mxu0 0
      %1425 = vmatpush.bf16.msra.mxu0 0
      %1426 = vmatpush.bf16.msra.mxu0 0
      %1427 = vmatpush.bf16.msra.mxu0 0
      %1428 = vmatpush.bf16.msra.mxu0 0
      %1429 = vmatpush.bf16.msra.mxu0 0
      %1430 = vmatpush.bf16.msra.mxu0 %v1418
      %1431 = vmatmul.bf16.gmra.mxu0 %v1421
      %v1432 = vpop.f32.mrf.mxu0
      %v1433 = vadd.f32 0.0, %v1432
      %v1434 = vpop.f32.mrf.mxu0
      %v1435 = vadd.f32 0.0, %v1434
      %1436 = vdwg.mxu0
      %1439 = vrot.lane.b32.xlu0 %v1287, 8
      %v1440 = vpop.permute.xlu0 %1439
      %1441 = vrot.lane.b32.xlu0 %v1289, 8
      %v1442 = vpop.permute.xlu0 %1441
      %1447 = vrot.lane.b32.xlu0 %v1360, 16
      %v1448 = vpop.permute.xlu0 %1447
      %1449 = vrot.lane.b32.xlu0 %v1362, 16
      %v1450 = vpop.permute.xlu0 %1449
      %1455 = vrot.lane.b32.xlu0 %v1433, 24
      %v1456 = vpop.permute.xlu0 %1455
      %1457 = vrot.lane.b32.xlu0 %v1435, 24
      %v1458 = vpop.permute.xlu0 %1457
      %v1461 = vsel %vm1147, %v1214, %v1440
      %v1462 = vsel %vm1147, %v1216, %v1442
      %v1463 = vsel %vm1168, %v1461, %v1448
      %v1464 = vsel %vm1168, %v1462, %v1450
      %v1465 = vsel %vm1077, %v1463, %v1456
      %v1466 = vsel %vm1077, %v1464, %v1458
      %v1467 = vpack.c.bf16 %v1466, %v1465
      %v1468 = vld [vmem:[%s17] sm:$0xf]
      %v1469 = vld [vmem:[%s17 + $0x4] sm:$0xf]
      %v1470 = vld [vmem:[%s17 + $0x8] sm:$0xf]
      %v1471 = vld [vmem:[%s17 + $0xc] sm:$0xf]
      %v1472 = vld [vmem:[%s19] sm:$0x1]
      %v1474 = vperm.slane %v1472, 0
      %v1480 = vunpack.c.l.b16 %v1468
      %v1481 = vunpack.c.l.b16 %v1469
      %v1482 = vunpack.c.l.b16 %v1470
      %v1483 = vunpack.c.l.b16 %v1471
      %v1484 = vpack.c.b16 %v1481, %v1480
      %v1485 = vpack.c.b16 %v1483, %v1482
      %v1489 = vsel %vm1120, %v1467, 0
      %1491 = vmatpush.bf16.msra.mxu0 0
      %1492 = vmatpush.bf16.msra.mxu0 0
      %1493 = vmatpush.bf16.msra.mxu0 0
      %1494 = vmatpush.bf16.msra.mxu0 0
      %1495 = vmatpush.bf16.msra.mxu0 0
      %1496 = vmatpush.bf16.msra.mxu0 0
      %1497 = vmatpush.bf16.msra.mxu0 %v1485
      %1498 = vmatpush.bf16.msra.mxu0 %v1484
      %1499 = vmatmul.bf16.gmra.mxu0 %v1489
      %v1500 = vpop.f32.mrf.mxu0
      %v1501 = vadd.f32 %v1474, %v1500
      %v1502 = vpop.f32.mrf.mxu0
      %v1503 = vadd.f32 %v1474, %v1502
      %1504 = vdwg.mxu0
      %v1505 = vadd.f32 %v1095, %v1501
      %v1506 = vadd.f32 %v1097, %v1503
      %v1507 = vsel %vm1120, %v1505, 0.0
      %1508 = vadd.xlane.f32.xlu0 %v1507
      %v1509 = vpop.xlane.xlu0 %1508
      %v1510 = vsel %vm1120, %v1506, 0.0
      %1511 = vadd.xlane.f32.xlu0 %v1510
      %v1512 = vpop.xlane.xlu0 %1511
      %v1513 = vrcp.pop 32.0
      %v1514 = vmul.f32 32.0, %v1513
      %v1515 = vsub.f32 1.0, %v1514
      %v1516 = vmul.f32 %v1513, %v1515
      %v1517 = vadd.f32 %v1513, %v1516
      %vm1518 = vweird.f32 %v1513
      %v1519 = vsel %vm1518, %v1513, %v1517
      %v1520 = vmul.f32 %v1509, %v1519
      %v1521 = vmul.f32 %v1512, %v1519
      %v1522 = vsub.f32 %v1505, %v1520
      %v1523 = vsub.f32 %v1506, %v1521
      %v1524 = vmul.f32 %v1522, %v1522
      %v1525 = vmul.f32 %v1523, %v1523
      %v1526 = vsel %vm1120, %v1524, 0.0
      %1527 = vadd.xlane.f32.xlu0 %v1526
      %v1528 = vpop.xlane.xlu0 %1527
      %v1529 = vsel %vm1120, %v1525, 0.0
      %1530 = vadd.xlane.f32.xlu0 %v1529
      %v1531 = vpop.xlane.xlu0 %1530
      %v1532 = vmul.f32 %v1528, %v1519
      %v1533 = vmul.f32 %v1531, %v1519
      %v1534 = vadd.f32 %v1532, 1e-05
      %v1535 = vadd.f32 %v1533, 1e-05
      %v1536 = vrsqrt.pop %v1534
      %v1537 = vmul.f32 %v1536, %v1534
      %v1538 = vmul.f32 %v1537, %v1536
      %v1539 = vmul.f32 0.5, %v1538
      %v1540 = vsub.f32 1.5, %v1539
      %v1541 = vmul.f32 %v1536, %v1540
      %vm1542 = vweird.f32 %v1534
      %vm1543 = vweird.f32 %v1536
      %vm1544 = vmor %vm1542, %vm1543
      %v1545 = vsel %vm1544, %v1536, %v1541
      %v1546 = vrsqrt.pop %v1535
      %v1547 = vmul.f32 %v1546, %v1535
      %v1548 = vmul.f32 %v1547, %v1546
      %v1549 = vmul.f32 0.5, %v1548
      %v1550 = vsub.f32 1.5, %v1549
      %v1551 = vmul.f32 %v1546, %v1550
      %vm1552 = vweird.f32 %v1535
      %vm1553 = vweird.f32 %v1546
      %vm1554 = vmor %vm1552, %vm1553
      %v1555 = vsel %vm1554, %v1546, %v1551
      %v1556 = vmul.f32 %v1522, %v1545
      %v1557 = vmul.f32 %v1523, %v1555
      %v1558 = vld [vmem:[%s21] sm:$0x1]
      %v1560 = vperm.slane %v1558, 0
      %v1562 = vmul.f32 %v1556, %v1560
      %v1563 = vmul.f32 %v1557, %v1560
      %v1564 = vld [vmem:[%s23] sm:$0x1]
      %v1566 = vperm.slane %v1564, 0
      %v1568 = vadd.f32 %v1562, %v1566
      %v1569 = vadd.f32 %v1563, %v1566
      %v1570 = vpack.c.bf16 %v1569, %v1568
      %v1571 = vld [vmem:[%s25] sm:$0xff]
      %v1572 = vld [vmem:[%s25 + $0x8] sm:$0xff]
      %v1573 = vld [vmem:[%s25 + $0x10] sm:$0xff]
      %v1574 = vld [vmem:[%s25 + $0x18] sm:$0xff]
      %v1575 = vld [vmem:[%s25 + $0x20] sm:$0xff]
      %v1576 = vld [vmem:[%s25 + $0x28] sm:$0xff]
      %v1577 = vld [vmem:[%s25 + $0x30] sm:$0xff]
      %v1578 = vld [vmem:[%s25 + $0x38] sm:$0xff]
      %v1579 = vld [vmem:[%s27] sm:$0xf]
      %v1581 = vperm.slane %v1579, 0
      %v1582 = vperm.slane %v1579, 1
      %v1583 = vperm.slane %v1579, 2
      %v1584 = vperm.slane %v1579, 3
      %v1597 = vunpack.c.l.b16 %v1571
      %v1598 = vunpack.c.h.b16 %v1571
      %v1599 = vunpack.c.l.b16 %v1572
      %v1600 = vunpack.c.h.b16 %v1572
      %v1601 = vunpack.c.l.b16 %v1573
      %v1602 = vunpack.c.h.b16 %v1573
      %v1603 = vunpack.c.l.b16 %v1574
      %v1604 = vunpack.c.h.b16 %v1574
      %v1605 = vunpack.c.l.b16 %v1575
      %v1606 = vunpack.c.h.b16 %v1575
      %v1607 = vunpack.c.l.b16 %v1576
      %v1608 = vunpack.c.h.b16 %v1576
      %v1609 = vunpack.c.l.b16 %v1577
      %v1610 = vunpack.c.h.b16 %v1577
      %v1611 = vunpack.c.l.b16 %v1578
      %v1612 = vunpack.c.h.b16 %v1578
      %v1613 = vpack.c.b16 %v1601, %v1597
      %v1614 = vpack.c.b16 %v1602, %v1598
      %v1615 = vpack.c.b16 %v1603, %v1599
      %v1616 = vpack.c.b16 %v1604, %v1600
      %v1617 = vpack.c.b16 %v1609, %v1605
      %v1618 = vpack.c.b16 %v1610, %v1606
      %v1619 = vpack.c.b16 %v1611, %v1607
      %v1620 = vpack.c.b16 %v1612, %v1608
      %v1630 = vsel %vm1120, %v1570, 0
      %1632 = vmatpush.bf16.msra.mxu0 0
      %1633 = vmatpush.bf16.msra.mxu0 0
      %1634 = vmatpush.bf16.msra.mxu0 0
      %1635 = vmatpush.bf16.msra.mxu0 0
      %1636 = vmatpush.bf16.msra.mxu0 0
      %1637 = vmatpush.bf16.msra.mxu0 0
      %1638 = vmatpush.bf16.msra.mxu0 %v1617
      %1639 = vmatpush.bf16.msra.mxu0 %v1613
      %1640 = vmatmul.bf16.gmra.mxu0 %v1630
      %v1641 = vpop.f32.mrf.mxu0
      %v1642 = vadd.f32 %v1581, %v1641
      %v1643 = vpop.f32.mrf.mxu0
      %v1644 = vadd.f32 %v1581, %v1643
      %1645 = vdwg.mxu0
      %1646 = vmatpush.bf16.msra.mxu0 0
      %1647 = vmatpush.bf16.msra.mxu0 0
      %1648 = vmatpush.bf16.msra.mxu0 0
      %1649 = vmatpush.bf16.msra.mxu0 0
      %1650 = vmatpush.bf16.msra.mxu0 0
      %1651 = vmatpush.bf16.msra.mxu0 0
      %1652 = vmatpush.bf16.msra.mxu0 %v1618
      %1653 = vmatpush.bf16.msra.mxu0 %v1614
      %1654 = vmatmul.bf16.gmra.mxu0 %v1630
      %v1655 = vpop.f32.mrf.mxu0
      %v1656 = vadd.f32 %v1582, %v1655
      %v1657 = vpop.f32.mrf.mxu0
      %v1658 = vadd.f32 %v1582, %v1657
      %1659 = vdwg.mxu0
      %1660 = vmatpush.bf16.msra.mxu0 0
      %1661 = vmatpush.bf16.msra.mxu0 0
      %1662 = vmatpush.bf16.msra.mxu0 0
      %1663 = vmatpush.bf16.msra.mxu0 0
      %1664 = vmatpush.bf16.msra.mxu0 0
      %1665 = vmatpush.bf16.msra.mxu0 0
      %1666 = vmatpush.bf16.msra.mxu0 %v1619
      %1667 = vmatpush.bf16.msra.mxu0 %v1615
      %1668 = vmatmul.bf16.gmra.mxu0 %v1630
      %v1669 = vpop.f32.mrf.mxu0
      %v1670 = vadd.f32 %v1583, %v1669
      %v1671 = vpop.f32.mrf.mxu0
      %v1672 = vadd.f32 %v1583, %v1671
      %1673 = vdwg.mxu0
      %1674 = vmatpush.bf16.msra.mxu0 0
      %1675 = vmatpush.bf16.msra.mxu0 0
      %1676 = vmatpush.bf16.msra.mxu0 0
      %1677 = vmatpush.bf16.msra.mxu0 0
      %1678 = vmatpush.bf16.msra.mxu0 0
      %1679 = vmatpush.bf16.msra.mxu0 0
      %1680 = vmatpush.bf16.msra.mxu0 %v1620
      %1681 = vmatpush.bf16.msra.mxu0 %v1616
      %1682 = vmatmul.bf16.gmra.mxu0 %v1630
      %v1683 = vpop.f32.mrf.mxu0
      %v1684 = vadd.f32 %v1584, %v1683
      %v1685 = vpop.f32.mrf.mxu0
      %v1686 = vadd.f32 %v1584, %v1685
      %1687 = vdwg.mxu0
      %v1688 = vmax.f32 %v1642, 0.0
      %v1689 = vmax.f32 %v1656, 0.0
      %v1690 = vmax.f32 %v1670, 0.0
      %v1691 = vmax.f32 %v1684, 0.0
      %v1692 = vmax.f32 %v1644, 0.0
      %v1693 = vmax.f32 %v1658, 0.0
      %v1694 = vmax.f32 %v1672, 0.0
      %v1695 = vmax.f32 %v1686, 0.0
      %v1696 = vpack.c.bf16 %v1692, %v1688
      %v1697 = vpack.c.bf16 %v1693, %v1689
      %v1698 = vpack.c.bf16 %v1694, %v1690
      %v1699 = vpack.c.bf16 %v1695, %v1691
      %v1700 = vld [vmem:[%s29] sm:$0xf]
      %v1701 = vld [vmem:[%s29 + $0x4] sm:$0xf]
      %v1702 = vld [vmem:[%s29 + $0x8] sm:$0xf]
      %v1703 = vld [vmem:[%s29 + $0xc] sm:$0xf]
      %v1704 = vld [vmem:[%s29 + $0x10] sm:$0xf]
      %v1705 = vld [vmem:[%s29 + $0x14] sm:$0xf]
      %v1706 = vld [vmem:[%s29 + $0x18] sm:$0xf]
      %v1707 = vld [vmem:[%s29 + $0x1c] sm:$0xf]
      %v1708 = vld [vmem:[%s29 + $0x20] sm:$0xf]
      %v1709 = vld [vmem:[%s29 + $0x24] sm:$0xf]
      %v1710 = vld [vmem:[%s29 + $0x28] sm:$0xf]
      %v1711 = vld [vmem:[%s29 + $0x2c] sm:$0xf]
      %v1712 = vld [vmem:[%s29 + $0x30] sm:$0xf]
      %v1713 = vld [vmem:[%s29 + $0x34] sm:$0xf]
      %v1714 = vld [vmem:[%s29 + $0x38] sm:$0xf]
      %v1715 = vld [vmem:[%s29 + $0x3c] sm:$0xf]
      %v1716 = vld [vmem:[%s29 + $0x40] sm:$0xf]
      %v1717 = vld [vmem:[%s29 + $0x44] sm:$0xf]
      %v1718 = vld [vmem:[%s29 + $0x48] sm:$0xf]
      %v1719 = vld [vmem:[%s29 + $0x4c] sm:$0xf]
      %v1720 = vld [vmem:[%s29 + $0x50] sm:$0xf]
      %v1721 = vld [vmem:[%s29 + $0x54] sm:$0xf]
      %v1722 = vld [vmem:[%s29 + $0x58] sm:$0xf]
      %v1723 = vld [vmem:[%s29 + $0x5c] sm:$0xf]
      %v1724 = vld [vmem:[%s29 + $0x60] sm:$0xf]
      %v1725 = vld [vmem:[%s29 + $0x64] sm:$0xf]
      %v1726 = vld [vmem:[%s29 + $0x68] sm:$0xf]
      %v1727 = vld [vmem:[%s29 + $0x6c] sm:$0xf]
      %v1728 = vld [vmem:[%s29 + $0x70] sm:$0xf]
      %v1729 = vld [vmem:[%s29 + $0x74] sm:$0xf]
      %v1730 = vld [vmem:[%s29 + $0x78] sm:$0xf]
      %v1731 = vld [vmem:[%s29 + $0x7c] sm:$0xf]
      %v1732 = vld [vmem:[%s29 + $0x80] sm:$0xf]
      %v1733 = vld [vmem:[%s29 + $0x84] sm:$0xf]
      %v1734 = vld [vmem:[%s29 + $0x88] sm:$0xf]
      %v1735 = vld [vmem:[%s29 + $0x8c] sm:$0xf]
      %v1736 = vld [vmem:[%s29 + $0x90] sm:$0xf]
      %v1737 = vld [vmem:[%s29 + $0x94] sm:$0xf]
      %v1738 = vld [vmem:[%s29 + $0x98] sm:$0xf]
      %v1739 = vld [vmem:[%s29 + $0x9c] sm:$0xf]
      %v1740 = vld [vmem:[%s29 + $0xa0] sm:$0xf]
      %v1741 = vld [vmem:[%s29 + $0xa4] sm:$0xf]
      %v1742 = vld [vmem:[%s29 + $0xa8] sm:$0xf]
      %v1743 = vld [vmem:[%s29 + $0xac] sm:$0xf]
      %v1744 = vld [vmem:[%s29 + $0xb0] sm:$0xf]
      %v1745 = vld [vmem:[%s29 + $0xb4] sm:$0xf]
      %v1746 = vld [vmem:[%s29 + $0xb8] sm:$0xf]
      %v1747 = vld [vmem:[%s29 + $0xbc] sm:$0xf]
      %v1748 = vld [vmem:[%s29 + $0xc0] sm:$0xf]
      %v1749 = vld [vmem:[%s29 + $0xc4] sm:$0xf]
      %v1750 = vld [vmem:[%s29 + $0xc8] sm:$0xf]
      %v1751 = vld [vmem:[%s29 + $0xcc] sm:$0xf]
      %v1752 = vld [vmem:[%s29 + $0xd0] sm:$0xf]
      %v1753 = vld [vmem:[%s29 + $0xd4] sm:$0xf]
      %v1754 = vld [vmem:[%s29 + $0xd8] sm:$0xf]
      %v1755 = vld [vmem:[%s29 + $0xdc] sm:$0xf]
      %v1756 = vld [vmem:[%s29 + $0xe0] sm:$0xf]
      %v1757 = vld [vmem:[%s29 + $0xe4] sm:$0xf]
      %v1758 = vld [vmem:[%s29 + $0xe8] sm:$0xf]
      %v1759 = vld [vmem:[%s29 + $0xec] sm:$0xf]
      %v1760 = vld [vmem:[%s29 + $0xf0] sm:$0xf]
      %v1761 = vld [vmem:[%s29 + $0xf4] sm:$0xf]
      %v1762 = vld [vmem:[%s29 + $0xf8] sm:$0xf]
      %v1763 = vld [vmem:[%s29 + $0xfc] sm:$0xf]
      %v1764 = vld [vmem:[%s31] sm:$0x1]
      %v1766 = vperm.slane %v1764, 0
      %v1832 = vunpack.c.l.b16 %v1700
      %v1833 = vunpack.c.l.b16 %v1701
      %v1834 = vunpack.c.l.b16 %v1702
      %v1835 = vunpack.c.l.b16 %v1703
      %v1836 = vunpack.c.l.b16 %v1704
      %v1837 = vunpack.c.l.b16 %v1705
      %v1838 = vunpack.c.l.b16 %v1706
      %v1839 = vunpack.c.l.b16 %v1707
      %v1840 = vunpack.c.l.b16 %v1708
      %v1841 = vunpack.c.l.b16 %v1709
      %v1842 = vunpack.c.l.b16 %v1710
      %v1843 = vunpack.c.l.b16 %v1711
      %v1844 = vunpack.c.l.b16 %v1712
      %v1845 = vunpack.c.l.b16 %v1713
      %v1846 = vunpack.c.l.b16 %v1714
      %v1847 = vunpack.c.l.b16 %v1715
      %v1848 = vunpack.c.l.b16 %v1716
      %v1849 = vunpack.c.l.b16 %v1717
      %v1850 = vunpack.c.l.b16 %v1718
      %v1851 = vunpack.c.l.b16 %v1719
      %v1852 = vunpack.c.l.b16 %v1720
      %v1853 = vunpack.c.l.b16 %v1721
      %v1854 = vunpack.c.l.b16 %v1722
      %v1855 = vunpack.c.l.b16 %v1723
      %v1856 = vunpack.c.l.b16 %v1724
      %v1857 = vunpack.c.l.b16 %v1725
      %v1858 = vunpack.c.l.b16 %v1726
      %v1859 = vunpack.c.l.b16 %v1727
      %v1860 = vunpack.c.l.b16 %v1728
      %v1861 = vunpack.c.l.b16 %v1729
      %v1862 = vunpack.c.l.b16 %v1730
      %v1863 = vunpack.c.l.b16 %v1731
      %v1864 = vunpack.c.l.b16 %v1732
      %v1865 = vunpack.c.l.b16 %v1733
      %v1866 = vunpack.c.l.b16 %v1734
      %v1867 = vunpack.c.l.b16 %v1735
      %v1868 = vunpack.c.l.b16 %v1736
      %v1869 = vunpack.c.l.b16 %v1737
      %v1870 = vunpack.c.l.b16 %v1738
      %v1871 = vunpack.c.l.b16 %v1739
      %v1872 = vunpack.c.l.b16 %v1740
      %v1873 = vunpack.c.l.b16 %v1741
      %v1874 = vunpack.c.l.b16 %v1742
      %v1875 = vunpack.c.l.b16 %v1743
      %v1876 = vunpack.c.l.b16 %v1744
      %v1877 = vunpack.c.l.b16 %v1745
      %v1878 = vunpack.c.l.b16 %v1746
      %v1879 = vunpack.c.l.b16 %v1747
      %v1880 = vunpack.c.l.b16 %v1748
      %v1881 = vunpack.c.l.b16 %v1749
      %v1882 = vunpack.c.l.b16 %v1750
      %v1883 = vunpack.c.l.b16 %v1751
      %v1884 = vunpack.c.l.b16 %v1752
      %v1885 = vunpack.c.l.b16 %v1753
      %v1886 = vunpack.c.l.b16 %v1754
      %v1887 = vunpack.c.l.b16 %v1755
      %v1888 = vunpack.c.l.b16 %v1756
      %v1889 = vunpack.c.l.b16 %v1757
      %v1890 = vunpack.c.l.b16 %v1758
      %v1891 = vunpack.c.l.b16 %v1759
      %v1892 = vunpack.c.l.b16 %v1760
      %v1893 = vunpack.c.l.b16 %v1761
      %v1894 = vunpack.c.l.b16 %v1762
      %v1895 = vunpack.c.l.b16 %v1763
      %v1896 = vpack.c.b16 %v1833, %v1832
      %v1897 = vpack.c.b16 %v1835, %v1834
      %v1898 = vpack.c.b16 %v1837, %v1836
      %v1899 = vpack.c.b16 %v1839, %v1838
      %v1900 = vpack.c.b16 %v1841, %v1840
      %v1901 = vpack.c.b16 %v1843, %v1842
      %v1902 = vpack.c.b16 %v1845, %v1844
      %v1903 = vpack.c.b16 %v1847, %v1846
      %v1904 = vpack.c.b16 %v1849, %v1848
      %v1905 = vpack.c.b16 %v1851, %v1850
      %v1906 = vpack.c.b16 %v1853, %v1852
      %v1907 = vpack.c.b16 %v1855, %v1854
      %v1908 = vpack.c.b16 %v1857, %v1856
      %v1909 = vpack.c.b16 %v1859, %v1858
      %v1910 = vpack.c.b16 %v1861, %v1860
      %v1911 = vpack.c.b16 %v1863, %v1862
      %v1912 = vpack.c.b16 %v1865, %v1864
      %v1913 = vpack.c.b16 %v1867, %v1866
      %v1914 = vpack.c.b16 %v1869, %v1868
      %v1915 = vpack.c.b16 %v1871, %v1870
      %v1916 = vpack.c.b16 %v1873, %v1872
      %v1917 = vpack.c.b16 %v1875, %v1874
      %v1918 = vpack.c.b16 %v1877, %v1876
      %v1919 = vpack.c.b16 %v1879, %v1878
      %v1920 = vpack.c.b16 %v1881, %v1880
      %v1921 = vpack.c.b16 %v1883, %v1882
      %v1922 = vpack.c.b16 %v1885, %v1884
      %v1923 = vpack.c.b16 %v1887, %v1886
      %v1924 = vpack.c.b16 %v1889, %v1888
      %v1925 = vpack.c.b16 %v1891, %v1890
      %v1926 = vpack.c.b16 %v1893, %v1892
      %v1927 = vpack.c.b16 %v1895, %v1894
      %1960 = vmatpush.bf16.msra.mxu0 %v1903
      %1961 = vmatpush.bf16.msra.mxu0 %v1902
      %1962 = vmatpush.bf16.msra.mxu0 %v1901
      %1963 = vmatpush.bf16.msra.mxu0 %v1900
      %1964 = vmatpush.bf16.msra.mxu0 %v1899
      %1965 = vmatpush.bf16.msra.mxu0 %v1898
      %1966 = vmatpush.bf16.msra.mxu0 %v1897
      %1967 = vmatpush.bf16.msra.mxu0 %v1896
      %1968 = vmatmul.bf16.gmra.mxu0 %v1696
      %v1969 = vpop.f32.mrf.mxu0
      %v1970 = vadd.f32 %v1766, %v1969
      %v1971 = vpop.f32.mrf.mxu0
      %v1972 = vadd.f32 %v1766, %v1971
      %1973 = vdwg.mxu0
      %1974 = vmatpush.bf16.msra.mxu0 %v1911
      %1975 = vmatpush.bf16.msra.mxu0 %v1910
      %1976 = vmatpush.bf16.msra.mxu0 %v1909
      %1977 = vmatpush.bf16.msra.mxu0 %v1908
      %1978 = vmatpush.bf16.msra.mxu0 %v1907
      %1979 = vmatpush.bf16.msra.mxu0 %v1906
      %1980 = vmatpush.bf16.msra.mxu0 %v1905
      %1981 = vmatpush.bf16.msra.mxu0 %v1904
      %1982 = vmatmul.bf16.gmra.mxu0 %v1697
      %v1983 = vpop.f32.mrf.mxu0
      %v1984 = vadd.f32 %v1970, %v1983
      %v1985 = vpop.f32.mrf.mxu0
      %v1986 = vadd.f32 %v1972, %v1985
      %1987 = vdwg.mxu0
      %1988 = vmatpush.bf16.msra.mxu0 %v1919
      %1989 = vmatpush.bf16.msra.mxu0 %v1918
      %1990 = vmatpush.bf16.msra.mxu0 %v1917
      %1991 = vmatpush.bf16.msra.mxu0 %v1916
      %1992 = vmatpush.bf16.msra.mxu0 %v1915
      %1993 = vmatpush.bf16.msra.mxu0 %v1914
      %1994 = vmatpush.bf16.msra.mxu0 %v1913
      %1995 = vmatpush.bf16.msra.mxu0 %v1912
      %1996 = vmatmul.bf16.gmra.mxu0 %v1698
      %v1997 = vpop.f32.mrf.mxu0
      %v1998 = vadd.f32 %v1984, %v1997
      %v1999 = vpop.f32.mrf.mxu0
      %v2000 = vadd.f32 %v1986, %v1999
      %2001 = vdwg.mxu0
      %2002 = vmatpush.bf16.msra.mxu0 %v1927
      %2003 = vmatpush.bf16.msra.mxu0 %v1926
      %2004 = vmatpush.bf16.msra.mxu0 %v1925
      %2005 = vmatpush.bf16.msra.mxu0 %v1924
      %2006 = vmatpush.bf16.msra.mxu0 %v1923
      %2007 = vmatpush.bf16.msra.mxu0 %v1922
      %2008 = vmatpush.bf16.msra.mxu0 %v1921
      %2009 = vmatpush.bf16.msra.mxu0 %v1920
      %2010 = vmatmul.bf16.gmra.mxu0 %v1699
      %v2011 = vpop.f32.mrf.mxu0
      %v2012 = vadd.f32 %v1998, %v2011
      %v2013 = vpop.f32.mrf.mxu0
      %v2014 = vadd.f32 %v2000, %v2013
      %2015 = vdwg.mxu0
      %v2016 = vadd.f32 %v1568, %v2012
      %v2017 = vadd.f32 %v1569, %v2014
      %v2018 = vsel %vm1120, %v2016, 0.0
      %2019 = vadd.xlane.f32.xlu0 %v2018
      %v2020 = vpop.xlane.xlu0 %2019
      %v2021 = vsel %vm1120, %v2017, 0.0
      %2022 = vadd.xlane.f32.xlu0 %v2021
      %v2023 = vpop.xlane.xlu0 %2022
      %v2024 = vmul.f32 %v2020, %v1519
      %v2025 = vmul.f32 %v2023, %v1519
      %v2026 = vsub.f32 %v2016, %v2024
      %v2027 = vsub.f32 %v2017, %v2025
      %v2028 = vmul.f32 %v2026, %v2026
      %v2029 = vmul.f32 %v2027, %v2027
      %v2030 = vsel %vm1120, %v2028, 0.0
      %2031 = vadd.xlane.f32.xlu0 %v2030
      %v2032 = vpop.xlane.xlu0 %2031
      %v2033 = vsel %vm1120, %v2029, 0.0
      %2034 = vadd.xlane.f32.xlu0 %v2033
      %v2035 = vpop.xlane.xlu0 %2034
      %v2036 = vmul.f32 %v2032, %v1519
      %v2037 = vmul.f32 %v2035, %v1519
      %v2038 = vadd.f32 %v2036, 1e-05
      %v2039 = vadd.f32 %v2037, 1e-05
      %v2040 = vrsqrt.pop %v2038
      %v2041 = vmul.f32 %v2040, %v2038
      %v2042 = vmul.f32 %v2041, %v2040
      %v2043 = vmul.f32 0.5, %v2042
      %v2044 = vsub.f32 1.5, %v2043
      %v2045 = vmul.f32 %v2040, %v2044
      %vm2046 = vweird.f32 %v2038
      %vm2047 = vweird.f32 %v2040
      %vm2048 = vmor %vm2046, %vm2047
      %v2049 = vsel %vm2048, %v2040, %v2045
      %v2050 = vrsqrt.pop %v2039
      %v2051 = vmul.f32 %v2050, %v2039
      %v2052 = vmul.f32 %v2051, %v2050
      %v2053 = vmul.f32 0.5, %v2052
      %v2054 = vsub.f32 1.5, %v2053
      %v2055 = vmul.f32 %v2050, %v2054
      %vm2056 = vweird.f32 %v2039
      %vm2057 = vweird.f32 %v2050
      %vm2058 = vmor %vm2056, %vm2057
      %v2059 = vsel %vm2058, %v2050, %v2055
      %v2060 = vmul.f32 %v2026, %v2049
      %v2061 = vmul.f32 %v2027, %v2059
      %v2062 = vld [vmem:[%s33] sm:$0x1]
      %v2064 = vperm.slane %v2062, 0
      %v2066 = vmul.f32 %v2060, %v2064
      %v2067 = vmul.f32 %v2061, %v2064
      %v2068 = vld [vmem:[%s35] sm:$0x1]
      %v2070 = vperm.slane %v2068, 0
      %v2072 = vadd.f32 %v2066, %v2070
      %v2073 = vadd.f32 %v2067, %v2070
      %v2074 = vpack.c.bf16 %v2073, %v2072
      %v2075 = vld [vmem:[%s37] sm:$0xf]
      %v2076 = vld [vmem:[%s37 + $0x4] sm:$0xf]
      %v2077 = vld [vmem:[%s37 + $0x8] sm:$0xf]
      %v2078 = vld [vmem:[%s37 + $0xc] sm:$0xf]
      %v2079 = vld [vmem:[%s39] sm:$0x1]
      %v2081 = vperm.slane %v2079, 0
      %v2087 = vunpack.c.l.b16 %v2075
      %v2088 = vunpack.c.l.b16 %v2076
      %v2089 = vunpack.c.l.b16 %v2077
      %v2090 = vunpack.c.l.b16 %v2078
      %v2091 = vpack.c.b16 %v2088, %v2087
      %v2092 = vpack.c.b16 %v2090, %v2089
      %v2096 = vsel %vm1120, %v2074, 0
      %2098 = vmatpush.bf16.msra.mxu0 0
      %2099 = vmatpush.bf16.msra.mxu0 0
      %2100 = vmatpush.bf16.msra.mxu0 0
      %2101 = vmatpush.bf16.msra.mxu0 0
      %2102 = vmatpush.bf16.msra.mxu0 0
      %2103 = vmatpush.bf16.msra.mxu0 0
      %2104 = vmatpush.bf16.msra.mxu0 %v2092
      %2105 = vmatpush.bf16.msra.mxu0 %v2091
      %2106 = vmatmul.bf16.gmra.mxu0 %v2096
      %v2107 = vpop.f32.mrf.mxu0
      %v2108 = vadd.f32 %v2081, %v2107
      %v2109 = vpop.f32.mrf.mxu0
      %v2110 = vadd.f32 %v2081, %v2109
      %2111 = vdwg.mxu0
      %v2112 = vpack.c.bf16 %v2108, %v2108
      %v2113 = vpack.c.bf16 %v2110, %v2110
      %v2116 = vunpack.c.l.b16 %v2112
      %v2117 = vunpack.c.l.b16 %v2113
      %v2118 = vpack.c.b16 %v2117, %v2116
      %2119 = vrot.lane.b32.xlu0 %v2118, 96
      %v2120 = vpop.permute.xlu0 %2119
      %v2122 = vsel %vm1147, %v2118, 0
      %v2125 = vsel %vm1147, %v2120, 0
      %2127 = vmatpush.bf16.xpose.msra.mxu0 0
      %2128 = vmatpush.bf16.xpose.msra.mxu0 0
      %2129 = vmatpush.bf16.xpose.msra.mxu0 0
      %2130 = vmatpush.bf16.xpose.msra.mxu0 0
      %2131 = vmatpush.bf16.xpose.msra.mxu0 0
      %2132 = vmatpush.bf16.xpose.msra.mxu0 0
      %2133 = vmatpush.bf16.xpose.msra.mxu0 0
      %2134 = vmatpush.bf16.xpose.msra.mxu0 %v2125
      %2135 = vmatmul.bf16.gmra.mxu0 %v2122
      %v2136 = vpop.f32.mrf.mxu0
      %v2137 = vadd.f32 0.0, %v2136
      %v2138 = vpop.f32.mrf.mxu0
      %v2139 = vadd.f32 0.0, %v2138
      %2140 = vdwg.mxu0
      %v2141 = vsel %vm1168, %v2137, -inf
      %2142 = vmax.xlane.f32.xlu0 %v2141
      %v2143 = vpop.xlane.xlu0 %2142
      %v2144 = vsel %vm1168, %v2139, -inf
      %2145 = vmax.xlane.f32.xlu0 %v2144
      %v2146 = vpop.xlane.xlu0 %2145
      %v2147 = vsub.f32 %v2137, %v2143
      %v2148 = vsub.f32 %v2139, %v2146
      %v2149 = vmul.f32 %v2147, 1.442695
      %v2150 = vpow.pop %v2149
      %v2151 = vmul.f32 %v2148, 1.442695
      %v2152 = vpow.pop %v2151
      %v2153 = vsel %vm1168, %v2150, 0.0
      %2154 = vadd.xlane.f32.xlu0 %v2153
      %v2155 = vpop.xlane.xlu0 %2154
      %v2156 = vsel %vm1168, %v2152, 0.0
      %2157 = vadd.xlane.f32.xlu0 %v2156
      %v2158 = vpop.xlane.xlu0 %2157
      %v2159 = vrcp.pop %v2155
      %v2160 = vrcp.pop %v2158
      %v2161 = vmul.f32 %v2150, %v2159
      %v2162 = vmul.f32 %v2152, %v2160
      %v2163 = vpack.c.bf16 %v2161, %v2161
      %v2164 = vpack.c.bf16 %v2162, %v2162
      %v2167 = vunpack.c.l.b16 %v2163
      %v2168 = vunpack.c.l.b16 %v2164
      %v2169 = vpack.c.b16 %v2168, %v2167
      %2170 = vrot.lane.b32.xlu0 %v2118, 64
      %v2171 = vpop.permute.xlu0 %2170
      %v2174 = vsel %vm1168, %v2169, 0
      %2176 = vmatpush.bf16.msra.mxu0 0
      %2177 = vmatpush.bf16.msra.mxu0 0
      %2178 = vmatpush.bf16.msra.mxu0 0
      %2179 = vmatpush.bf16.msra.mxu0 0
      %2180 = vmatpush.bf16.msra.mxu0 0
      %2181 = vmatpush.bf16.msra.mxu0 0
      %2182 = vmatpush.bf16.msra.mxu0 0
      %2183 = vmatpush.bf16.msra.mxu0 %v2171
      %2184 = vmatmul.bf16.gmra.mxu0 %v2174
      %v2185 = vpop.f32.mrf.mxu0
      %v2186 = vadd.f32 0.0, %v2185
      %v2187 = vpop.f32.mrf.mxu0
      %v2188 = vadd.f32 0.0, %v2187
      %2189 = vdwg.mxu0
      %2190 = vrot.lane.b32.xlu0 %v2118, 120
      %v2191 = vpop.permute.xlu0 %2190
      %2192 = vrot.lane.b32.xlu0 %v2118, 88
      %v2193 = vpop.permute.xlu0 %2192
      %v2195 = vsel %vm1147, %v2191, 0
      %v2198 = vsel %vm1147, %v2193, 0
      %2200 = vmatpush.bf16.xpose.msra.mxu0 0
      %2201 = vmatpush.bf16.xpose.msra.mxu0 0
      %2202 = vmatpush.bf16.xpose.msra.mxu0 0
      %2203 = vmatpush.bf16.xpose.msra.mxu0 0
      %2204 = vmatpush.bf16.xpose.msra.mxu0 0
      %2205 = vmatpush.bf16.xpose.msra.mxu0 0
      %2206 = vmatpush.bf16.xpose.msra.mxu0 0
      %2207 = vmatpush.bf16.xpose.msra.mxu0 %v2198
      %2208 = vmatmul.bf16.gmra.mxu0 %v2195
      %v2209 = vpop.f32.mrf.mxu0
      %v2210 = vadd.f32 0.0, %v2209
      %v2211 = vpop.f32.mrf.mxu0
      %v2212 = vadd.f32 0.0, %v2211
      %2213 = vdwg.mxu0
      %v2214 = vsel %vm1168, %v2210, -inf
      %2215 = vmax.xlane.f32.xlu0 %v2214
      %v2216 = vpop.xlane.xlu0 %2215
      %v2217 = vsel %vm1168, %v2212, -inf
      %2218 = vmax.xlane.f32.xlu0 %v2217
      %v2219 = vpop.xlane.xlu0 %2218
      %v2220 = vsub.f32 %v2210, %v2216
      %v2221 = vsub.f32 %v2212, %v2219
      %v2222 = vmul.f32 %v2220, 1.442695
      %v2223 = vpow.pop %v2222
      %v2224 = vmul.f32 %v2221, 1.442695
      %v2225 = vpow.pop %v2224
      %v2226 = vsel %vm1168, %v2223, 0.0
      %2227 = vadd.xlane.f32.xlu0 %v2226
      %v2228 = vpop.xlane.xlu0 %2227
      %v2229 = vsel %vm1168, %v2225, 0.0
      %2230 = vadd.xlane.f32.xlu0 %v2229
      %v2231 = vpop.xlane.xlu0 %2230
      %v2232 = vrcp.pop %v2228
      %v2233 = vrcp.pop %v2231
      %v2234 = vmul.f32 %v2223, %v2232
      %v2235 = vmul.f32 %v2225, %v2233
      %v2236 = vpack.c.bf16 %v2234, %v2234
      %v2237 = vpack.c.bf16 %v2235, %v2235
      %v2240 = vunpack.c.l.b16 %v2236
      %v2241 = vunpack.c.l.b16 %v2237
      %v2242 = vpack.c.b16 %v2241, %v2240
      %2243 = vrot.lane.b32.xlu0 %v2118, 56
      %v2244 = vpop.permute.xlu0 %2243
      %v2247 = vsel %vm1168, %v2242, 0
      %2249 = vmatpush.bf16.msra.mxu0 0
      %2250 = vmatpush.bf16.msra.mxu0 0
      %2251 = vmatpush.bf16.msra.mxu0 0
      %2252 = vmatpush.bf16.msra.mxu0 0
      %2253 = vmatpush.bf16.msra.mxu0 0
      %2254 = vmatpush.bf16.msra.mxu0 0
      %2255 = vmatpush.bf16.msra.mxu0 0
      %2256 = vmatpush.bf16.msra.mxu0 %v2244
      %2257 = vmatmul.bf16.gmra.mxu0 %v2247
      %v2258 = vpop.f32.mrf.mxu0
      %v2259 = vadd.f32 0.0, %v2258
      %v2260 = vpop.f32.mrf.mxu0
      %v2261 = vadd.f32 0.0, %v2260
      %2262 = vdwg.mxu0
      %2263 = vrot.lane.b32.xlu0 %v2118, 112
      %v2264 = vpop.permute.xlu0 %2263
      %2265 = vrot.lane.b32.xlu0 %v2118, 80
      %v2266 = vpop.permute.xlu0 %2265
      %v2268 = vsel %vm1147, %v2264, 0
      %v2271 = vsel %vm1147, %v2266, 0
      %2273 = vmatpush.bf16.xpose.msra.mxu0 0
      %2274 = vmatpush.bf16.xpose.msra.mxu0 0
      %2275 = vmatpush.bf16.xpose.msra.mxu0 0
      %2276 = vmatpush.bf16.xpose.msra.mxu0 0
      %2277 = vmatpush.bf16.xpose.msra.mxu0 0
      %2278 = vmatpush.bf16.xpose.msra.mxu0 0
      %2279 = vmatpush.bf16.xpose.msra.mxu0 0
      %2280 = vmatpush.bf16.xpose.msra.mxu0 %v2271
      %2281 = vmatmul.bf16.gmra.mxu0 %v2268
      %v2282 = vpop.f32.mrf.mxu0
      %v2283 = vadd.f32 0.0, %v2282
      %v2284 = vpop.f32.mrf.mxu0
      %v2285 = vadd.f32 0.0, %v2284
      %2286 = vdwg.mxu0
      %v2287 = vsel %vm1168, %v2283, -inf
      %2288 = vmax.xlane.f32.xlu0 %v2287
      %v2289 = vpop.xlane.xlu0 %2288
      %v2290 = vsel %vm1168, %v2285, -inf
      %2291 = vmax.xlane.f32.xlu0 %v2290
      %v2292 = vpop.xlane.xlu0 %2291
      %v2293 = vsub.f32 %v2283, %v2289
      %v2294 = vsub.f32 %v2285, %v2292
      %v2295 = vmul.f32 %v2293, 1.442695
      %v2296 = vpow.pop %v2295
      %v2297 = vmul.f32 %v2294, 1.442695
      %v2298 = vpow.pop %v2297
      %v2299 = vsel %vm1168, %v2296, 0.0
      %2300 = vadd.xlane.f32.xlu0 %v2299
      %v2301 = vpop.xlane.xlu0 %2300
      %v2302 = vsel %vm1168, %v2298, 0.0
      %2303 = vadd.xlane.f32.xlu0 %v2302
      %v2304 = vpop.xlane.xlu0 %2303
      %v2305 = vrcp.pop %v2301
      %v2306 = vrcp.pop %v2304
      %v2307 = vmul.f32 %v2296, %v2305
      %v2308 = vmul.f32 %v2298, %v2306
      %v2309 = vpack.c.bf16 %v2307, %v2307
      %v2310 = vpack.c.bf16 %v2308, %v2308
      %v2313 = vunpack.c.l.b16 %v2309
      %v2314 = vunpack.c.l.b16 %v2310
      %v2315 = vpack.c.b16 %v2314, %v2313
      %2316 = vrot.lane.b32.xlu0 %v2118, 48
      %v2317 = vpop.permute.xlu0 %2316
      %v2320 = vsel %vm1168, %v2315, 0
      %2322 = vmatpush.bf16.msra.mxu0 0
      %2323 = vmatpush.bf16.msra.mxu0 0
      %2324 = vmatpush.bf16.msra.mxu0 0
      %2325 = vmatpush.bf16.msra.mxu0 0
      %2326 = vmatpush.bf16.msra.mxu0 0
      %2327 = vmatpush.bf16.msra.mxu0 0
      %2328 = vmatpush.bf16.msra.mxu0 0
      %2329 = vmatpush.bf16.msra.mxu0 %v2317
      %2330 = vmatmul.bf16.gmra.mxu0 %v2320
      %v2331 = vpop.f32.mrf.mxu0
      %v2332 = vadd.f32 0.0, %v2331
      %v2333 = vpop.f32.mrf.mxu0
      %v2334 = vadd.f32 0.0, %v2333
      %2335 = vdwg.mxu0
      %2336 = vrot.lane.b32.xlu0 %v2118, 104
      %v2337 = vpop.permute.xlu0 %2336
      %2338 = vrot.lane.b32.xlu0 %v2118, 72
      %v2339 = vpop.permute.xlu0 %2338
      %v2341 = vsel %vm1147, %v2337, 0
      %v2344 = vsel %vm1147, %v2339, 0
      %2346 = vmatpush.bf16.xpose.msra.mxu0 0
      %2347 = vmatpush.bf16.xpose.msra.mxu0 0
      %2348 = vmatpush.bf16.xpose.msra.mxu0 0
      %2349 = vmatpush.bf16.xpose.msra.mxu0 0
      %2350 = vmatpush.bf16.xpose.msra.mxu0 0
      %2351 = vmatpush.bf16.xpose.msra.mxu0 0
      %2352 = vmatpush.bf16.xpose.msra.mxu0 0
      %2353 = vmatpush.bf16.xpose.msra.mxu0 %v2344
      %2354 = vmatmul.bf16.gmra.mxu0 %v2341
      %v2355 = vpop.f32.mrf.mxu0
      %v2356 = vadd.f32 0.0, %v2355
      %v2357 = vpop.f32.mrf.mxu0
      %v2358 = vadd.f32 0.0, %v2357
      %2359 = vdwg.mxu0
      %v2360 = vsel %vm1168, %v2356, -inf
      %2361 = vmax.xlane.f32.xlu0 %v2360
      %v2362 = vpop.xlane.xlu0 %2361
      %v2363 = vsel %vm1168, %v2358, -inf
      %2364 = vmax.xlane.f32.xlu0 %v2363
      %v2365 = vpop.xlane.xlu0 %2364
      %v2366 = vsub.f32 %v2356, %v2362
      %v2367 = vsub.f32 %v2358, %v2365
      %v2368 = vmul.f32 %v2366, 1.442695
      %v2369 = vpow.pop %v2368
      %v2370 = vmul.f32 %v2367, 1.442695
      %v2371 = vpow.pop %v2370
      %v2372 = vsel %vm1168, %v2369, 0.0
      %2373 = vadd.xlane.f32.xlu0 %v2372
      %v2374 = vpop.xlane.xlu0 %2373
      %v2375 = vsel %vm1168, %v2371, 0.0
      %2376 = vadd.xlane.f32.xlu0 %v2375
      %v2377 = vpop.xlane.xlu0 %2376
      %v2378 = vrcp.pop %v2374
      %v2379 = vrcp.pop %v2377
      %v2380 = vmul.f32 %v2369, %v2378
      %v2381 = vmul.f32 %v2371, %v2379
      %v2382 = vpack.c.bf16 %v2380, %v2380
      %v2383 = vpack.c.bf16 %v2381, %v2381
      %v2386 = vunpack.c.l.b16 %v2382
      %v2387 = vunpack.c.l.b16 %v2383
      %v2388 = vpack.c.b16 %v2387, %v2386
      %2389 = vrot.lane.b32.xlu0 %v2118, 40
      %v2390 = vpop.permute.xlu0 %2389
      %v2393 = vsel %vm1168, %v2388, 0
      %2395 = vmatpush.bf16.msra.mxu0 0
      %2396 = vmatpush.bf16.msra.mxu0 0
      %2397 = vmatpush.bf16.msra.mxu0 0
      %2398 = vmatpush.bf16.msra.mxu0 0
      %2399 = vmatpush.bf16.msra.mxu0 0
      %2400 = vmatpush.bf16.msra.mxu0 0
      %2401 = vmatpush.bf16.msra.mxu0 0
      %2402 = vmatpush.bf16.msra.mxu0 %v2390
      %2403 = vmatmul.bf16.gmra.mxu0 %v2393
      %v2404 = vpop.f32.mrf.mxu0
      %v2405 = vadd.f32 0.0, %v2404
      %v2406 = vpop.f32.mrf.mxu0
      %v2407 = vadd.f32 0.0, %v2406
      %2408 = vdwg.mxu0
      %2411 = vrot.lane.b32.xlu0 %v2259, 8
      %v2412 = vpop.permute.xlu0 %2411
      %2413 = vrot.lane.b32.xlu0 %v2261, 8
      %v2414 = vpop.permute.xlu0 %2413
      %2419 = vrot.lane.b32.xlu0 %v2332, 16
      %v2420 = vpop.permute.xlu0 %2419
      %2421 = vrot.lane.b32.xlu0 %v2334, 16
      %v2422 = vpop.permute.xlu0 %2421
      %2427 = vrot.lane.b32.xlu0 %v2405, 24
      %v2428 = vpop.permute.xlu0 %2427
      %2429 = vrot.lane.b32.xlu0 %v2407, 24
      %v2430 = vpop.permute.xlu0 %2429
      %v2433 = vsel %vm1147, %v2186, %v2412
      %v2434 = vsel %vm1147, %v2188, %v2414
      %v2435 = vsel %vm1168, %v2433, %v2420
      %v2436 = vsel %vm1168, %v2434, %v2422
      %v2437 = vsel %vm1077, %v2435, %v2428
      %v2438 = vsel %vm1077, %v2436, %v2430
      %v2439 = vpack.c.bf16 %v2438, %v2437
      %v2440 = vld [vmem:[%s41] sm:$0xf]
      %v2441 = vld [vmem:[%s41 + $0x4] sm:$0xf]
      %v2442 = vld [vmem:[%s41 + $0x8] sm:$0xf]
      %v2443 = vld [vmem:[%s41 + $0xc] sm:$0xf]
      %v2444 = vld [vmem:[%s43] sm:$0x1]
      %v2446 = vperm.slane %v2444, 0
      %v2452 = vunpack.c.l.b16 %v2440
      %v2453 = vunpack.c.l.b16 %v2441
      %v2454 = vunpack.c.l.b16 %v2442
      %v2455 = vunpack.c.l.b16 %v2443
      %v2456 = vpack.c.b16 %v2453, %v2452
      %v2457 = vpack.c.b16 %v2455, %v2454
      %v2461 = vsel %vm1120, %v2439, 0
      %2463 = vmatpush.bf16.msra.mxu0 0
      %2464 = vmatpush.bf16.msra.mxu0 0
      %2465 = vmatpush.bf16.msra.mxu0 0
      %2466 = vmatpush.bf16.msra.mxu0 0
      %2467 = vmatpush.bf16.msra.mxu0 0
      %2468 = vmatpush.bf16.msra.mxu0 0
      %2469 = vmatpush.bf16.msra.mxu0 %v2457
      %2470 = vmatpush.bf16.msra.mxu0 %v2456
      %2471 = vmatmul.bf16.gmra.mxu0 %v2461
      %v2472 = vpop.f32.mrf.mxu0
      %v2473 = vadd.f32 %v2446, %v2472
      %v2474 = vpop.f32.mrf.mxu0
      %v2475 = vadd.f32 %v2446, %v2474
      %2476 = vdwg.mxu0
      %v2477 = vadd.f32 %v2072, %v2473
      %v2478 = vadd.f32 %v2073, %v2475
      %v2479 = vsel %vm1120, %v2477, 0.0
      %2480 = vadd.xlane.f32.xlu0 %v2479
      %v2481 = vpop.xlane.xlu0 %2480
      %v2482 = vsel %vm1120, %v2478, 0.0
      %2483 = vadd.xlane.f32.xlu0 %v2482
      %v2484 = vpop.xlane.xlu0 %2483
      %v2485 = vmul.f32 %v2481, %v1519
      %v2486 = vmul.f32 %v2484, %v1519
      %v2487 = vsub.f32 %v2477, %v2485
      %v2488 = vsub.f32 %v2478, %v2486
      %v2489 = vmul.f32 %v2487, %v2487
      %v2490 = vmul.f32 %v2488, %v2488
      %v2491 = vsel %vm1120, %v2489, 0.0
      %2492 = vadd.xlane.f32.xlu0 %v2491
      %v2493 = vpop.xlane.xlu0 %2492
      %v2494 = vsel %vm1120, %v2490, 0.0
      %2495 = vadd.xlane.f32.xlu0 %v2494
      %v2496 = vpop.xlane.xlu0 %2495
      %v2497 = vmul.f32 %v2493, %v1519
      %v2498 = vmul.f32 %v2496, %v1519
      %v2499 = vadd.f32 %v2497, 1e-05
      %v2500 = vadd.f32 %v2498, 1e-05
      %v2501 = vrsqrt.pop %v2499
      %v2502 = vmul.f32 %v2501, %v2499
      %v2503 = vmul.f32 %v2502, %v2501
      %v2504 = vmul.f32 0.5, %v2503
      %v2505 = vsub.f32 1.5, %v2504
      %v2506 = vmul.f32 %v2501, %v2505
      %vm2507 = vweird.f32 %v2499
      %vm2508 = vweird.f32 %v2501
      %vm2509 = vmor %vm2507, %vm2508
      %v2510 = vsel %vm2509, %v2501, %v2506
      %v2511 = vrsqrt.pop %v2500
      %v2512 = vmul.f32 %v2511, %v2500
      %v2513 = vmul.f32 %v2512, %v2511
      %v2514 = vmul.f32 0.5, %v2513
      %v2515 = vsub.f32 1.5, %v2514
      %v2516 = vmul.f32 %v2511, %v2515
      %vm2517 = vweird.f32 %v2500
      %vm2518 = vweird.f32 %v2511
      %vm2519 = vmor %vm2517, %vm2518
      %v2520 = vsel %vm2519, %v2511, %v2516
      %v2521 = vmul.f32 %v2487, %v2510
      %v2522 = vmul.f32 %v2488, %v2520
      %v2523 = vld [vmem:[%s45] sm:$0x1]
      %v2525 = vperm.slane %v2523, 0
      %v2527 = vmul.f32 %v2521, %v2525
      %v2528 = vmul.f32 %v2522, %v2525
      %v2529 = vld [vmem:[%s47] sm:$0x1]
      %v2531 = vperm.slane %v2529, 0
      %v2533 = vadd.f32 %v2527, %v2531
      %v2534 = vadd.f32 %v2528, %v2531
      %v2535 = vpack.c.bf16 %v2534, %v2533
      %v2536 = vld [vmem:[%s49] sm:$0xff]
      %v2537 = vld [vmem:[%s49 + $0x8] sm:$0xff]
      %v2538 = vld [vmem:[%s49 + $0x10] sm:$0xff]
      %v2539 = vld [vmem:[%s49 + $0x18] sm:$0xff]
      %v2540 = vld [vmem:[%s49 + $0x20] sm:$0xff]
      %v2541 = vld [vmem:[%s49 + $0x28] sm:$0xff]
      %v2542 = vld [vmem:[%s49 + $0x30] sm:$0xff]
      %v2543 = vld [vmem:[%s49 + $0x38] sm:$0xff]
      %v2544 = vld [vmem:[%s51] sm:$0xf]
      %v2546 = vperm.slane %v2544, 0
      %v2547 = vperm.slane %v2544, 1
      %v2548 = vperm.slane %v2544, 2
      %v2549 = vperm.slane %v2544, 3
      %v2562 = vunpack.c.l.b16 %v2536
      %v2563 = vunpack.c.h.b16 %v2536
      %v2564 = vunpack.c.l.b16 %v2537
      %v2565 = vunpack.c.h.b16 %v2537
      %v2566 = vunpack.c.l.b16 %v2538
      %v2567 = vunpack.c.h.b16 %v2538
      %v2568 = vunpack.c.l.b16 %v2539
      %v2569 = vunpack.c.h.b16 %v2539
      %v2570 = vunpack.c.l.b16 %v2540
      %v2571 = vunpack.c.h.b16 %v2540
      %v2572 = vunpack.c.l.b16 %v2541
      %v2573 = vunpack.c.h.b16 %v2541
      %v2574 = vunpack.c.l.b16 %v2542
      %v2575 = vunpack.c.h.b16 %v2542
      %v2576 = vunpack.c.l.b16 %v2543
      %v2577 = vunpack.c.h.b16 %v2543
      %v2578 = vpack.c.b16 %v2566, %v2562
      %v2579 = vpack.c.b16 %v2567, %v2563
      %v2580 = vpack.c.b16 %v2568, %v2564
      %v2581 = vpack.c.b16 %v2569, %v2565
      %v2582 = vpack.c.b16 %v2574, %v2570
      %v2583 = vpack.c.b16 %v2575, %v2571
      %v2584 = vpack.c.b16 %v2576, %v2572
      %v2585 = vpack.c.b16 %v2577, %v2573
      %v2595 = vsel %vm1120, %v2535, 0
      %2597 = vmatpush.bf16.msra.mxu0 0
      %2598 = vmatpush.bf16.msra.mxu0 0
      %2599 = vmatpush.bf16.msra.mxu0 0
      %2600 = vmatpush.bf16.msra.mxu0 0
      %2601 = vmatpush.bf16.msra.mxu0 0
      %2602 = vmatpush.bf16.msra.mxu0 0
      %2603 = vmatpush.bf16.msra.mxu0 %v2582
      %2604 = vmatpush.bf16.msra.mxu0 %v2578
      %2605 = vmatmul.bf16.gmra.mxu0 %v2595
      %v2606 = vpop.f32.mrf.mxu0
      %v2607 = vadd.f32 %v2546, %v2606
      %v2608 = vpop.f32.mrf.mxu0
      %v2609 = vadd.f32 %v2546, %v2608
      %2610 = vdwg.mxu0
      %2611 = vmatpush.bf16.msra.mxu0 0
      %2612 = vmatpush.bf16.msra.mxu0 0
      %2613 = vmatpush.bf16.msra.mxu0 0
      %2614 = vmatpush.bf16.msra.mxu0 0
      %2615 = vmatpush.bf16.msra.mxu0 0
      %2616 = vmatpush.bf16.msra.mxu0 0
      %2617 = vmatpush.bf16.msra.mxu0 %v2583
      %2618 = vmatpush.bf16.msra.mxu0 %v2579
      %2619 = vmatmul.bf16.gmra.mxu0 %v2595
      %v2620 = vpop.f32.mrf.mxu0
      %v2621 = vadd.f32 %v2547, %v2620
      %v2622 = vpop.f32.mrf.mxu0
      %v2623 = vadd.f32 %v2547, %v2622
      %2624 = vdwg.mxu0
      %2625 = vmatpush.bf16.msra.mxu0 0
      %2626 = vmatpush.bf16.msra.mxu0 0
      %2627 = vmatpush.bf16.msra.mxu0 0
      %2628 = vmatpush.bf16.msra.mxu0 0
      %2629 = vmatpush.bf16.msra.mxu0 0
      %2630 = vmatpush.bf16.msra.mxu0 0
      %2631 = vmatpush.bf16.msra.mxu0 %v2584
      %2632 = vmatpush.bf16.msra.mxu0 %v2580
      %2633 = vmatmul.bf16.gmra.mxu0 %v2595
      %v2634 = vpop.f32.mrf.mxu0
      %v2635 = vadd.f32 %v2548, %v2634
      %v2636 = vpop.f32.mrf.mxu0
      %v2637 = vadd.f32 %v2548, %v2636
      %2638 = vdwg.mxu0
      %2639 = vmatpush.bf16.msra.mxu0 0
      %2640 = vmatpush.bf16.msra.mxu0 0
      %2641 = vmatpush.bf16.msra.mxu0 0
      %2642 = vmatpush.bf16.msra.mxu0 0
      %2643 = vmatpush.bf16.msra.mxu0 0
      %2644 = vmatpush.bf16.msra.mxu0 0
      %2645 = vmatpush.bf16.msra.mxu0 %v2585
      %2646 = vmatpush.bf16.msra.mxu0 %v2581
      %2647 = vmatmul.bf16.gmra.mxu0 %v2595
      %v2648 = vpop.f32.mrf.mxu0
      %v2649 = vadd.f32 %v2549, %v2648
      %v2650 = vpop.f32.mrf.mxu0
      %v2651 = vadd.f32 %v2549, %v2650
      %2652 = vdwg.mxu0
      %v2653 = vmax.f32 %v2607, 0.0
      %v2654 = vmax.f32 %v2621, 0.0
      %v2655 = vmax.f32 %v2635, 0.0
      %v2656 = vmax.f32 %v2649, 0.0
      %v2657 = vmax.f32 %v2609, 0.0
      %v2658 = vmax.f32 %v2623, 0.0
      %v2659 = vmax.f32 %v2637, 0.0
      %v2660 = vmax.f32 %v2651, 0.0
      %v2661 = vpack.c.bf16 %v2657, %v2653
      %v2662 = vpack.c.bf16 %v2658, %v2654
      %v2663 = vpack.c.bf16 %v2659, %v2655
      %v2664 = vpack.c.bf16 %v2660, %v2656
      %v2665 = vld [vmem:[%s53] sm:$0xf]
      %v2666 = vld [vmem:[%s53 + $0x4] sm:$0xf]
      %v2667 = vld [vmem:[%s53 + $0x8] sm:$0xf]
      %v2668 = vld [vmem:[%s53 + $0xc] sm:$0xf]
      %v2669 = vld [vmem:[%s53 + $0x10] sm:$0xf]
      %v2670 = vld [vmem:[%s53 + $0x14] sm:$0xf]
      %v2671 = vld [vmem:[%s53 + $0x18] sm:$0xf]
      %v2672 = vld [vmem:[%s53 + $0x1c] sm:$0xf]
      %v2673 = vld [vmem:[%s53 + $0x20] sm:$0xf]
      %v2674 = vld [vmem:[%s53 + $0x24] sm:$0xf]
      %v2675 = vld [vmem:[%s53 + $0x28] sm:$0xf]
      %v2676 = vld [vmem:[%s53 + $0x2c] sm:$0xf]
      %v2677 = vld [vmem:[%s53 + $0x30] sm:$0xf]
      %v2678 = vld [vmem:[%s53 + $0x34] sm:$0xf]
      %v2679 = vld [vmem:[%s53 + $0x38] sm:$0xf]
      %v2680 = vld [vmem:[%s53 + $0x3c] sm:$0xf]
      %v2681 = vld [vmem:[%s53 + $0x40] sm:$0xf]
      %v2682 = vld [vmem:[%s53 + $0x44] sm:$0xf]
      %v2683 = vld [vmem:[%s53 + $0x48] sm:$0xf]
      %v2684 = vld [vmem:[%s53 + $0x4c] sm:$0xf]
      %v2685 = vld [vmem:[%s53 + $0x50] sm:$0xf]
      %v2686 = vld [vmem:[%s53 + $0x54] sm:$0xf]
      %v2687 = vld [vmem:[%s53 + $0x58] sm:$0xf]
      %v2688 = vld [vmem:[%s53 + $0x5c] sm:$0xf]
      %v2689 = vld [vmem:[%s53 + $0x60] sm:$0xf]
      %v2690 = vld [vmem:[%s53 + $0x64] sm:$0xf]
      %v2691 = vld [vmem:[%s53 + $0x68] sm:$0xf]
      %v2692 = vld [vmem:[%s53 + $0x6c] sm:$0xf]
      %v2693 = vld [vmem:[%s53 + $0x70] sm:$0xf]
      %v2694 = vld [vmem:[%s53 + $0x74] sm:$0xf]
      %v2695 = vld [vmem:[%s53 + $0x78] sm:$0xf]
      %v2696 = vld [vmem:[%s53 + $0x7c] sm:$0xf]
      %v2697 = vld [vmem:[%s53 + $0x80] sm:$0xf]
      %v2698 = vld [vmem:[%s53 + $0x84] sm:$0xf]
      %v2699 = vld [vmem:[%s53 + $0x88] sm:$0xf]
      %v2700 = vld [vmem:[%s53 + $0x8c] sm:$0xf]
      %v2701 = vld [vmem:[%s53 + $0x90] sm:$0xf]
      %v2702 = vld [vmem:[%s53 + $0x94] sm:$0xf]
      %v2703 = vld [vmem:[%s53 + $0x98] sm:$0xf]
      %v2704 = vld [vmem:[%s53 + $0x9c] sm:$0xf]
      %v2705 = vld [vmem:[%s53 + $0xa0] sm:$0xf]
      %v2706 = vld [vmem:[%s53 + $0xa4] sm:$0xf]
      %v2707 = vld [vmem:[%s53 + $0xa8] sm:$0xf]
      %v2708 = vld [vmem:[%s53 + $0xac] sm:$0xf]
      %v2709 = vld [vmem:[%s53 + $0xb0] sm:$0xf]
      %v2710 = vld [vmem:[%s53 + $0xb4] sm:$0xf]
      %v2711 = vld [vmem:[%s53 + $0xb8] sm:$0xf]
      %v2712 = vld [vmem:[%s53 + $0xbc] sm:$0xf]
      %v2713 = vld [vmem:[%s53 + $0xc0] sm:$0xf]
      %v2714 = vld [vmem:[%s53 + $0xc4] sm:$0xf]
      %v2715 = vld [vmem:[%s53 + $0xc8] sm:$0xf]
      %v2716 = vld [vmem:[%s53 + $0xcc] sm:$0xf]
      %v2717 = vld [vmem:[%s53 + $0xd0] sm:$0xf]
      %v2718 = vld [vmem:[%s53 + $0xd4] sm:$0xf]
      %v2719 = vld [vmem:[%s53 + $0xd8] sm:$0xf]
      %v2720 = vld [vmem:[%s53 + $0xdc] sm:$0xf]
      %v2721 = vld [vmem:[%s53 + $0xe0] sm:$0xf]
      %v2722 = vld [vmem:[%s53 + $0xe4] sm:$0xf]
      %v2723 = vld [vmem:[%s53 + $0xe8] sm:$0xf]
      %v2724 = vld [vmem:[%s53 + $0xec] sm:$0xf]
      %v2725 = vld [vmem:[%s53 + $0xf0] sm:$0xf]
      %v2726 = vld [vmem:[%s53 + $0xf4] sm:$0xf]
      %v2727 = vld [vmem:[%s53 + $0xf8] sm:$0xf]
      %v2728 = vld [vmem:[%s53 + $0xfc] sm:$0xf]
      %v2729 = vld [vmem:[%s55] sm:$0x1]
      %v2731 = vperm.slane %v2729, 0
      %v2797 = vunpack.c.l.b16 %v2665
      %v2798 = vunpack.c.l.b16 %v2666
      %v2799 = vunpack.c.l.b16 %v2667
      %v2800 = vunpack.c.l.b16 %v2668
      %v2801 = vunpack.c.l.b16 %v2669
      %v2802 = vunpack.c.l.b16 %v2670
      %v2803 = vunpack.c.l.b16 %v2671
      %v2804 = vunpack.c.l.b16 %v2672
      %v2805 = vunpack.c.l.b16 %v2673
      %v2806 = vunpack.c.l.b16 %v2674
      %v2807 = vunpack.c.l.b16 %v2675
      %v2808 = vunpack.c.l.b16 %v2676
      %v2809 = vunpack.c.l.b16 %v2677
      %v2810 = vunpack.c.l.b16 %v2678
      %v2811 = vunpack.c.l.b16 %v2679
      %v2812 = vunpack.c.l.b16 %v2680
      %v2813 = vunpack.c.l.b16 %v2681
      %v2814 = vunpack.c.l.b16 %v2682
      %v2815 = vunpack.c.l.b16 %v2683
      %v2816 = vunpack.c.l.b16 %v2684
      %v2817 = vunpack.c.l.b16 %v2685
      %v2818 = vunpack.c.l.b16 %v2686
      %v2819 = vunpack.c.l.b16 %v2687
      %v2820 = vunpack.c.l.b16 %v2688
      %v2821 = vunpack.c.l.b16 %v2689
      %v2822 = vunpack.c.l.b16 %v2690
      %v2823 = vunpack.c.l.b16 %v2691
      %v2824 = vunpack.c.l.b16 %v2692
      %v2825 = vunpack.c.l.b16 %v2693
      %v2826 = vunpack.c.l.b16 %v2694
      %v2827 = vunpack.c.l.b16 %v2695
      %v2828 = vunpack.c.l.b16 %v2696
      %v2829 = vunpack.c.l.b16 %v2697
      %v2830 = vunpack.c.l.b16 %v2698
      %v2831 = vunpack.c.l.b16 %v2699
      %v2832 = vunpack.c.l.b16 %v2700
      %v2833 = vunpack.c.l.b16 %v2701
      %v2834 = vunpack.c.l.b16 %v2702
      %v2835 = vunpack.c.l.b16 %v2703
      %v2836 = vunpack.c.l.b16 %v2704
      %v2837 = vunpack.c.l.b16 %v2705
      %v2838 = vunpack.c.l.b16 %v2706
      %v2839 = vunpack.c.l.b16 %v2707
      %v2840 = vunpack.c.l.b16 %v2708
      %v2841 = vunpack.c.l.b16 %v2709
      %v2842 = vunpack.c.l.b16 %v2710
      %v2843 = vunpack.c.l.b16 %v2711
      %v2844 = vunpack.c.l.b16 %v2712
      %v2845 = vunpack.c.l.b16 %v2713
      %v2846 = vunpack.c.l.b16 %v2714
      %v2847 = vunpack.c.l.b16 %v2715
      %v2848 = vunpack.c.l.b16 %v2716
      %v2849 = vunpack.c.l.b16 %v2717
      %v2850 = vunpack.c.l.b16 %v2718
      %v2851 = vunpack.c.l.b16 %v2719
      %v2852 = vunpack.c.l.b16 %v2720
      %v2853 = vunpack.c.l.b16 %v2721
      %v2854 = vunpack.c.l.b16 %v2722
      %v2855 = vunpack.c.l.b16 %v2723
      %v2856 = vunpack.c.l.b16 %v2724
      %v2857 = vunpack.c.l.b16 %v2725
      %v2858 = vunpack.c.l.b16 %v2726
      %v2859 = vunpack.c.l.b16 %v2727
      %v2860 = vunpack.c.l.b16 %v2728
      %v2861 = vpack.c.b16 %v2798, %v2797
      %v2862 = vpack.c.b16 %v2800, %v2799
      %v2863 = vpack.c.b16 %v2802, %v2801
      %v2864 = vpack.c.b16 %v2804, %v2803
      %v2865 = vpack.c.b16 %v2806, %v2805
      %v2866 = vpack.c.b16 %v2808, %v2807
      %v2867 = vpack.c.b16 %v2810, %v2809
      %v2868 = vpack.c.b16 %v2812, %v2811
      %v2869 = vpack.c.b16 %v2814, %v2813
      %v2870 = vpack.c.b16 %v2816, %v2815
      %v2871 = vpack.c.b16 %v2818, %v2817
      %v2872 = vpack.c.b16 %v2820, %v2819
      %v2873 = vpack.c.b16 %v2822, %v2821
      %v2874 = vpack.c.b16 %v2824, %v2823
      %v2875 = vpack.c.b16 %v2826, %v2825
      %v2876 = vpack.c.b16 %v2828, %v2827
      %v2877 = vpack.c.b16 %v2830, %v2829
      %v2878 = vpack.c.b16 %v2832, %v2831
      %v2879 = vpack.c.b16 %v2834, %v2833
      %v2880 = vpack.c.b16 %v2836, %v2835
      %v2881 = vpack.c.b16 %v2838, %v2837
      %v2882 = vpack.c.b16 %v2840, %v2839
      %v2883 = vpack.c.b16 %v2842, %v2841
      %v2884 = vpack.c.b16 %v2844, %v2843
      %v2885 = vpack.c.b16 %v2846, %v2845
      %v2886 = vpack.c.b16 %v2848, %v2847
      %v2887 = vpack.c.b16 %v2850, %v2849
      %v2888 = vpack.c.b16 %v2852, %v2851
      %v2889 = vpack.c.b16 %v2854, %v2853
      %v2890 = vpack.c.b16 %v2856, %v2855
      %v2891 = vpack.c.b16 %v2858, %v2857
      %v2892 = vpack.c.b16 %v2860, %v2859
      %2925 = vmatpush.bf16.msra.mxu0 %v2868
      %2926 = vmatpush.bf16.msra.mxu0 %v2867
      %2927 = vmatpush.bf16.msra.mxu0 %v2866
      %2928 = vmatpush.bf16.msra.mxu0 %v2865
      %2929 = vmatpush.bf16.msra.mxu0 %v2864
      %2930 = vmatpush.bf16.msra.mxu0 %v2863
      %2931 = vmatpush.bf16.msra.mxu0 %v2862
      %2932 = vmatpush.bf16.msra.mxu0 %v2861
      %2933 = vmatmul.bf16.gmra.mxu0 %v2661
      %v2934 = vpop.f32.mrf.mxu0
      %v2935 = vadd.f32 %v2731, %v2934
      %v2936 = vpop.f32.mrf.mxu0
      %v2937 = vadd.f32 %v2731, %v2936
      %2938 = vdwg.mxu0
      %2939 = vmatpush.bf16.msra.mxu0 %v2876
      %2940 = vmatpush.bf16.msra.mxu0 %v2875
      %2941 = vmatpush.bf16.msra.mxu0 %v2874
      %2942 = vmatpush.bf16.msra.mxu0 %v2873
      %2943 = vmatpush.bf16.msra.mxu0 %v2872
      %2944 = vmatpush.bf16.msra.mxu0 %v2871
      %2945 = vmatpush.bf16.msra.mxu0 %v2870
      %2946 = vmatpush.bf16.msra.mxu0 %v2869
      %2947 = vmatmul.bf16.gmra.mxu0 %v2662
      %v2948 = vpop.f32.mrf.mxu0
      %v2949 = vadd.f32 %v2935, %v2948
      %v2950 = vpop.f32.mrf.mxu0
      %v2951 = vadd.f32 %v2937, %v2950
      %2952 = vdwg.mxu0
      %2953 = vmatpush.bf16.msra.mxu0 %v2884
      %2954 = vmatpush.bf16.msra.mxu0 %v2883
      %2955 = vmatpush.bf16.msra.mxu0 %v2882
      %2956 = vmatpush.bf16.msra.mxu0 %v2881
      %2957 = vmatpush.bf16.msra.mxu0 %v2880
      %2958 = vmatpush.bf16.msra.mxu0 %v2879
      %2959 = vmatpush.bf16.msra.mxu0 %v2878
      %2960 = vmatpush.bf16.msra.mxu0 %v2877
      %2961 = vmatmul.bf16.gmra.mxu0 %v2663
      %v2962 = vpop.f32.mrf.mxu0
      %v2963 = vadd.f32 %v2949, %v2962
      %v2964 = vpop.f32.mrf.mxu0
      %v2965 = vadd.f32 %v2951, %v2964
      %2966 = vdwg.mxu0
      %2967 = vmatpush.bf16.msra.mxu0 %v2892
      %2968 = vmatpush.bf16.msra.mxu0 %v2891
      %2969 = vmatpush.bf16.msra.mxu0 %v2890
      %2970 = vmatpush.bf16.msra.mxu0 %v2889
      %2971 = vmatpush.bf16.msra.mxu0 %v2888
      %2972 = vmatpush.bf16.msra.mxu0 %v2887
      %2973 = vmatpush.bf16.msra.mxu0 %v2886
      %2974 = vmatpush.bf16.msra.mxu0 %v2885
      %2975 = vmatmul.bf16.gmra.mxu0 %v2664
      %v2976 = vpop.f32.mrf.mxu0
      %v2977 = vadd.f32 %v2963, %v2976
      %v2978 = vpop.f32.mrf.mxu0
      %v2979 = vadd.f32 %v2965, %v2978
      %2980 = vdwg.mxu0
      %v2981 = vadd.f32 %v2533, %v2977
      %v2982 = vadd.f32 %v2534, %v2979
      %v2983 = vsel %vm1120, %v2981, 0.0
      %2984 = vadd.xlane.f32.xlu0 %v2983
      %v2985 = vpop.xlane.xlu0 %2984
      %v2986 = vsel %vm1120, %v2982, 0.0
      %2987 = vadd.xlane.f32.xlu0 %v2986
      %v2988 = vpop.xlane.xlu0 %2987
      %v2989 = vmul.f32 %v2985, %v1519
      %v2990 = vmul.f32 %v2988, %v1519
      %v2991 = vsub.f32 %v2981, %v2989
      %v2992 = vsub.f32 %v2982, %v2990
      %v2993 = vmul.f32 %v2991, %v2991
      %v2994 = vmul.f32 %v2992, %v2992
      %v2995 = vsel %vm1120, %v2993, 0.0
      %2996 = vadd.xlane.f32.xlu0 %v2995
      %v2997 = vpop.xlane.xlu0 %2996
      %v2998 = vsel %vm1120, %v2994, 0.0
      %2999 = vadd.xlane.f32.xlu0 %v2998
      %v3000 = vpop.xlane.xlu0 %2999
      %v3001 = vmul.f32 %v2997, %v1519
      %v3002 = vmul.f32 %v3000, %v1519
      %v3003 = vadd.f32 %v3001, 1e-05
      %v3004 = vadd.f32 %v3002, 1e-05
      %v3005 = vrsqrt.pop %v3003
      %v3006 = vmul.f32 %v3005, %v3003
      %v3007 = vmul.f32 %v3006, %v3005
      %v3008 = vmul.f32 0.5, %v3007
      %v3009 = vsub.f32 1.5, %v3008
      %v3010 = vmul.f32 %v3005, %v3009
      %vm3011 = vweird.f32 %v3003
      %vm3012 = vweird.f32 %v3005
      %vm3013 = vmor %vm3011, %vm3012
      %v3014 = vsel %vm3013, %v3005, %v3010
      %v3015 = vrsqrt.pop %v3004
      %v3016 = vmul.f32 %v3015, %v3004
      %v3017 = vmul.f32 %v3016, %v3015
      %v3018 = vmul.f32 0.5, %v3017
      %v3019 = vsub.f32 1.5, %v3018
      %v3020 = vmul.f32 %v3015, %v3019
      %vm3021 = vweird.f32 %v3004
      %vm3022 = vweird.f32 %v3015
      %vm3023 = vmor %vm3021, %vm3022
      %v3024 = vsel %vm3023, %v3015, %v3020
      %v3025 = vmul.f32 %v2991, %v3014
      %v3026 = vmul.f32 %v2992, %v3024
      %v3027 = vld [vmem:[%s57] sm:$0x1]
      %v3029 = vperm.slane %v3027, 0
      %v3031 = vmul.f32 %v3025, %v3029
      %v3032 = vmul.f32 %v3026, %v3029
      %v3033 = vld [vmem:[%s59] sm:$0x1]
      %v3035 = vperm.slane %v3033, 0
      %v3037 = vadd.f32 %v3031, %v3035
      %v3038 = vadd.f32 %v3032, %v3035
      %v3039 = vsel %vm1120, %v3037, 0.0
      %v3040 = vsel %vm1120, %v3038, 0.0
      %v3041 = vadd.f32 %v3039, %v3040
      %v3042 = vrot.slane %v3041, 4
      %v3043 = vadd.f32 %v3041, %v3042
      %v3044 = vrot.slane %v3043, 2
      %v3045 = vadd.f32 %v3043, %v3044
      %v3046 = vrot.slane %v3045, 1
      %v3047 = vadd.f32 %v3045, %v3046
      %v3048 = vpack.c.bf16 %v3047, %v3047
      %v3049 = vld [vmem:[%s61] sm:$0xf]
      %v3050 = vld [vmem:[%s61 + $0x4] sm:$0xf]
      %v3051 = vld [vmem:[%s61 + $0x8] sm:$0xf]
      %v3052 = vld [vmem:[%s61 + $0xc] sm:$0xf]
      %v3053 = vld [vmem:[#allocation2] sm:$0x1]
      %v3058 = vunpack.c.l.b16 %v3049
      %v3059 = vunpack.c.l.b16 %v3050
      %v3060 = vunpack.c.l.b16 %v3051
      %v3061 = vunpack.c.l.b16 %v3052
      %v3062 = vpack.c.b16 %v3059, %v3058
      %v3063 = vpack.c.b16 %v3061, %v3060
      %v3067 = vsel %vm1120, %v3048, 0
      %3069 = vmatpush.bf16.msra.mxu0 0
      %3070 = vmatpush.bf16.msra.mxu0 0
      %3071 = vmatpush.bf16.msra.mxu0 0
      %3072 = vmatpush.bf16.msra.mxu0 0
      %3073 = vmatpush.bf16.msra.mxu0 0
      %3074 = vmatpush.bf16.msra.mxu0 0
      %3075 = vmatpush.bf16.msra.mxu0 %v3063
      %3076 = vmatpush.bf16.msra.mxu0 %v3062
      %3077 = vmatmul.bf16.gmra.mxu0 %v3067
      %v3078 = vpop.f32.mrf.mxu0
      %v3079 = vadd.f32 %v3053, %v3078
      %v3080 = vpop.f32.mrf.mxu0
      %3081 = vdwg.mxu0
      %v3082 = vand.u32 2147483647, %v3079
      %v3083 = vsub.f32 0.0, %v3082
      %v3084 = vmul.f32 %v3083, 1.442695
      %v3085 = vpow.pop %v3084
      %vm3086 = vcmp.ge.f32.partialorder %v3079, 0.0
      %v3087 = vadd.f32 %v3085, 1.0
      %v3088 = vrcp.pop %v3087
      %v3089 = vmul.f32 %v3087, %v3088
      %v3090 = vsub.f32 1.0, %v3089
      %v3091 = vmul.f32 %v3088, %v3090
      %v3092 = vadd.f32 %v3088, %v3091
      %vm3093 = vweird.f32 %v3087
      %vm3094 = vweird.f32 %v3088
      %vm3095 = vmor %vm3093, %vm3094
      %v3096 = vsel %vm3095, %v3088, %v3092
      %v3097 = vand.u32 2147483647, %v3087
      %vm3098 = vcmp.eq.f32.partialorder %v3097, 8.507059e+37
      %v3099 = vand.u32 %v3087, 2147483648
      %v3100 = vor.u32 1.1754944e-38, %v3099
      %v3101 = vsel %vm3098, %v3100, %v3096
      %v3102 = vmul.f32 1.0, %v3101
      %v3103 = vmul.f32 %v3085, %v3101
      %v3104 = vsel %vm3086, %v3102, %v3103
      %vm3105 = vcmask 0
      %3106 = vst.msk [vmem:[%s984] sm:$0x1] %vm3105, %v3104
      %p3107 = scmp.lt.s32.totalorder %s78, 1
      %s3108 = scalar_select %p3107, %s78, 1
      %s3109 = scalar_lea.vmem %s65, %s3108
      // Predicated region
      $region149: #{hybrid_model_forward.1} parent=147 // pred_check
        %p3110 = pneg %p773
      $region150: #{hybrid_model_forward.1} parent=147 // pred_check_branch
        %3112 = sbr.rel (%p3110) target = $region152
      $region151: #{hybrid_model_forward.1} parent=147 // pred_region
        _
      $region152: #{hybrid_model_forward.1} parent=147 // pred_fallthru
        _
    $region148: #{hybrid_model_forward.1} parent=5 // pred_fallthru
      _
    %p3113 = scmp.le.s32.totalorder 2, %s73
    // Predicated region
    $region153: #{hybrid_model_forward.1} parent=5 // pred_check
      %p3114 = pneg %p3113
    $region154: #{hybrid_model_forward.1} parent=5 // pred_check_branch
      %3116 = sbr.rel (%p3114) target = $region156
    $region155: #{hybrid_model_forward.1} parent=5 // pred_region
      %s3117 = ssub.s32 %s73, 2
      // Predicated region
      $region157: #{hybrid_model_forward.1} parent=155 // pred_check
        %p3118 = pneg %p779
      $region158: #{hybrid_model_forward.1} parent=155 // pred_check_branch
        %3120 = sbr.rel (%p3118) target = $region160
      $region159: #{hybrid_model_forward.1} parent=155 // pred_region
        %p3121 = scmp.lt.s32.totalorder %s79, 1
        %s3122 = scalar_select %p3121, %s79, 1
        %s3123 = scalar_lea.vmem %s65, %s3122
      $region160: #{hybrid_model_forward.1} parent=155 // pred_fallthru
        _
    $region156: #{hybrid_model_forward.1} parent=5 // pred_fallthru
      _
  $region6: #{hybrid_model_forward.1} parent=0 // loop_footer
    %s77 = sadd.s32 1, %s73
  $region7: #{hybrid_model_forward.1} parent=0 // loop_footer_branch
    %72 = sbr.rel target = $region3
  $region8: #{hybrid_model_forward.1} parent=0 // loop_exit
    _

</llo_original>
